<compile_context>
chip_gen: v7x
topology: tpu7x:2x2x1
jax: 0.10.0
libtpu: 0.0.40
codegen_flags: <defaults>
</compile_context>

<pallas_src>
import jax
import jax.numpy as jnp
from jax.experimental import pallas as pl
from jax.experimental.pallas import tpu as pltpu


# ----------------------------- Pallas kernel --------------------------------

def _ln_relu(h, gamma, beta):
    # LayerNorm(eps=1e-6) + ReLU, all f32 (matches _make_mlp in the reference).
    mean = jnp.mean(h, axis=-1, keepdims=True)
    c = h - mean
    var = jnp.mean(c * c, axis=-1, keepdims=True)
    y = c * jax.lax.rsqrt(var + 1e-6) * gamma + beta
    return jnp.maximum(y, 0.0)


def _gnn_fused_kernel(
    # raw graph features
    raw_nodes_ref, raw_edges_ref,
    # index vectors in column ([M,1]) and row ([1,M]) layouts
    s_col_ref, s_row_ref, r_col_ref, r_row_ref,
    ngid_col_ref, ngid_row_ref, egid_col_ref, egid_row_ref,
    # embedder weights + packed misc vectors (emb biases, decoder bias)
    wn_emb_ref, we_emb_ref, misc_ref,
    # stacked per-step MLP weights (step-indexed blocks) + packed vectors
    w_edge_ref, w_node_ref, w_glob_ref, vecs_ref,
    # decoder weight
    dec_w_ref,
    # output: decoded globals
    out_ref,
    # persistent VMEM state
    nodes_vmem, edges_vmem, glob_vmem,
    # step-invariant one-hot gather/scatter matrices (bf16)
    send_g, recv_g, send_s, recv_s, eglob_g, nglob_g, node_sc, edge_sc,
):
    f32 = jnp.float32
    bf16 = jnp.bfloat16
    step = pl.program_id(0)
    last = pl.num_programs(0) - 1

    N, H = nodes_vmem.shape
    E = edges_vmem.shape[0]
    G = glob_vmem.shape[0]

    # --------------------- one-time init (step == 0) -------------------------
    @pl.when(step == 0)
    def _init():
        # fused node / edge embedders
        nodes_vmem[...] = (
            jnp.dot(raw_nodes_ref[...], wn_emb_ref[...],
                    preferred_element_type=f32) + misc_ref[0:1, :])
        edges_vmem[...] = (
            jnp.dot(raw_edges_ref[...], we_emb_ref[...],
                    preferred_element_type=f32) + misc_ref[1:2, :])
        # graph._replace(globals=zeros([n_graph, num_outputs]))
        glob_vmem[...] = jnp.zeros_like(glob_vmem)
        out_ref[...] = jnp.zeros_like(out_ref)

        # step-invariant one-hot gather / scatter matrices (bf16 is exact 0/1;
        # out-of-range padded indices produce all-zero rows/cols).
        lane_en = jax.lax.broadcasted_iota(jnp.int32, (E, N), 1)
        send_g[...] = (s_col_ref[...] == lane_en).astype(bf16)      # nodes[senders]
        recv_g[...] = (r_col_ref[...] == lane_en).astype(bf16)      # nodes[receivers]
        sub_ne = jax.lax.broadcasted_iota(jnp.int32, (N, E), 0)
        send_s[...] = (s_row_ref[...] == sub_ne).astype(bf16)       # scatter_sum by senders
        recv_s[...] = (r_row_ref[...] == sub_ne).astype(bf16)       # scatter_sum by receivers
        lane_eg = jax.lax.broadcasted_iota(jnp.int32, (E, G), 1)
        eglob_g[...] = (egid_col_ref[...] == lane_eg).astype(bf16)  # repeat(globals, n_edge)
        lane_ng = jax.lax.broadcasted_iota(jnp.int32, (N, G), 1)
        nglob_g[...] = (ngid_col_ref[...] == lane_ng).astype(bf16)  # repeat(globals, n_node)
        sub_gn = jax.lax.broadcasted_iota(jnp.int32, (G, N), 0)
        node_sc[...] = (ngid_row_ref[...] == sub_gn).astype(bf16)   # segment_sum(nodes)
        sub_ge = jax.lax.broadcasted_iota(jnp.int32, (G, E), 0)
        edge_sc[...] = (egid_row_ref[...] == sub_ge).astype(bf16)   # segment_sum(edges)

    # ------------------------ message-passing step ---------------------------
    nodes = nodes_vmem[...]
    edges = edges_vmem[...]
    globs = glob_vmem[...]
    nodes_b = nodes.astype(bf16)
    globs_b = globs.astype(bf16)

    def vec(i):                      # packed per-step [1, H] vectors
        return vecs_ref[i:i + 1, :]

    # ----- edge update: Linear(cat([edges, sent, recv, glob])) + LN + ReLU ---
    sent_attr = jnp.dot(send_g[...], nodes_b, preferred_element_type=f32)
    recv_attr = jnp.dot(recv_g[...], nodes_b, preferred_element_type=f32)
    glob_edge = jnp.dot(eglob_g[...], globs_b, preferred_element_type=f32)

    h = jnp.dot(edges, w_edge_ref[0:H, :], preferred_element_type=f32)
    h = h + jnp.dot(sent_attr, w_edge_ref[H:2 * H, :], preferred_element_type=f32)
    h = h + jnp.dot(recv_attr, w_edge_ref[2 * H:3 * H, :], preferred_element_type=f32)
    h = h + jnp.dot(glob_edge, w_edge_ref[3 * H:4 * H, :], preferred_element_type=f32)
    new_edges = _ln_relu(h + vec(0), vec(1), vec(2))
    edges_vmem[...] = new_edges

    # ----- node update --------------------------------------------------------
    new_edges_b = new_edges.astype(bf16)
    sent_agg = jnp.dot(send_s[...], new_edges_b, preferred_element_type=f32)
    recv_agg = jnp.dot(recv_s[...], new_edges_b, preferred_element_type=f32)
    glob_node = jnp.dot(nglob_g[...], globs_b, preferred_element_type=f32)

    hn = jnp.dot(nodes, w_node_ref[0:H, :], preferred_element_type=f32)
    hn = hn + jnp.dot(sent_agg, w_node_ref[H:2 * H, :], preferred_element_type=f32)
    hn = hn + jnp.dot(recv_agg, w_node_ref[2 * H:3 * H, :], preferred_element_type=f32)
    hn = hn + jnp.dot(glob_node, w_node_ref[3 * H:4 * H, :], preferred_element_type=f32)
    new_nodes = _ln_relu(hn + vec(3), vec(4), vec(5))
    nodes_vmem[...] = new_nodes

    # ----- global update ------------------------------------------------------
    node_agg = jnp.dot(node_sc[...], new_nodes.astype(bf16), preferred_element_type=f32)
    edge_agg = jnp.dot(edge_sc[...], new_edges_b, preferred_element_type=f32)

    hg = jnp.dot(node_agg, w_glob_ref[0:H, :], preferred_element_type=f32)
    hg = hg + jnp.dot(edge_agg, w_glob_ref[H:2 * H, :], preferred_element_type=f32)
    hg = hg + jnp.dot(globs, w_glob_ref[2 * H:3 * H, :], preferred_element_type=f32)
    new_globals = _ln_relu(hg + vec(6), vec(7), vec(8))
    glob_vmem[...] = new_globals

    # --------------------- decoder on the last step --------------------------
    @pl.when(step == last)
    def _final():
        out_ref[...] = (
            jnp.dot(new_globals, dec_w_ref[...], preferred_element_type=f32)
            + misc_ref[2:3, :]).astype(out_ref.dtype)


# ------------------------------ wrapper --------------------------------------

def _round_up8(x):
    return max(8, ((x + 7) // 8) * 8)


@jax.jit
def gnn_forward(params, nodes, edges, senders, receivers, n_node, n_edge):
    N, E, G = nodes.shape[0], edges.shape[0], n_node.shape[0]
    # static config derived from array shapes (never tracers)
    S, _, H = params["gn_w_edge"].shape
    O = params["decoder_w"].shape[1]

    N_pad, E_pad, G_pad = _round_up8(N), _round_up8(E), _round_up8(G)

    # zero-pad raw features to sublane-dense row counts
    nodes_p = jnp.zeros((N_pad, nodes.shape[1]), jnp.float32).at[:N].set(
        nodes.astype(jnp.float32))
    edges_p = jnp.zeros((E_pad, edges.shape[1]), jnp.float32).at[:E].set(
        edges.astype(jnp.float32))

    # graph-membership indices (repeat_interleave of arange over n_node/n_edge);
    # padded rows get out-of-range indices -> zero one-hot rows/cols.
    node_gid = jnp.repeat(jnp.arange(G, dtype=jnp.int32), n_node,
                          total_repeat_length=N)
    edge_gid = jnp.repeat(jnp.arange(G, dtype=jnp.int32), n_edge,
                          total_repeat_length=E)
    s_idx = jnp.full((E_pad,), N_pad, jnp.int32).at[:E].set(senders.astype(jnp.int32))
    r_idx = jnp.full((E_pad,), N_pad, jnp.int32).at[:E].set(receivers.astype(jnp.int32))
    ngid = jnp.full((N_pad,), G_pad, jnp.int32).at[:N].set(node_gid)
    egid = jnp.full((E_pad,), G_pad, jnp.int32).at[:E].set(edge_gid)

    args = (
        nodes_p, edges_p,
        s_idx.reshape(E_pad, 1), s_idx.reshape(1, E_pad),
        r_idx.reshape(E_pad, 1), r_idx.reshape(1, E_pad),
        ngid.reshape(N_pad, 1), ngid.reshape(1, N_pad),
        egid.reshape(E_pad, 1), egid.reshape(1, E_pad),
        params["node_emb_w"], params["edge_emb_w"], params["misc_vecs"],
        params["gn_w_edge"], params["gn_w_node"], params["gn_w_glob"],
        params["gn_vecs"], params["decoder_w"],
    )

    def const_spec(shape):
        return pl.BlockSpec(shape, lambda s, _n=len(shape): (0,) * _n)

    in_specs = [const_spec(a.shape) for a in args[:13]] + [
        pl.BlockSpec((None, 4 * H, H), lambda s: (s, 0, 0)),   # stacked edge-MLP W
        pl.BlockSpec((None, 4 * H, H), lambda s: (s, 0, 0)),   # stacked node-MLP W
        pl.BlockSpec((None, 3 * H, H), lambda s: (s, 0, 0)),   # stacked global-MLP W
        pl.BlockSpec((None, 16, H), lambda s: (s, 0, 0)),      # packed bias/gamma/beta
        const_spec(params["decoder_w"].shape),
    ]

    bf16 = jnp.bfloat16
    out = pl.pallas_call(
        _gnn_fused_kernel,
        out_shape=jax.ShapeDtypeStruct((G_pad, O), jnp.float32),
        grid=(S,),
        in_specs=in_specs,
        out_specs=pl.BlockSpec((G_pad, O), lambda s: (0, 0)),
        scratch_shapes=[
            pltpu.VMEM((N_pad, H), jnp.float32),     # nodes state
            pltpu.VMEM((E_pad, H), jnp.float32),     # edges state
            pltpu.VMEM((G_pad, H), jnp.float32),     # globals state
            pltpu.VMEM((E_pad, N_pad), bf16),        # send gather
            pltpu.VMEM((E_pad, N_pad), bf16),        # recv gather
            pltpu.VMEM((N_pad, E_pad), bf16),        # scatter by senders
            pltpu.VMEM((N_pad, E_pad), bf16),        # scatter by receivers
            pltpu.VMEM((E_pad, G_pad), bf16),        # globals -> edges broadcast
            pltpu.VMEM((N_pad, G_pad), bf16),        # globals -> nodes broadcast
            pltpu.VMEM((G_pad, N_pad), bf16),        # nodes segment-sum
            pltpu.VMEM((G_pad, E_pad), bf16),        # edges segment-sum
        ],
        compiler_params=pltpu.CompilerParams(
            dimension_semantics=("arbitrary",),
            vmem_limit_bytes=32 * 1024 * 1024,
        ),
    )(*args)
    return out[:G]


# ------------------------- parameter initialization --------------------------

def _dense_init(key, fan_in, fan_out):
    # deterministic stand-in for pytorch_default_init (~ 1/sqrt(fan_in))
    std = (1.0 / fan_in) ** 0.5
    w = std * jax.random.normal(key, (fan_in, fan_out), jnp.float32)
    b = jnp.zeros((fan_out,), jnp.float32)
    return w, b


def init_gnn_params(key, *, latent_dim, hidden_dim, num_outputs,
                    num_message_passing_steps):
    # fused multi-step kernel requires uniform feature dims (see TODO above)
    assert latent_dim == hidden_dim == num_outputs
    H = hidden_dim
    keys = jax.random.split(key, 3 + 3 * num_message_passing_steps)

    wn_emb, bn_emb = _dense_init(keys[0], 9, latent_dim)
    we_emb, be_emb = _dense_init(keys[1], 3, latent_dim)
    dec_w, dec_b = _dense_init(keys[2], hidden_dim, num_outputs)
    misc = jnp.zeros((8, latent_dim), jnp.float32)
    misc = misc.at[0].set(bn_emb).at[1].set(be_emb).at[2].set(dec_b)

    ones = jnp.ones((H,), jnp.float32)    # nn.LayerNorm defaults
    zeros = jnp.zeros((H,), jnp.float32)
    w_edge, w_node, w_glob, vecs = [], [], [], []
    for st in range(num_message_passing_steps):
        k0, k1, k2 = keys[3 + 3 * st:6 + 3 * st]
        we, be = _dense_init(k0, 4 * H, H)   # cat([edges, sent, recv, glob])
        wn, bn = _dense_init(k1, 4 * H, H)   # cat([nodes, sent, recv, glob])
        wg, bg = _dense_init(k2, 3 * H, H)   # cat([node_agg, edge_agg, glob])
        w_edge.append(we); w_node.append(wn); w_glob.append(wg)
        v = jnp.zeros((16, H), jnp.float32)
        v = (v.at[0].set(be).at[1].set(ones).at[2].set(zeros)
              .at[3].set(bn).at[4].set(ones).at[5].set(zeros)
              .at[6].set(bg).at[7].set(ones).at[8].set(zeros))
        vecs.append(v)

    return {
        "node_emb_w": wn_emb,
        "edge_emb_w": we_emb,
        "decoder_w": dec_w,
        "misc_vecs": misc,                      # row0/1: emb biases, row2: decoder bias
        "gn_w_edge": jnp.stack(w_edge),         # [S, 4H, H]
        "gn_w_node": jnp.stack(w_node),         # [S, 4H, H]
        "gn_w_glob": jnp.stack(w_glob),         # [S, 3H, H]
        "gn_vecs": jnp.stack(vecs),             # [S, 16, H]
    }


# --------------------------------- main ---------------------------------------

if __name__ == "__main__":
    key = jax.random.PRNGKey(0)
    k_param, k_nodes, k_edges, k_s0, k_r0, k_s1, k_r1 = jax.random.split(key, 7)

    # lane-dense config (num_outputs default of the module is exactly 128)
    LATENT = 128
    HIDDEN = 128
    NUM_OUTPUTS = 128
    NUM_STEPS = 2

    # graph batch: 2 graphs, 16 nodes total, 24 edges total
    n_node = jnp.array([10, 6], dtype=jnp.int32)
    n_edge = jnp.array([14, 10], dtype=jnp.int32)
    N = int(n_node.sum())
    E = int(n_edge.sum())

    nodes = jax.random.normal(k_nodes, (N, 9), jnp.float32)   # ogbg node feats: 9
    edges = jax.random.normal(k_edges, (E, 3), jnp.float32)   # ogbg edge feats: 3

    # senders / receivers kept within their own graph's node range
    s0 = jax.random.randint(k_s0, (14,), 0, 10)
    r0 = jax.random.randint(k_r0, (14,), 0, 10)
    s1 = jax.random.randint(k_s1, (10,), 10, 16)
    r1 = jax.random.randint(k_r1, (10,), 10, 16)
    senders = jnp.concatenate([s0, s1]).astype(jnp.int32)
    receivers = jnp.concatenate([r0, r1]).astype(jnp.int32)

    params = init_gnn_params(
        k_param,
        latent_dim=LATENT,
        hidden_dim=HIDDEN,
        num_outputs=NUM_OUTPUTS,
        num_message_passing_steps=NUM_STEPS,
    )

    out = gnn_forward(params, nodes, edges, senders, receivers, n_node, n_edge)
    out = jax.block_until_ready(out)
    assert out.shape == (2, NUM_OUTPUTS), out.shape
    assert bool(jnp.all(jnp.isfinite(out)))
    print("KERNEL_OK")
</pallas_src>

<mosaic_0001>
module attributes {stable_mosaic.version = 11 : i64} {
  func.func @_gnn_fused_kernel(%arg0: i32, %arg1: memref<16x9xf32, #tpu.memory_space<vmem>>, %arg2: memref<24x3xf32, #tpu.memory_space<vmem>>, %arg3: memref<24x1xi32, #tpu.memory_space<vmem>>, %arg4: memref<1x24xi32, #tpu.memory_space<vmem>>, %arg5: memref<24x1xi32, #tpu.memory_space<vmem>>, %arg6: memref<1x24xi32, #tpu.memory_space<vmem>>, %arg7: memref<16x1xi32, #tpu.memory_space<vmem>>, %arg8: memref<1x16xi32, #tpu.memory_space<vmem>>, %arg9: memref<24x1xi32, #tpu.memory_space<vmem>>, %arg10: memref<1x24xi32, #tpu.memory_space<vmem>>, %arg11: memref<9x128xf32, #tpu.memory_space<vmem>>, %arg12: memref<3x128xf32, #tpu.memory_space<vmem>>, %arg13: memref<8x128xf32, #tpu.memory_space<vmem>>, %arg14: memref<1x512x128xf32, #tpu.memory_space<vmem>>, %arg15: memref<1x512x128xf32, #tpu.memory_space<vmem>>, %arg16: memref<1x384x128xf32, #tpu.memory_space<vmem>>, %arg17: memref<1x16x128xf32, #tpu.memory_space<vmem>>, %arg18: memref<128x128xf32, #tpu.memory_space<vmem>>, %arg19: memref<8x128xf32, #tpu.memory_space<vmem>>, %arg20: memref<16x128xf32, #tpu.memory_space<vmem>>, %arg21: memref<24x128xf32, #tpu.memory_space<vmem>>, %arg22: memref<8x128xf32, #tpu.memory_space<vmem>>, %arg23: memref<24x16xbf16, #tpu.memory_space<vmem>>, %arg24: memref<24x16xbf16, #tpu.memory_space<vmem>>, %arg25: memref<16x24xbf16, #tpu.memory_space<vmem>>, %arg26: memref<16x24xbf16, #tpu.memory_space<vmem>>, %arg27: memref<24x8xbf16, #tpu.memory_space<vmem>>, %arg28: memref<16x8xbf16, #tpu.memory_space<vmem>>, %arg29: memref<8x16xbf16, #tpu.memory_space<vmem>>, %arg30: memref<8x24xbf16, #tpu.memory_space<vmem>>) attributes {dimension_semantics = [#tpu.dimension_semantics<arbitrary>], iteration_bounds = array<i64: 2>, scalar_prefetch = 0 : i64, scratch_operands = 11 : i64, tpu.core_type = #tpu.core_type<tc>, window_params = [{pipeline_mode = #tpu.pipeline_mode<synchronous>, transform_indices = @transform_0, window_bounds = array<i64: 16, 9>}, {pipeline_mode = #tpu.pipeline_mode<synchronous>, transform_indices = @transform_1, window_bounds = array<i64: 24, 3>}, {pipeline_mode = #tpu.pipeline_mode<synchronous>, transform_indices = @transform_2, window_bounds = array<i64: 24, 1>}, {pipeline_mode = #tpu.pipeline_mode<synchronous>, transform_indices = @transform_3, window_bounds = array<i64: 1, 24>}, {pipeline_mode = #tpu.pipeline_mode<synchronous>, transform_indices = @transform_4, window_bounds = array<i64: 24, 1>}, {pipeline_mode = #tpu.pipeline_mode<synchronous>, transform_indices = @transform_5, window_bounds = array<i64: 1, 24>}, {pipeline_mode = #tpu.pipeline_mode<synchronous>, transform_indices = @transform_6, window_bounds = array<i64: 16, 1>}, {pipeline_mode = #tpu.pipeline_mode<synchronous>, transform_indices = @transform_7, window_bounds = array<i64: 1, 16>}, {pipeline_mode = #tpu.pipeline_mode<synchronous>, transform_indices = @transform_8, window_bounds = array<i64: 24, 1>}, {pipeline_mode = #tpu.pipeline_mode<synchronous>, transform_indices = @transform_9, window_bounds = array<i64: 1, 24>}, {pipeline_mode = #tpu.pipeline_mode<synchronous>, transform_indices = @transform_10, window_bounds = array<i64: 9, 128>}, {pipeline_mode = #tpu.pipeline_mode<synchronous>, transform_indices = @transform_11, window_bounds = array<i64: 3, 128>}, {pipeline_mode = #tpu.pipeline_mode<synchronous>, transform_indices = @transform_12, window_bounds = array<i64: 8, 128>}, {transform_indices = @transform_13, window_bounds = array<i64: 1, 512, 128>}, {transform_indices = @transform_14, window_bounds = array<i64: 1, 512, 128>}, {transform_indices = @transform_15, window_bounds = array<i64: 1, 384, 128>}, {transform_indices = @transform_16, window_bounds = array<i64: 1, 16, 128>}, {pipeline_mode = #tpu.pipeline_mode<synchronous>, transform_indices = @transform_17, window_bounds = array<i64: 128, 128>}, {pipeline_mode = #tpu.pipeline_mode<synchronous>, transform_indices = @transform_18, window_bounds = array<i64: 8, 128>}]} {
    %c0_i32 = arith.constant 0 : i32
    %0 = arith.cmpi eq, %arg0, %c0_i32 : i32
    %1 = arith.extui %0 : i1 to i32
    %c0_i32_0 = arith.constant 0 : i32
    %2 = arith.cmpi ne, %1, %c0_i32_0 : i32
    scf.if %2 {
      %c0_114 = arith.constant 0 : index
      %c0_115 = arith.constant 0 : index
      %163 = vector.load %arg1[%c0_114, %c0_115] : memref<16x9xf32, #tpu.memory_space<vmem>>, vector<16x9xf32>
      %c0_116 = arith.constant 0 : index
      %c0_117 = arith.constant 0 : index
      %164 = vector.load %arg11[%c0_116, %c0_117] : memref<9x128xf32, #tpu.memory_space<vmem>>, vector<9x128xf32>
      %cst_118 = arith.constant dense<0.000000e+00> : vector<16x128xf32>
      %165 = tpu.matmul %163, %164, %cst_118 {dimension_numbers = #tpu.dot_dimension_numbers<[1], [0], [0], [1], [0, 0, 1, 1], [], []>} : vector<16x9xf32>, vector<9x128xf32>, vector<16x128xf32> -> vector<16x128xf32>
      %c0_119 = arith.constant 0 : index
      %c0_120 = arith.constant 0 : index
      %166 = vector.load %arg13[%c0_119, %c0_120] : memref<8x128xf32, #tpu.memory_space<vmem>>, vector<1x128xf32>
      %167 = vector.broadcast %166 : vector<1x128xf32> to vector<16x128xf32>
      %168 = arith.addf %165, %167 : vector<16x128xf32>
      %c0_121 = arith.constant 0 : index
      %c0_122 = arith.constant 0 : index
      %169 = vector.load %arg20[%c0_121, %c0_122] : memref<16x128xf32, #tpu.memory_space<vmem>>, vector<16x128xf32>
      tpu.vector_store %arg20[%c0_121, %c0_122], %168 {strides = array<i32>} : memref<16x128xf32, #tpu.memory_space<vmem>>, vector<16x128xf32>,
      %c0_123 = arith.constant 0 : index
      %c0_124 = arith.constant 0 : index
      %170 = vector.load %arg2[%c0_123, %c0_124] : memref<24x3xf32, #tpu.memory_space<vmem>>, vector<24x3xf32>
      %c0_125 = arith.constant 0 : index
      %c0_126 = arith.constant 0 : index
      %171 = vector.load %arg12[%c0_125, %c0_126] : memref<3x128xf32, #tpu.memory_space<vmem>>, vector<3x128xf32>
      %cst_127 = arith.constant dense<0.000000e+00> : vector<24x128xf32>
      %172 = tpu.matmul %170, %171, %cst_127 {dimension_numbers = #tpu.dot_dimension_numbers<[1], [0], [0], [1], [0, 0, 1, 1], [], []>} : vector<24x3xf32>, vector<3x128xf32>, vector<24x128xf32> -> vector<24x128xf32>
      %c1_128 = arith.constant 1 : index
      %c0_129 = arith.constant 0 : index
      %173 = vector.load %arg13[%c1_128, %c0_129] : memref<8x128xf32, #tpu.memory_space<vmem>>, vector<1x128xf32>
      %174 = vector.broadcast %173 : vector<1x128xf32> to vector<24x128xf32>
      %175 = arith.addf %172, %174 : vector<24x128xf32>
      %c0_130 = arith.constant 0 : index
      %c0_131 = arith.constant 0 : index
      %176 = vector.load %arg21[%c0_130, %c0_131] : memref<24x128xf32, #tpu.memory_space<vmem>>, vector<24x128xf32>
      tpu.vector_store %arg21[%c0_130, %c0_131], %175 {strides = array<i32>} : memref<24x128xf32, #tpu.memory_space<vmem>>, vector<24x128xf32>,
      %cst_132 = arith.constant 0.000000e+00 : f32
      %177 = vector.broadcast %cst_132 : f32 to vector<8x128xf32>
      %c0_133 = arith.constant 0 : index
      %c0_134 = arith.constant 0 : index
      %178 = vector.load %arg22[%c0_133, %c0_134] : memref<8x128xf32, #tpu.memory_space<vmem>>, vector<8x128xf32>
      tpu.vector_store %arg22[%c0_133, %c0_134], %177 {strides = array<i32>} : memref<8x128xf32, #tpu.memory_space<vmem>>, vector<8x128xf32>,
      %cst_135 = arith.constant 0.000000e+00 : f32
      %179 = vector.broadcast %cst_135 : f32 to vector<8x128xf32>
      %c0_136 = arith.constant 0 : index
      %c0_137 = arith.constant 0 : index
      %180 = vector.load %arg19[%c0_136, %c0_137] : memref<8x128xf32, #tpu.memory_space<vmem>>, vector<8x128xf32>
      tpu.vector_store %arg19[%c0_136, %c0_137], %179 {strides = array<i32>} : memref<8x128xf32, #tpu.memory_space<vmem>>, vector<8x128xf32>,
      %181 = tpu.iota {dimensions = array<i32: 1>} : vector<24x16xi32>
      %c0_138 = arith.constant 0 : index
      %c0_139 = arith.constant 0 : index
      %182 = vector.load %arg3[%c0_138, %c0_139] : memref<24x1xi32, #tpu.memory_space<vmem>>, vector<24x1xi32>
      %183 = vector.broadcast %182 : vector<24x1xi32> to vector<24x16xi32>
      %184 = arith.cmpi eq, %183, %181 : vector<24x16xi32>
      %185 = arith.extui %184 : vector<24x16xi1> to vector<24x16xi32>
      %186 = arith.sitofp %185 : vector<24x16xi32> to vector<24x16xf32>
      %187 = arith.truncf %186 : vector<24x16xf32> to vector<24x16xbf16>
      %c0_140 = arith.constant 0 : index
      %c0_141 = arith.constant 0 : index
      %188 = vector.load %arg23[%c0_140, %c0_141] : memref<24x16xbf16, #tpu.memory_space<vmem>>, vector<24x16xbf16>
      tpu.vector_store %arg23[%c0_140, %c0_141], %187 {strides = array<i32>} : memref<24x16xbf16, #tpu.memory_space<vmem>>, vector<24x16xbf16>,
      %c0_142 = arith.constant 0 : index
      %c0_143 = arith.constant 0 : index
      %189 = vector.load %arg5[%c0_142, %c0_143] : memref<24x1xi32, #tpu.memory_space<vmem>>, vector<24x1xi32>
      %190 = vector.broadcast %189 : vector<24x1xi32> to vector<24x16xi32>
      %191 = arith.cmpi eq, %190, %181 : vector<24x16xi32>
      %192 = arith.extui %191 : vector<24x16xi1> to vector<24x16xi32>
      %193 = arith.sitofp %192 : vector<24x16xi32> to vector<24x16xf32>
      %194 = arith.truncf %193 : vector<24x16xf32> to vector<24x16xbf16>
      %c0_144 = arith.constant 0 : index
      %c0_145 = arith.constant 0 : index
      %195 = vector.load %arg24[%c0_144, %c0_145] : memref<24x16xbf16, #tpu.memory_space<vmem>>, vector<24x16xbf16>
      tpu.vector_store %arg24[%c0_144, %c0_145], %194 {strides = array<i32>} : memref<24x16xbf16, #tpu.memory_space<vmem>>, vector<24x16xbf16>,
      %196 = tpu.iota {dimensions = array<i32: 0>} : vector<16x24xi32>
      %c0_146 = arith.constant 0 : index
      %c0_147 = arith.constant 0 : index
      %197 = vector.load %arg4[%c0_146, %c0_147] : memref<1x24xi32, #tpu.memory_space<vmem>>, vector<1x24xi32>
      %198 = vector.broadcast %197 : vector<1x24xi32> to vector<16x24xi32>
      %199 = arith.cmpi eq, %198, %196 : vector<16x24xi32>
      %200 = arith.extui %199 : vector<16x24xi1> to vector<16x24xi32>
      %201 = arith.sitofp %200 : vector<16x24xi32> to vector<16x24xf32>
      %202 = arith.truncf %201 : vector<16x24xf32> to vector<16x24xbf16>
      %c0_148 = arith.constant 0 : index
      %c0_149 = arith.constant 0 : index
      %203 = vector.load %arg25[%c0_148, %c0_149] : memref<16x24xbf16, #tpu.memory_space<vmem>>, vector<16x24xbf16>
      tpu.vector_store %arg25[%c0_148, %c0_149], %202 {strides = array<i32>} : memref<16x24xbf16, #tpu.memory_space<vmem>>, vector<16x24xbf16>,
      %c0_150 = arith.constant 0 : index
      %c0_151 = arith.constant 0 : index
      %204 = vector.load %arg6[%c0_150, %c0_151] : memref<1x24xi32, #tpu.memory_space<vmem>>, vector<1x24xi32>
      %205 = vector.broadcast %204 : vector<1x24xi32> to vector<16x24xi32>
      %206 = arith.cmpi eq, %205, %196 : vector<16x24xi32>
      %207 = arith.extui %206 : vector<16x24xi1> to vector<16x24xi32>
      %208 = arith.sitofp %207 : vector<16x24xi32> to vector<16x24xf32>
      %209 = arith.truncf %208 : vector<16x24xf32> to vector<16x24xbf16>
      %c0_152 = arith.constant 0 : index
      %c0_153 = arith.constant 0 : index
      %210 = vector.load %arg26[%c0_152, %c0_153] : memref<16x24xbf16, #tpu.memory_space<vmem>>, vector<16x24xbf16>
      tpu.vector_store %arg26[%c0_152, %c0_153], %209 {strides = array<i32>} : memref<16x24xbf16, #tpu.memory_space<vmem>>, vector<16x24xbf16>,
      %211 = tpu.iota {dimensions = array<i32: 1>} : vector<24x8xi32>
      %c0_154 = arith.constant 0 : index
      %c0_155 = arith.constant 0 : index
      %212 = vector.load %arg9[%c0_154, %c0_155] : memref<24x1xi32, #tpu.memory_space<vmem>>, vector<24x1xi32>
      %213 = vector.broadcast %212 : vector<24x1xi32> to vector<24x8xi32>
      %214 = arith.cmpi eq, %213, %211 : vector<24x8xi32>
      %215 = arith.extui %214 : vector<24x8xi1> to vector<24x8xi32>
      %216 = arith.sitofp %215 : vector<24x8xi32> to vector<24x8xf32>
      %217 = arith.truncf %216 : vector<24x8xf32> to vector<24x8xbf16>
      %c0_156 = arith.constant 0 : index
      %c0_157 = arith.constant 0 : index
      %218 = vector.load %arg27[%c0_156, %c0_157] : memref<24x8xbf16, #tpu.memory_space<vmem>>, vector<24x8xbf16>
      tpu.vector_store %arg27[%c0_156, %c0_157], %217 {strides = array<i32>} : memref<24x8xbf16, #tpu.memory_space<vmem>>, vector<24x8xbf16>,
      %219 = tpu.iota {dimensions = array<i32: 1>} : vector<16x8xi32>
      %c0_158 = arith.constant 0 : index
      %c0_159 = arith.constant 0 : index
      %220 = vector.load %arg7[%c0_158, %c0_159] : memref<16x1xi32, #tpu.memory_space<vmem>>, vector<16x1xi32>
      %221 = vector.broadcast %220 : vector<16x1xi32> to vector<16x8xi32>
      %222 = arith.cmpi eq, %221, %219 : vector<16x8xi32>
      %223 = arith.extui %222 : vector<16x8xi1> to vector<16x8xi32>
      %224 = arith.sitofp %223 : vector<16x8xi32> to vector<16x8xf32>
      %225 = arith.truncf %224 : vector<16x8xf32> to vector<16x8xbf16>
      %c0_160 = arith.constant 0 : index
      %c0_161 = arith.constant 0 : index
      %226 = vector.load %arg28[%c0_160, %c0_161] : memref<16x8xbf16, #tpu.memory_space<vmem>>, vector<16x8xbf16>
      tpu.vector_store %arg28[%c0_160, %c0_161], %225 {strides = array<i32>} : memref<16x8xbf16, #tpu.memory_space<vmem>>, vector<16x8xbf16>,
      %227 = tpu.iota {dimensions = array<i32: 0>} : vector<8x16xi32>
      %c0_162 = arith.constant 0 : index
      %c0_163 = arith.constant 0 : index
      %228 = vector.load %arg8[%c0_162, %c0_163] : memref<1x16xi32, #tpu.memory_space<vmem>>, vector<1x16xi32>
      %229 = vector.broadcast %228 : vector<1x16xi32> to vector<8x16xi32>
      %230 = arith.cmpi eq, %229, %227 : vector<8x16xi32>
      %231 = arith.extui %230 : vector<8x16xi1> to vector<8x16xi32>
      %232 = arith.sitofp %231 : vector<8x16xi32> to vector<8x16xf32>
      %233 = arith.truncf %232 : vector<8x16xf32> to vector<8x16xbf16>
      %c0_164 = arith.constant 0 : index
      %c0_165 = arith.constant 0 : index
      %234 = vector.load %arg29[%c0_164, %c0_165] : memref<8x16xbf16, #tpu.memory_space<vmem>>, vector<8x16xbf16>
      tpu.vector_store %arg29[%c0_164, %c0_165], %233 {strides = array<i32>} : memref<8x16xbf16, #tpu.memory_space<vmem>>, vector<8x16xbf16>,
      %235 = tpu.iota {dimensions = array<i32: 0>} : vector<8x24xi32>
      %c0_166 = arith.constant 0 : index
      %c0_167 = arith.constant 0 : index
      %236 = vector.load %arg10[%c0_166, %c0_167] : memref<1x24xi32, #tpu.memory_space<vmem>>, vector<1x24xi32>
      %237 = vector.broadcast %236 : vector<1x24xi32> to vector<8x24xi32>
      %238 = arith.cmpi eq, %237, %235 : vector<8x24xi32>
      %239 = arith.extui %238 : vector<8x24xi1> to vector<8x24xi32>
      %240 = arith.sitofp %239 : vector<8x24xi32> to vector<8x24xf32>
      %241 = arith.truncf %240 : vector<8x24xf32> to vector<8x24xbf16>
      %c0_168 = arith.constant 0 : index
      %c0_169 = arith.constant 0 : index
      %242 = vector.load %arg30[%c0_168, %c0_169] : memref<8x24xbf16, #tpu.memory_space<vmem>>, vector<8x24xbf16>
      tpu.vector_store %arg30[%c0_168, %c0_169], %241 {strides = array<i32>} : memref<8x24xbf16, #tpu.memory_space<vmem>>, vector<8x24xbf16>,
    } else {
    }
    %c0 = arith.constant 0 : index
    %c0_1 = arith.constant 0 : index
    %3 = vector.load %arg20[%c0, %c0_1] : memref<16x128xf32, #tpu.memory_space<vmem>>, vector<16x128xf32>
    %c0_2 = arith.constant 0 : index
    %c0_3 = arith.constant 0 : index
    %4 = vector.load %arg21[%c0_2, %c0_3] : memref<24x128xf32, #tpu.memory_space<vmem>>, vector<24x128xf32>
    %c0_4 = arith.constant 0 : index
    %c0_5 = arith.constant 0 : index
    %5 = vector.load %arg22[%c0_4, %c0_5] : memref<8x128xf32, #tpu.memory_space<vmem>>, vector<8x128xf32>
    %6 = arith.truncf %3 : vector<16x128xf32> to vector<16x128xbf16>
    %7 = arith.truncf %5 : vector<8x128xf32> to vector<8x128xbf16>
    %c0_6 = arith.constant 0 : index
    %c0_7 = arith.constant 0 : index
    %8 = vector.load %arg23[%c0_6, %c0_7] : memref<24x16xbf16, #tpu.memory_space<vmem>>, vector<24x16xbf16>
    %cst = arith.constant dense<0.000000e+00> : vector<24x128xf32>
    %9 = tpu.matmul %8, %6, %cst {dimension_numbers = #tpu.dot_dimension_numbers<[1], [0], [0], [1], [0, 0, 1, 1], [], []>} : vector<24x16xbf16>, vector<16x128xbf16>, vector<24x128xf32> -> vector<24x128xf32>
    %c0_8 = arith.constant 0 : index
    %c0_9 = arith.constant 0 : index
    %10 = vector.load %arg24[%c0_8, %c0_9] : memref<24x16xbf16, #tpu.memory_space<vmem>>, vector<24x16xbf16>
    %cst_10 = arith.constant dense<0.000000e+00> : vector<24x128xf32>
    %11 = tpu.matmul %10, %6, %cst_10 {dimension_numbers = #tpu.dot_dimension_numbers<[1], [0], [0], [1], [0, 0, 1, 1], [], []>} : vector<24x16xbf16>, vector<16x128xbf16>, vector<24x128xf32> -> vector<24x128xf32>
    %c0_11 = arith.constant 0 : index
    %c0_12 = arith.constant 0 : index
    %12 = vector.load %arg27[%c0_11, %c0_12] : memref<24x8xbf16, #tpu.memory_space<vmem>>, vector<24x8xbf16>
    %cst_13 = arith.constant dense<0.000000e+00> : vector<24x128xf32>
    %13 = tpu.matmul %12, %7, %cst_13 {dimension_numbers = #tpu.dot_dimension_numbers<[1], [0], [0], [1], [0, 0, 1, 1], [], []>} : vector<24x8xbf16>, vector<8x128xbf16>, vector<24x128xf32> -> vector<24x128xf32>
    %c0_14 = arith.constant 0 : index
    %c0_15 = arith.constant 0 : index
    %c0_16 = arith.constant 0 : index
    %14 = vector.load %arg14[%c0_14, %c0_15, %c0_16] : memref<1x512x128xf32, #tpu.memory_space<vmem>>, vector<1x128x128xf32>
    %15 = vector.shape_cast %14 : vector<1x128x128xf32> to vector<128x128xf32>
    %cst_17 = arith.constant dense<0.000000e+00> : vector<24x128xf32>
    %16 = tpu.matmul %4, %15, %cst_17 {dimension_numbers = #tpu.dot_dimension_numbers<[1], [0], [0], [1], [0, 0, 1, 1], [], []>} : vector<24x128xf32>, vector<128x128xf32>, vector<24x128xf32> -> vector<24x128xf32>
    %c0_18 = arith.constant 0 : index
    %c128 = arith.constant 128 : index
    %c0_19 = arith.constant 0 : index
    %17 = vector.load %arg14[%c0_18, %c128, %c0_19] : memref<1x512x128xf32, #tpu.memory_space<vmem>>, vector<1x128x128xf32>
    %18 = vector.shape_cast %17 : vector<1x128x128xf32> to vector<128x128xf32>
    %cst_20 = arith.constant dense<0.000000e+00> : vector<24x128xf32>
    %19 = tpu.matmul %9, %18, %cst_20 {dimension_numbers = #tpu.dot_dimension_numbers<[1], [0], [0], [1], [0, 0, 1, 1], [], []>} : vector<24x128xf32>, vector<128x128xf32>, vector<24x128xf32> -> vector<24x128xf32>
    %20 = arith.addf %16, %19 : vector<24x128xf32>
    %c0_21 = arith.constant 0 : index
    %c256 = arith.constant 256 : index
    %c0_22 = arith.constant 0 : index
    %21 = vector.load %arg14[%c0_21, %c256, %c0_22] : memref<1x512x128xf32, #tpu.memory_space<vmem>>, vector<1x128x128xf32>
    %22 = vector.shape_cast %21 : vector<1x128x128xf32> to vector<128x128xf32>
    %cst_23 = arith.constant dense<0.000000e+00> : vector<24x128xf32>
    %23 = tpu.matmul %11, %22, %cst_23 {dimension_numbers = #tpu.dot_dimension_numbers<[1], [0], [0], [1], [0, 0, 1, 1], [], []>} : vector<24x128xf32>, vector<128x128xf32>, vector<24x128xf32> -> vector<24x128xf32>
    %24 = arith.addf %20, %23 : vector<24x128xf32>
    %c0_24 = arith.constant 0 : index
    %c384 = arith.constant 384 : index
    %c0_25 = arith.constant 0 : index
    %25 = vector.load %arg14[%c0_24, %c384, %c0_25] : memref<1x512x128xf32, #tpu.memory_space<vmem>>, vector<1x128x128xf32>
    %26 = vector.shape_cast %25 : vector<1x128x128xf32> to vector<128x128xf32>
    %cst_26 = arith.constant dense<0.000000e+00> : vector<24x128xf32>
    %27 = tpu.matmul %13, %26, %cst_26 {dimension_numbers = #tpu.dot_dimension_numbers<[1], [0], [0], [1], [0, 0, 1, 1], [], []>} : vector<24x128xf32>, vector<128x128xf32>, vector<24x128xf32> -> vector<24x128xf32>
    %28 = arith.addf %24, %27 : vector<24x128xf32>
    %c0_27 = arith.constant 0 : index
    %c0_28 = arith.constant 0 : index
    %c0_29 = arith.constant 0 : index
    %29 = vector.load %arg17[%c0_27, %c0_28, %c0_29] : memref<1x16x128xf32, #tpu.memory_space<vmem>>, vector<1x1x128xf32>
    %30 = vector.shape_cast %29 : vector<1x1x128xf32> to vector<1x128xf32>
    %31 = vector.broadcast %30 : vector<1x128xf32> to vector<24x128xf32>
    %32 = arith.addf %28, %31 : vector<24x128xf32>
    %c0_30 = arith.constant 0 : index
    %c1 = arith.constant 1 : index
    %c0_31 = arith.constant 0 : index
    %33 = vector.load %arg17[%c0_30, %c1, %c0_31] : memref<1x16x128xf32, #tpu.memory_space<vmem>>, vector<1x1x128xf32>
    %34 = vector.shape_cast %33 : vector<1x1x128xf32> to vector<1x128xf32>
    %c0_32 = arith.constant 0 : index
    %c2 = arith.constant 2 : index
    %c0_33 = arith.constant 0 : index
    %35 = vector.load %arg17[%c0_32, %c2, %c0_33] : memref<1x16x128xf32, #tpu.memory_space<vmem>>, vector<1x1x128xf32>
    %36 = vector.shape_cast %35 : vector<1x1x128xf32> to vector<1x128xf32>
    %cst_34 = arith.constant dense<0.000000e+00> : vector<24xf32>
    %37 = vector.multi_reduction <add>, %32, %cst_34 [1] : vector<24x128xf32> to vector<24xf32>
    %38 = vector.shape_cast %37 : vector<24xf32> to vector<24x1xf32>
    %cst_35 = arith.constant 1.280000e+02 : f32
    %39 = vector.broadcast %cst_35 : f32 to vector<24x1xf32>
    %40 = arith.divf %38, %39 : vector<24x1xf32>
    %41 = vector.broadcast %40 : vector<24x1xf32> to vector<24x128xf32>
    %42 = arith.subf %32, %41 : vector<24x128xf32>
    %43 = arith.mulf %42, %42 : vector<24x128xf32>
    %cst_36 = arith.constant dense<0.000000e+00> : vector<24xf32>
    %44 = vector.multi_reduction <add>, %43, %cst_36 [1] : vector<24x128xf32> to vector<24xf32>
    %45 = vector.shape_cast %44 : vector<24xf32> to vector<24x1xf32>
    %cst_37 = arith.constant 1.280000e+02 : f32
    %46 = vector.broadcast %cst_37 : f32 to vector<24x1xf32>
    %47 = arith.divf %45, %46 : vector<24x1xf32>
    %cst_38 = arith.constant 9.99999997E-7 : f32
    %48 = vector.broadcast %cst_38 : f32 to vector<24x1xf32>
    %49 = arith.addf %47, %48 : vector<24x1xf32>
    %50 = math.rsqrt %49 : vector<24x1xf32>
    %51 = vector.broadcast %50 : vector<24x1xf32> to vector<24x128xf32>
    %52 = arith.mulf %42, %51 : vector<24x128xf32>
    %53 = vector.broadcast %34 : vector<1x128xf32> to vector<24x128xf32>
    %54 = arith.mulf %52, %53 : vector<24x128xf32>
    %55 = vector.broadcast %36 : vector<1x128xf32> to vector<24x128xf32>
    %56 = arith.addf %54, %55 : vector<24x128xf32>
    %cst_39 = arith.constant 0.000000e+00 : f32
    %57 = vector.broadcast %cst_39 : f32 to vector<24x128xf32>
    %58 = arith.maximumf %56, %57 : vector<24x128xf32>
    %c0_40 = arith.constant 0 : index
    %c0_41 = arith.constant 0 : index
    %59 = vector.load %arg21[%c0_40, %c0_41] : memref<24x128xf32, #tpu.memory_space<vmem>>, vector<24x128xf32>
    tpu.vector_store %arg21[%c0_40, %c0_41], %58 {strides = array<i32>} : memref<24x128xf32, #tpu.memory_space<vmem>>, vector<24x128xf32>,
    %60 = arith.truncf %58 : vector<24x128xf32> to vector<24x128xbf16>
    %c0_42 = arith.constant 0 : index
    %c0_43 = arith.constant 0 : index
    %61 = vector.load %arg25[%c0_42, %c0_43] : memref<16x24xbf16, #tpu.memory_space<vmem>>, vector<16x24xbf16>
    %cst_44 = arith.constant dense<0.000000e+00> : vector<16x128xf32>
    %62 = tpu.matmul %61, %60, %cst_44 {dimension_numbers = #tpu.dot_dimension_numbers<[1], [0], [0], [1], [0, 0, 1, 1], [], []>} : vector<16x24xbf16>, vector<24x128xbf16>, vector<16x128xf32> -> vector<16x128xf32>
    %c0_45 = arith.constant 0 : index
    %c0_46 = arith.constant 0 : index
    %63 = vector.load %arg26[%c0_45, %c0_46] : memref<16x24xbf16, #tpu.memory_space<vmem>>, vector<16x24xbf16>
    %cst_47 = arith.constant dense<0.000000e+00> : vector<16x128xf32>
    %64 = tpu.matmul %63, %60, %cst_47 {dimension_numbers = #tpu.dot_dimension_numbers<[1], [0], [0], [1], [0, 0, 1, 1], [], []>} : vector<16x24xbf16>, vector<24x128xbf16>, vector<16x128xf32> -> vector<16x128xf32>
    %c0_48 = arith.constant 0 : index
    %c0_49 = arith.constant 0 : index
    %65 = vector.load %arg28[%c0_48, %c0_49] : memref<16x8xbf16, #tpu.memory_space<vmem>>, vector<16x8xbf16>
    %cst_50 = arith.constant dense<0.000000e+00> : vector<16x128xf32>
    %66 = tpu.matmul %65, %7, %cst_50 {dimension_numbers = #tpu.dot_dimension_numbers<[1], [0], [0], [1], [0, 0, 1, 1], [], []>} : vector<16x8xbf16>, vector<8x128xbf16>, vector<16x128xf32> -> vector<16x128xf32>
    %c0_51 = arith.constant 0 : index
    %c0_52 = arith.constant 0 : index
    %c0_53 = arith.constant 0 : index
    %67 = vector.load %arg15[%c0_51, %c0_52, %c0_53] : memref<1x512x128xf32, #tpu.memory_space<vmem>>, vector<1x128x128xf32>
    %68 = vector.shape_cast %67 : vector<1x128x128xf32> to vector<128x128xf32>
    %cst_54 = arith.constant dense<0.000000e+00> : vector<16x128xf32>
    %69 = tpu.matmul %3, %68, %cst_54 {dimension_numbers = #tpu.dot_dimension_numbers<[1], [0], [0], [1], [0, 0, 1, 1], [], []>} : vector<16x128xf32>, vector<128x128xf32>, vector<16x128xf32> -> vector<16x128xf32>
    %c0_55 = arith.constant 0 : index
    %c128_56 = arith.constant 128 : index
    %c0_57 = arith.constant 0 : index
    %70 = vector.load %arg15[%c0_55, %c128_56, %c0_57] : memref<1x512x128xf32, #tpu.memory_space<vmem>>, vector<1x128x128xf32>
    %71 = vector.shape_cast %70 : vector<1x128x128xf32> to vector<128x128xf32>
    %cst_58 = arith.constant dense<0.000000e+00> : vector<16x128xf32>
    %72 = tpu.matmul %62, %71, %cst_58 {dimension_numbers = #tpu.dot_dimension_numbers<[1], [0], [0], [1], [0, 0, 1, 1], [], []>} : vector<16x128xf32>, vector<128x128xf32>, vector<16x128xf32> -> vector<16x128xf32>
    %73 = arith.addf %69, %72 : vector<16x128xf32>
    %c0_59 = arith.constant 0 : index
    %c256_60 = arith.constant 256 : index
    %c0_61 = arith.constant 0 : index
    %74 = vector.load %arg15[%c0_59, %c256_60, %c0_61] : memref<1x512x128xf32, #tpu.memory_space<vmem>>, vector<1x128x128xf32>
    %75 = vector.shape_cast %74 : vector<1x128x128xf32> to vector<128x128xf32>
    %cst_62 = arith.constant dense<0.000000e+00> : vector<16x128xf32>
    %76 = tpu.matmul %64, %75, %cst_62 {dimension_numbers = #tpu.dot_dimension_numbers<[1], [0], [0], [1], [0, 0, 1, 1], [], []>} : vector<16x128xf32>, vector<128x128xf32>, vector<16x128xf32> -> vector<16x128xf32>
    %77 = arith.addf %73, %76 : vector<16x128xf32>
    %c0_63 = arith.constant 0 : index
    %c384_64 = arith.constant 384 : index
    %c0_65 = arith.constant 0 : index
    %78 = vector.load %arg15[%c0_63, %c384_64, %c0_65] : memref<1x512x128xf32, #tpu.memory_space<vmem>>, vector<1x128x128xf32>
    %79 = vector.shape_cast %78 : vector<1x128x128xf32> to vector<128x128xf32>
    %cst_66 = arith.constant dense<0.000000e+00> : vector<16x128xf32>
    %80 = tpu.matmul %66, %79, %cst_66 {dimension_numbers = #tpu.dot_dimension_numbers<[1], [0], [0], [1], [0, 0, 1, 1], [], []>} : vector<16x128xf32>, vector<128x128xf32>, vector<16x128xf32> -> vector<16x128xf32>
    %81 = arith.addf %77, %80 : vector<16x128xf32>
    %c0_67 = arith.constant 0 : index
    %c3 = arith.constant 3 : index
    %c0_68 = arith.constant 0 : index
    %82 = vector.load %arg17[%c0_67, %c3, %c0_68] : memref<1x16x128xf32, #tpu.memory_space<vmem>>, vector<1x1x128xf32>
    %83 = vector.shape_cast %82 : vector<1x1x128xf32> to vector<1x128xf32>
    %84 = vector.broadcast %83 : vector<1x128xf32> to vector<16x128xf32>
    %85 = arith.addf %81, %84 : vector<16x128xf32>
    %c0_69 = arith.constant 0 : index
    %c4 = arith.constant 4 : index
    %c0_70 = arith.constant 0 : index
    %86 = vector.load %arg17[%c0_69, %c4, %c0_70] : memref<1x16x128xf32, #tpu.memory_space<vmem>>, vector<1x1x128xf32>
    %87 = vector.shape_cast %86 : vector<1x1x128xf32> to vector<1x128xf32>
    %c0_71 = arith.constant 0 : index
    %c5 = arith.constant 5 : index
    %c0_72 = arith.constant 0 : index
    %88 = vector.load %arg17[%c0_71, %c5, %c0_72] : memref<1x16x128xf32, #tpu.memory_space<vmem>>, vector<1x1x128xf32>
    %89 = vector.shape_cast %88 : vector<1x1x128xf32> to vector<1x128xf32>
    %cst_73 = arith.constant dense<0.000000e+00> : vector<16xf32>
    %90 = vector.multi_reduction <add>, %85, %cst_73 [1] : vector<16x128xf32> to vector<16xf32>
    %91 = vector.shape_cast %90 : vector<16xf32> to vector<16x1xf32>
    %cst_74 = arith.constant 1.280000e+02 : f32
    %92 = vector.broadcast %cst_74 : f32 to vector<16x1xf32>
    %93 = arith.divf %91, %92 : vector<16x1xf32>
    %94 = vector.broadcast %93 : vector<16x1xf32> to vector<16x128xf32>
    %95 = arith.subf %85, %94 : vector<16x128xf32>
    %96 = arith.mulf %95, %95 : vector<16x128xf32>
    %cst_75 = arith.constant dense<0.000000e+00> : vector<16xf32>
    %97 = vector.multi_reduction <add>, %96, %cst_75 [1] : vector<16x128xf32> to vector<16xf32>
    %98 = vector.shape_cast %97 : vector<16xf32> to vector<16x1xf32>
    %cst_76 = arith.constant 1.280000e+02 : f32
    %99 = vector.broadcast %cst_76 : f32 to vector<16x1xf32>
    %100 = arith.divf %98, %99 : vector<16x1xf32>
    %cst_77 = arith.constant 9.99999997E-7 : f32
    %101 = vector.broadcast %cst_77 : f32 to vector<16x1xf32>
    %102 = arith.addf %100, %101 : vector<16x1xf32>
    %103 = math.rsqrt %102 : vector<16x1xf32>
    %104 = vector.broadcast %103 : vector<16x1xf32> to vector<16x128xf32>
    %105 = arith.mulf %95, %104 : vector<16x128xf32>
    %106 = vector.broadcast %87 : vector<1x128xf32> to vector<16x128xf32>
    %107 = arith.mulf %105, %106 : vector<16x128xf32>
    %108 = vector.broadcast %89 : vector<1x128xf32> to vector<16x128xf32>
    %109 = arith.addf %107, %108 : vector<16x128xf32>
    %cst_78 = arith.constant 0.000000e+00 : f32
    %110 = vector.broadcast %cst_78 : f32 to vector<16x128xf32>
    %111 = arith.maximumf %109, %110 : vector<16x128xf32>
    %c0_79 = arith.constant 0 : index
    %c0_80 = arith.constant 0 : index
    %112 = vector.load %arg20[%c0_79, %c0_80] : memref<16x128xf32, #tpu.memory_space<vmem>>, vector<16x128xf32>
    tpu.vector_store %arg20[%c0_79, %c0_80], %111 {strides = array<i32>} : memref<16x128xf32, #tpu.memory_space<vmem>>, vector<16x128xf32>,
    %c0_81 = arith.constant 0 : index
    %c0_82 = arith.constant 0 : index
    %113 = vector.load %arg29[%c0_81, %c0_82] : memref<8x16xbf16, #tpu.memory_space<vmem>>, vector<8x16xbf16>
    %114 = arith.truncf %111 : vector<16x128xf32> to vector<16x128xbf16>
    %cst_83 = arith.constant dense<0.000000e+00> : vector<8x128xf32>
    %115 = tpu.matmul %113, %114, %cst_83 {dimension_numbers = #tpu.dot_dimension_numbers<[1], [0], [0], [1], [0, 0, 1, 1], [], []>} : vector<8x16xbf16>, vector<16x128xbf16>, vector<8x128xf32> -> vector<8x128xf32>
    %c0_84 = arith.constant 0 : index
    %c0_85 = arith.constant 0 : index
    %116 = vector.load %arg30[%c0_84, %c0_85] : memref<8x24xbf16, #tpu.memory_space<vmem>>, vector<8x24xbf16>
    %cst_86 = arith.constant dense<0.000000e+00> : vector<8x128xf32>
    %117 = tpu.matmul %116, %60, %cst_86 {dimension_numbers = #tpu.dot_dimension_numbers<[1], [0], [0], [1], [0, 0, 1, 1], [], []>} : vector<8x24xbf16>, vector<24x128xbf16>, vector<8x128xf32> -> vector<8x128xf32>
    %c0_87 = arith.constant 0 : index
    %c0_88 = arith.constant 0 : index
    %c0_89 = arith.constant 0 : index
    %118 = vector.load %arg16[%c0_87, %c0_88, %c0_89] : memref<1x384x128xf32, #tpu.memory_space<vmem>>, vector<1x128x128xf32>
    %119 = vector.shape_cast %118 : vector<1x128x128xf32> to vector<128x128xf32>
    %cst_90 = arith.constant dense<0.000000e+00> : vector<8x128xf32>
    %120 = tpu.matmul %115, %119, %cst_90 {dimension_numbers = #tpu.dot_dimension_numbers<[1], [0], [0], [1], [0, 0, 1, 1], [], []>} : vector<8x128xf32>, vector<128x128xf32>, vector<8x128xf32> -> vector<8x128xf32>
    %c0_91 = arith.constant 0 : index
    %c128_92 = arith.constant 128 : index
    %c0_93 = arith.constant 0 : index
    %121 = vector.load %arg16[%c0_91, %c128_92, %c0_93] : memref<1x384x128xf32, #tpu.memory_space<vmem>>, vector<1x128x128xf32>
    %122 = vector.shape_cast %121 : vector<1x128x128xf32> to vector<128x128xf32>
    %cst_94 = arith.constant dense<0.000000e+00> : vector<8x128xf32>
    %123 = tpu.matmul %117, %122, %cst_94 {dimension_numbers = #tpu.dot_dimension_numbers<[1], [0], [0], [1], [0, 0, 1, 1], [], []>} : vector<8x128xf32>, vector<128x128xf32>, vector<8x128xf32> -> vector<8x128xf32>
    %124 = arith.addf %120, %123 : vector<8x128xf32>
    %c0_95 = arith.constant 0 : index
    %c256_96 = arith.constant 256 : index
    %c0_97 = arith.constant 0 : index
    %125 = vector.load %arg16[%c0_95, %c256_96, %c0_97] : memref<1x384x128xf32, #tpu.memory_space<vmem>>, vector<1x128x128xf32>
    %126 = vector.shape_cast %125 : vector<1x128x128xf32> to vector<128x128xf32>
    %cst_98 = arith.constant dense<0.000000e+00> : vector<8x128xf32>
    %127 = tpu.matmul %5, %126, %cst_98 {dimension_numbers = #tpu.dot_dimension_numbers<[1], [0], [0], [1], [0, 0, 1, 1], [], []>} : vector<8x128xf32>, vector<128x128xf32>, vector<8x128xf32> -> vector<8x128xf32>
    %128 = arith.addf %124, %127 : vector<8x128xf32>
    %c0_99 = arith.constant 0 : index
    %c6 = arith.constant 6 : index
    %c0_100 = arith.constant 0 : index
    %129 = vector.load %arg17[%c0_99, %c6, %c0_100] : memref<1x16x128xf32, #tpu.memory_space<vmem>>, vector<1x1x128xf32>
    %130 = vector.shape_cast %129 : vector<1x1x128xf32> to vector<1x128xf32>
    %131 = vector.broadcast %130 : vector<1x128xf32> to vector<8x128xf32>
    %132 = arith.addf %128, %131 : vector<8x128xf32>
    %c0_101 = arith.constant 0 : index
    %c7 = arith.constant 7 : index
    %c0_102 = arith.constant 0 : index
    %133 = vector.load %arg17[%c0_101, %c7, %c0_102] : memref<1x16x128xf32, #tpu.memory_space<vmem>>, vector<1x1x128xf32>
    %134 = vector.shape_cast %133 : vector<1x1x128xf32> to vector<1x128xf32>
    %c0_103 = arith.constant 0 : index
    %c8 = arith.constant 8 : index
    %c0_104 = arith.constant 0 : index
    %135 = vector.load %arg17[%c0_103, %c8, %c0_104] : memref<1x16x128xf32, #tpu.memory_space<vmem>>, vector<1x1x128xf32>
    %136 = vector.shape_cast %135 : vector<1x1x128xf32> to vector<1x128xf32>
    %cst_105 = arith.constant dense<0.000000e+00> : vector<8xf32>
    %137 = vector.multi_reduction <add>, %132, %cst_105 [1] : vector<8x128xf32> to vector<8xf32>
    %138 = vector.shape_cast %137 : vector<8xf32> to vector<8x1xf32>
    %cst_106 = arith.constant 1.280000e+02 : f32
    %139 = vector.broadcast %cst_106 : f32 to vector<8x1xf32>
    %140 = arith.divf %138, %139 : vector<8x1xf32>
    %141 = vector.broadcast %140 : vector<8x1xf32> to vector<8x128xf32>
    %142 = arith.subf %132, %141 : vector<8x128xf32>
    %143 = arith.mulf %142, %142 : vector<8x128xf32>
    %cst_107 = arith.constant dense<0.000000e+00> : vector<8xf32>
    %144 = vector.multi_reduction <add>, %143, %cst_107 [1] : vector<8x128xf32> to vector<8xf32>
    %145 = vector.shape_cast %144 : vector<8xf32> to vector<8x1xf32>
    %cst_108 = arith.constant 1.280000e+02 : f32
    %146 = vector.broadcast %cst_108 : f32 to vector<8x1xf32>
    %147 = arith.divf %145, %146 : vector<8x1xf32>
    %cst_109 = arith.constant 9.99999997E-7 : f32
    %148 = vector.broadcast %cst_109 : f32 to vector<8x1xf32>
    %149 = arith.addf %147, %148 : vector<8x1xf32>
    %150 = math.rsqrt %149 : vector<8x1xf32>
    %151 = vector.broadcast %150 : vector<8x1xf32> to vector<8x128xf32>
    %152 = arith.mulf %142, %151 : vector<8x128xf32>
    %153 = vector.broadcast %134 : vector<1x128xf32> to vector<8x128xf32>
    %154 = arith.mulf %152, %153 : vector<8x128xf32>
    %155 = vector.broadcast %136 : vector<1x128xf32> to vector<8x128xf32>
    %156 = arith.addf %154, %155 : vector<8x128xf32>
    %cst_110 = arith.constant 0.000000e+00 : f32
    %157 = vector.broadcast %cst_110 : f32 to vector<8x128xf32>
    %158 = arith.maximumf %156, %157 : vector<8x128xf32>
    %c0_111 = arith.constant 0 : index
    %c0_112 = arith.constant 0 : index
    %159 = vector.load %arg22[%c0_111, %c0_112] : memref<8x128xf32, #tpu.memory_space<vmem>>, vector<8x128xf32>
    tpu.vector_store %arg22[%c0_111, %c0_112], %158 {strides = array<i32>} : memref<8x128xf32, #tpu.memory_space<vmem>>, vector<8x128xf32>,
    %c1_i32 = arith.constant 1 : i32
    %160 = arith.cmpi eq, %arg0, %c1_i32 : i32
    %161 = arith.extui %160 : i1 to i32
    %c0_i32_113 = arith.constant 0 : i32
    %162 = arith.cmpi ne, %161, %c0_i32_113 : i32
    scf.if %162 {
      %c0_114 = arith.constant 0 : index
      %c0_115 = arith.constant 0 : index
      %163 = vector.load %arg18[%c0_114, %c0_115] : memref<128x128xf32, #tpu.memory_space<vmem>>, vector<128x128xf32>
      %cst_116 = arith.constant dense<0.000000e+00> : vector<8x128xf32>
      %164 = tpu.matmul %158, %163, %cst_116 {dimension_numbers = #tpu.dot_dimension_numbers<[1], [0], [0], [1], [0, 0, 1, 1], [], []>} : vector<8x128xf32>, vector<128x128xf32>, vector<8x128xf32> -> vector<8x128xf32>
      %c2_117 = arith.constant 2 : index
      %c0_118 = arith.constant 0 : index
      %165 = vector.load %arg13[%c2_117, %c0_118] : memref<8x128xf32, #tpu.memory_space<vmem>>, vector<1x128xf32>
      %166 = vector.broadcast %165 : vector<1x128xf32> to vector<8x128xf32>
      %167 = arith.addf %164, %166 : vector<8x128xf32>
      %c0_119 = arith.constant 0 : index
      %c0_120 = arith.constant 0 : index
      %168 = vector.load %arg19[%c0_119, %c0_120] : memref<8x128xf32, #tpu.memory_space<vmem>>, vector<8x128xf32>
      tpu.vector_store %arg19[%c0_119, %c0_120], %167 {strides = array<i32>} : memref<8x128xf32, #tpu.memory_space<vmem>>, vector<8x128xf32>,
    } else {
    }
    return
  }
  func.func @transform_0(%arg0: i32) -> (i32, i32) {
    %c0_i32 = arith.constant 0 : i32
    %c0_i32_0 = arith.constant 0 : i32
    %c0_i32_1 = arith.constant 0 : i32
    return %c0_i32, %c0_i32_0 : i32, i32
  }
  func.func @transform_1(%arg0: i32) -> (i32, i32) {
    %c0_i32 = arith.constant 0 : i32
    %c0_i32_0 = arith.constant 0 : i32
    %c0_i32_1 = arith.constant 0 : i32
    return %c0_i32, %c0_i32_0 : i32, i32
  }
  func.func @transform_2(%arg0: i32) -> (i32, i32) {
    %c0_i32 = arith.constant 0 : i32
    %c0_i32_0 = arith.constant 0 : i32
    %c0_i32_1 = arith.constant 0 : i32
    return %c0_i32, %c0_i32_0 : i32, i32
  }
  func.func @transform_3(%arg0: i32) -> (i32, i32) {
    %c0_i32 = arith.constant 0 : i32
    %c0_i32_0 = arith.constant 0 : i32
    %c0_i32_1 = arith.constant 0 : i32
    return %c0_i32, %c0_i32_0 : i32, i32
  }
  func.func @transform_4(%arg0: i32) -> (i32, i32) {
    %c0_i32 = arith.constant 0 : i32
    %c0_i32_0 = arith.constant 0 : i32
    %c0_i32_1 = arith.constant 0 : i32
    return %c0_i32, %c0_i32_0 : i32, i32
  }
  func.func @transform_5(%arg0: i32) -> (i32, i32) {
    %c0_i32 = arith.constant 0 : i32
    %c0_i32_0 = arith.constant 0 : i32
    %c0_i32_1 = arith.constant 0 : i32
    return %c0_i32, %c0_i32_0 : i32, i32
  }
  func.func @transform_6(%arg0: i32) -> (i32, i32) {
    %c0_i32 = arith.constant 0 : i32
    %c0_i32_0 = arith.constant 0 : i32
    %c0_i32_1 = arith.constant 0 : i32
    return %c0_i32, %c0_i32_0 : i32, i32
  }
  func.func @transform_7(%arg0: i32) -> (i32, i32) {
    %c0_i32 = arith.constant 0 : i32
    %c0_i32_0 = arith.constant 0 : i32
    %c0_i32_1 = arith.constant 0 : i32
    return %c0_i32, %c0_i32_0 : i32, i32
  }
  func.func @transform_8(%arg0: i32) -> (i32, i32) {
    %c0_i32 = arith.constant 0 : i32
    %c0_i32_0 = arith.constant 0 : i32
    %c0_i32_1 = arith.constant 0 : i32
    return %c0_i32, %c0_i32_0 : i32, i32
  }
  func.func @transform_9(%arg0: i32) -> (i32, i32) {
    %c0_i32 = arith.constant 0 : i32
    %c0_i32_0 = arith.constant 0 : i32
    %c0_i32_1 = arith.constant 0 : i32
    return %c0_i32, %c0_i32_0 : i32, i32
  }
  func.func @transform_10(%arg0: i32) -> (i32, i32) {
    %c0_i32 = arith.constant 0 : i32
    %c0_i32_0 = arith.constant 0 : i32
    %c0_i32_1 = arith.constant 0 : i32
    return %c0_i32, %c0_i32_0 : i32, i32
  }
  func.func @transform_11(%arg0: i32) -> (i32, i32) {
    %c0_i32 = arith.constant 0 : i32
    %c0_i32_0 = arith.constant 0 : i32
    %c0_i32_1 = arith.constant 0 : i32
    return %c0_i32, %c0_i32_0 : i32, i32
  }
  func.func @transform_12(%arg0: i32) -> (i32, i32) {
    %c0_i32 = arith.constant 0 : i32
    %c0_i32_0 = arith.constant 0 : i32
    %c0_i32_1 = arith.constant 0 : i32
    return %c0_i32, %c0_i32_0 : i32, i32
  }
  func.func @transform_13(%arg0: i32) -> (i32, i32, i32) {
    %c0_i32 = arith.constant 0 : i32
    %c0_i32_0 = arith.constant 0 : i32
    %c0_i32_1 = arith.constant 0 : i32
    return %arg0, %c0_i32, %c0_i32_0 : i32, i32, i32
  }
  func.func @transform_14(%arg0: i32) -> (i32, i32, i32) {
    %c0_i32 = arith.constant 0 : i32
    %c0_i32_0 = arith.constant 0 : i32
    %c0_i32_1 = arith.constant 0 : i32
    return %arg0, %c0_i32, %c0_i32_0 : i32, i32, i32
  }
  func.func @transform_15(%arg0: i32) -> (i32, i32, i32) {
    %c0_i32 = arith.constant 0 : i32
    %c0_i32_0 = arith.constant 0 : i32
    %c0_i32_1 = arith.constant 0 : i32
    return %arg0, %c0_i32, %c0_i32_0 : i32, i32, i32
  }
  func.func @transform_16(%arg0: i32) -> (i32, i32, i32) {
    %c0_i32 = arith.constant 0 : i32
    %c0_i32_0 = arith.constant 0 : i32
    %c0_i32_1 = arith.constant 0 : i32
    return %arg0, %c0_i32, %c0_i32_0 : i32, i32, i32
  }
  func.func @transform_17(%arg0: i32) -> (i32, i32) {
    %c0_i32 = arith.constant 0 : i32
    %c0_i32_0 = arith.constant 0 : i32
    %c0_i32_1 = arith.constant 0 : i32
    return %c0_i32, %c0_i32_0 : i32, i32
  }
  func.func @transform_18(%arg0: i32) -> (i32, i32) {
    %c0_i32 = arith.constant 0 : i32
    %c0_i32_0 = arith.constant 0 : i32
    %c0_i32_1 = arith.constant 0 : i32
    return %c0_i32, %c0_i32_0 : i32, i32
  }
}

</mosaic_0001>

<llo_original>
// kernel: gnn_forward.1
$region0: #{gnn_forward.1}
  #allocation0 [shape = 'u32[]', space=smem, size = 0x4, offset = 0x4, fixed_abs, tag = 'smem constant byte address 0x4 - core index']
  #allocation1 [shape = 'u32[144,128]{1,0:T(1,128)}', space=vmem, size = 0x12000, scoped, tag = 'internal scratch']
  #allocation2 [shape = 'f32[16,128]{1,0:T(8,128)}', space=vmem, size = 0x2000, scoped, tag = 'scratch operand']
  #allocation3 [shape = 'f32[24,128]{1,0:T(8,128)}', space=vmem, size = 0x3000, scoped, tag = 'scratch operand']
  #allocation4 [shape = 'f32[8,128]{1,0:T(8,128)}', space=vmem, size = 0x1000, scoped, tag = 'scratch operand']
  #allocation5 [shape = 'bf16[24,16]{1,0:T(8,128)(2,1)}', space=vmem, size = 0x1800, scoped, tag = 'scratch operand']
  #allocation6 [shape = 'bf16[24,16]{1,0:T(8,128)(2,1)}', space=vmem, size = 0x1800, scoped, tag = 'scratch operand']
  #allocation7 [shape = 'bf16[16,24]{1,0:T(16,128)(2,1)}', space=vmem, size = 0x1000, scoped, tag = 'scratch operand']
  #allocation8 [shape = 'bf16[16,24]{1,0:T(16,128)(2,1)}', space=vmem, size = 0x1000, scoped, tag = 'scratch operand']
  #allocation9 [shape = 'bf16[24,8]{1,0:T(8,128)(2,1)}', space=vmem, size = 0x1800, scoped, tag = 'scratch operand']
  #allocation10 [shape = 'bf16[16,8]{1,0:T(16,128)(2,1)}', space=vmem, size = 0x1000, scoped, tag = 'scratch operand']
  #allocation11 [shape = 'bf16[8,16]{1,0:T(8,128)(2,1)}', space=vmem, size = 0x800, scoped, tag = 'scratch operand']
  #allocation12 [shape = 'bf16[8,24]{1,0:T(8,128)(2,1)}', space=vmem, size = 0x800, scoped, tag = 'scratch operand']
  %s0 = inlined_call_operand.vmem [shape: f32[16,9], index: 0, kind: input, shape index: {}]
  %s1 = inlined_call_operand.vmem [shape: f32[24,3], index: 1, kind: input, shape index: {}]
  %s2 = inlined_call_operand.vmem [shape: s32[24,1], index: 2, kind: input, shape index: {}]
  %s3 = inlined_call_operand.vmem [shape: s32[1,24], index: 3, kind: input, shape index: {}]
  %s4 = inlined_call_operand.vmem [shape: s32[24,1], index: 4, kind: input, shape index: {}]
  %s5 = inlined_call_operand.vmem [shape: s32[1,24], index: 5, kind: input, shape index: {}]
  %s6 = inlined_call_operand.vmem [shape: s32[16,1], index: 6, kind: input, shape index: {}]
  %s7 = inlined_call_operand.vmem [shape: s32[1,16], index: 7, kind: input, shape index: {}]
  %s8 = inlined_call_operand.vmem [shape: s32[24,1], index: 8, kind: input, shape index: {}]
  %s9 = inlined_call_operand.vmem [shape: s32[1,24], index: 9, kind: input, shape index: {}]
  %s10 = inlined_call_operand.vmem [shape: f32[9,128], index: 10, kind: input, shape index: {}]
  %s11 = inlined_call_operand.vmem [shape: f32[3,128], index: 11, kind: input, shape index: {}]
  %s12 = inlined_call_operand.vmem [shape: f32[8,128], index: 12, kind: input, shape index: {}]
  %s13 = inlined_call_operand.hbm [shape: f32[2,512,128], index: 13, kind: input, shape index: {}]
  %s14 = inlined_call_operand.hbm [shape: f32[2,512,128], index: 14, kind: input, shape index: {}]
  %s15 = inlined_call_operand.hbm [shape: f32[2,384,128], index: 15, kind: input, shape index: {}]
  %s16 = inlined_call_operand.vmem [shape: f32[2,16,128], index: 16, kind: input, shape index: {}]
  %s17 = inlined_call_operand.vmem [shape: f32[128,128], index: 17, kind: input, shape index: {}]
  %s18 = inlined_call_operand.vmem [shape: f32[8,128], index: 18, kind: output, shape index: {}]
  %s19 = sld [smem:[#allocation0]]
  $region125: #{gnn_forward.1} parent=0
    _
  %s21 = ssub.s32 1, %s19
  %s22 = scalar_select 0, %s21, %s19
  $region1: #{gnn_forward.1} parent=0
    #allocation13 [shape = 'u8[524288]{0}', space=vmem, size = 0x80000, scoped, tag = 'input window, operand 13']
    #allocation14 [shape = 's32[2]{0}', space=sflag, size = 0x8, scoped, tag = 'scoped memory for gnn_forward.1']
    #allocation15 [shape = 'u8[524288]{0}', space=vmem, size = 0x80000, scoped, tag = 'input window, operand 14']
    #allocation16 [shape = 's32[2]{0}', space=sflag, size = 0x8, scoped, tag = 'scoped memory for gnn_forward.1']
    #allocation17 [shape = 'u8[393216]{0}', space=vmem, size = 0x60000, scoped, tag = 'input window, operand 15']
    %23 = vsyncpa [#allocation14], 0
    %s24 = scalar_lea.sflag [#allocation14], 1
    %25 = vsyncpa %s24, 0
    %26 = vsyncpa [#allocation16], 0
    %s27 = scalar_lea.sflag [#allocation16], 1
    %28 = vsyncpa %s27, 0
    loop: start=0, step=1, limit=4
    $region2: #{gnn_forward.1} parent=1 // loop_pre_header
      _
    $region3: #{gnn_forward.1} parent=1 // loop_header
      %s30 = sphi 0, %s34
      %p31 = scmp.ge.s32.totalorder %s30, 4
      %s38 = sphi 0, %s38
      %s40 = sphi 0, %s38
      %s41 = sphi 0, %s40
      %s55 = sphi 0, %s41
      %s59 = sphi 0, %s59
      %s61 = sphi 0, %s59
      %s62 = sphi 0, %s61
      %s76 = sphi 0, %s62
      %s80 = sphi 0, %s80
      %s82 = sphi 0, %s80
      %s83 = sphi 0, %s82
      %s97 = sphi 0, %s83
      %s101 = sphi 0, %s101
      %s103 = sphi 0, %s101
      %s104 = sphi 0, %s103
      %s118 = sphi 0, %s104
      %s122 = sphi 0, %s122
      %s124 = sphi 0, %s122
      %s125 = sphi 0, %s124
      %s139 = sphi 0, %s125
      %s143 = sphi 0, %s143
      %s145 = sphi 0, %s143
      %s146 = sphi 0, %s145
      %s160 = sphi 0, %s146
      %s164 = sphi 0, %s164
      %s166 = sphi 0, %s164
      %s167 = sphi 0, %s166
      %s181 = sphi 0, %s167
      %s185 = sphi 0, %s185
      %s187 = sphi 0, %s185
      %s188 = sphi 0, %s187
      %s202 = sphi 0, %s188
      %s206 = sphi 0, %s206
      %s208 = sphi 0, %s206
      %s209 = sphi 0, %s208
      %s223 = sphi 0, %s209
      %s227 = sphi 0, %s227
      %s229 = sphi 0, %s227
      %s230 = sphi 0, %s229
      %s244 = sphi 0, %s230
      %s248 = sphi 0, %s248
      %s250 = sphi 0, %s248
      %s251 = sphi 0, %s250
      %s265 = sphi 0, %s251
      %s269 = sphi 0, %s269
      %s271 = sphi 0, %s269
      %s272 = sphi 0, %s271
      %s286 = sphi 0, %s272
      %s290 = sphi 0, %s290
      %s292 = sphi 0, %s290
      %s293 = sphi 0, %s292
      %s307 = sphi 0, %s293
      %s313 = sphi 0, %s315
      %s316 = sphi 0, %s313
      %s317 = sphi 0, %s316
      %s333 = sphi 0, %s317
      %s339 = sphi 0, %s341
      %s342 = sphi 0, %s339
      %s343 = sphi 0, %s342
      %s359 = sphi 0, %s343
      %s365 = sphi 0, %s367
      %s368 = sphi 0, %s365
      %s369 = sphi 0, %s368
      %s385 = sphi 0, %s369
      %s391 = sphi 0, %s393
      %s394 = sphi 0, %s391
      %s395 = sphi 0, %s394
      %s411 = sphi 0, %s395
      %s415 = sphi 0, %s415
      %s417 = sphi 0, %s415
      %s418 = sphi 0, %s417
      %s432 = sphi 0, %s418
      %s436 = sphi 0, %s436
      %s438 = sphi 0, %s436
      %s439 = sphi 0, %s438
      %s453 = sphi 0, %s439
    $region4: #{gnn_forward.1} parent=1 // loop_header_branch
      %33 = sbr.rel (%p31) target = $region8
    $region5: #{gnn_forward.1} parent=1 // loop_body
      %s35 = ssub.s32 %s30, 1
      %s36 = ssub.s32 %s30, 2
      %s37 = sadd.s32 %s30, 1
      %s39 = sadd.s32 %s38, 1
      %p42 = scmp.eq.s32.totalorder %s30, 1
      %p43 = scmp.ne.s32.totalorder %s38, %s40
      %p44 = scmp.eq.s32.totalorder %s30, 0
      %p45 = por %p43, %p44
      %p46 = scmp.ne.s32.totalorder %s38, %s40
      %p47 = scmp.eq.s32.totalorder %s35, 1
      %p48 = por %p46, %p47
      %p49 = scmp.ne.s32.totalorder %s40, %s41
      %p50 = scmp.eq.s32.totalorder %s35, 0
      %p51 = por %p49, %p50
      %p52 = scmp.ne.s32.totalorder %s40, %s41
      %p53 = scmp.eq.s32.totalorder %s36, 1
      %p54 = por %p52, %p53
      %p56 = scmp.ne.s32.totalorder %s41, %s55
      %p57 = scmp.eq.s32.totalorder %s36, 0
      %p58 = por %p56, %p57
      %s60 = sadd.s32 %s59, 1
      %p63 = scmp.eq.s32.totalorder %s30, 1
      %p64 = scmp.ne.s32.totalorder %s59, %s61
      %p65 = scmp.eq.s32.totalorder %s30, 0
      %p66 = por %p64, %p65
      %p67 = scmp.ne.s32.totalorder %s59, %s61
      %p68 = scmp.eq.s32.totalorder %s35, 1
      %p69 = por %p67, %p68
      %p70 = scmp.ne.s32.totalorder %s61, %s62
      %p71 = scmp.eq.s32.totalorder %s35, 0
      %p72 = por %p70, %p71
      %p73 = scmp.ne.s32.totalorder %s61, %s62
      %p74 = scmp.eq.s32.totalorder %s36, 1
      %p75 = por %p73, %p74
      %p77 = scmp.ne.s32.totalorder %s62, %s76
      %p78 = scmp.eq.s32.totalorder %s36, 0
      %p79 = por %p77, %p78
      %s81 = sadd.s32 %s80, 1
      %p84 = scmp.eq.s32.totalorder %s30, 1
      %p85 = scmp.ne.s32.totalorder %s80, %s82
      %p86 = scmp.eq.s32.totalorder %s30, 0
      %p87 = por %p85, %p86
      %p88 = scmp.ne.s32.totalorder %s80, %s82
      %p89 = scmp.eq.s32.totalorder %s35, 1
      %p90 = por %p88, %p89
      %p91 = scmp.ne.s32.totalorder %s82, %s83
      %p92 = scmp.eq.s32.totalorder %s35, 0
      %p93 = por %p91, %p92
      %p94 = scmp.ne.s32.totalorder %s82, %s83
      %p95 = scmp.eq.s32.totalorder %s36, 1
      %p96 = por %p94, %p95
      %p98 = scmp.ne.s32.totalorder %s83, %s97
      %p99 = scmp.eq.s32.totalorder %s36, 0
      %p100 = por %p98, %p99
      %s102 = sadd.s32 %s101, 1
      %p105 = scmp.eq.s32.totalorder %s30, 1
      %p106 = scmp.ne.s32.totalorder %s101, %s103
      %p107 = scmp.eq.s32.totalorder %s30, 0
      %p108 = por %p106, %p107
      %p109 = scmp.ne.s32.totalorder %s101, %s103
      %p110 = scmp.eq.s32.totalorder %s35, 1
      %p111 = por %p109, %p110
      %p112 = scmp.ne.s32.totalorder %s103, %s104
      %p113 = scmp.eq.s32.totalorder %s35, 0
      %p114 = por %p112, %p113
      %p115 = scmp.ne.s32.totalorder %s103, %s104
      %p116 = scmp.eq.s32.totalorder %s36, 1
      %p117 = por %p115, %p116
      %p119 = scmp.ne.s32.totalorder %s104, %s118
      %p120 = scmp.eq.s32.totalorder %s36, 0
      %p121 = por %p119, %p120
      %s123 = sadd.s32 %s122, 1
      %p126 = scmp.eq.s32.totalorder %s30, 1
      %p127 = scmp.ne.s32.totalorder %s122, %s124
      %p128 = scmp.eq.s32.totalorder %s30, 0
      %p129 = por %p127, %p128
      %p130 = scmp.ne.s32.totalorder %s122, %s124
      %p131 = scmp.eq.s32.totalorder %s35, 1
      %p132 = por %p130, %p131
      %p133 = scmp.ne.s32.totalorder %s124, %s125
      %p134 = scmp.eq.s32.totalorder %s35, 0
      %p135 = por %p133, %p134
      %p136 = scmp.ne.s32.totalorder %s124, %s125
      %p137 = scmp.eq.s32.totalorder %s36, 1
      %p138 = por %p136, %p137
      %p140 = scmp.ne.s32.totalorder %s125, %s139
      %p141 = scmp.eq.s32.totalorder %s36, 0
      %p142 = por %p140, %p141
      %s144 = sadd.s32 %s143, 1
      %p147 = scmp.eq.s32.totalorder %s30, 1
      %p148 = scmp.ne.s32.totalorder %s143, %s145
      %p149 = scmp.eq.s32.totalorder %s30, 0
      %p150 = por %p148, %p149
      %p151 = scmp.ne.s32.totalorder %s143, %s145
      %p152 = scmp.eq.s32.totalorder %s35, 1
      %p153 = por %p151, %p152
      %p154 = scmp.ne.s32.totalorder %s145, %s146
      %p155 = scmp.eq.s32.totalorder %s35, 0
      %p156 = por %p154, %p155
      %p157 = scmp.ne.s32.totalorder %s145, %s146
      %p158 = scmp.eq.s32.totalorder %s36, 1
      %p159 = por %p157, %p158
      %p161 = scmp.ne.s32.totalorder %s146, %s160
      %p162 = scmp.eq.s32.totalorder %s36, 0
      %p163 = por %p161, %p162
      %s165 = sadd.s32 %s164, 1
      %p168 = scmp.eq.s32.totalorder %s30, 1
      %p169 = scmp.ne.s32.totalorder %s164, %s166
      %p170 = scmp.eq.s32.totalorder %s30, 0
      %p171 = por %p169, %p170
      %p172 = scmp.ne.s32.totalorder %s164, %s166
      %p173 = scmp.eq.s32.totalorder %s35, 1
      %p174 = por %p172, %p173
      %p175 = scmp.ne.s32.totalorder %s166, %s167
      %p176 = scmp.eq.s32.totalorder %s35, 0
      %p177 = por %p175, %p176
      %p178 = scmp.ne.s32.totalorder %s166, %s167
      %p179 = scmp.eq.s32.totalorder %s36, 1
      %p180 = por %p178, %p179
      %p182 = scmp.ne.s32.totalorder %s167, %s181
      %p183 = scmp.eq.s32.totalorder %s36, 0
      %p184 = por %p182, %p183
      %s186 = sadd.s32 %s185, 1
      %p189 = scmp.eq.s32.totalorder %s30, 1
      %p190 = scmp.ne.s32.totalorder %s185, %s187
      %p191 = scmp.eq.s32.totalorder %s30, 0
      %p192 = por %p190, %p191
      %p193 = scmp.ne.s32.totalorder %s185, %s187
      %p194 = scmp.eq.s32.totalorder %s35, 1
      %p195 = por %p193, %p194
      %p196 = scmp.ne.s32.totalorder %s187, %s188
      %p197 = scmp.eq.s32.totalorder %s35, 0
      %p198 = por %p196, %p197
      %p199 = scmp.ne.s32.totalorder %s187, %s188
      %p200 = scmp.eq.s32.totalorder %s36, 1
      %p201 = por %p199, %p200
      %p203 = scmp.ne.s32.totalorder %s188, %s202
      %p204 = scmp.eq.s32.totalorder %s36, 0
      %p205 = por %p203, %p204
      %s207 = sadd.s32 %s206, 1
      %p210 = scmp.eq.s32.totalorder %s30, 1
      %p211 = scmp.ne.s32.totalorder %s206, %s208
      %p212 = scmp.eq.s32.totalorder %s30, 0
      %p213 = por %p211, %p212
      %p214 = scmp.ne.s32.totalorder %s206, %s208
      %p215 = scmp.eq.s32.totalorder %s35, 1
      %p216 = por %p214, %p215
      %p217 = scmp.ne.s32.totalorder %s208, %s209
      %p218 = scmp.eq.s32.totalorder %s35, 0
      %p219 = por %p217, %p218
      %p220 = scmp.ne.s32.totalorder %s208, %s209
      %p221 = scmp.eq.s32.totalorder %s36, 1
      %p222 = por %p220, %p221
      %p224 = scmp.ne.s32.totalorder %s209, %s223
      %p225 = scmp.eq.s32.totalorder %s36, 0
      %p226 = por %p224, %p225
      %s228 = sadd.s32 %s227, 1
      %p231 = scmp.eq.s32.totalorder %s30, 1
      %p232 = scmp.ne.s32.totalorder %s227, %s229
      %p233 = scmp.eq.s32.totalorder %s30, 0
      %p234 = por %p232, %p233
      %p235 = scmp.ne.s32.totalorder %s227, %s229
      %p236 = scmp.eq.s32.totalorder %s35, 1
      %p237 = por %p235, %p236
      %p238 = scmp.ne.s32.totalorder %s229, %s230
      %p239 = scmp.eq.s32.totalorder %s35, 0
      %p240 = por %p238, %p239
      %p241 = scmp.ne.s32.totalorder %s229, %s230
      %p242 = scmp.eq.s32.totalorder %s36, 1
      %p243 = por %p241, %p242
      %p245 = scmp.ne.s32.totalorder %s230, %s244
      %p246 = scmp.eq.s32.totalorder %s36, 0
      %p247 = por %p245, %p246
      %s249 = sadd.s32 %s248, 1
      %p252 = scmp.eq.s32.totalorder %s30, 1
      %p253 = scmp.ne.s32.totalorder %s248, %s250
      %p254 = scmp.eq.s32.totalorder %s30, 0
      %p255 = por %p253, %p254
      %p256 = scmp.ne.s32.totalorder %s248, %s250
      %p257 = scmp.eq.s32.totalorder %s35, 1
      %p258 = por %p256, %p257
      %p259 = scmp.ne.s32.totalorder %s250, %s251
      %p260 = scmp.eq.s32.totalorder %s35, 0
      %p261 = por %p259, %p260
      %p262 = scmp.ne.s32.totalorder %s250, %s251
      %p263 = scmp.eq.s32.totalorder %s36, 1
      %p264 = por %p262, %p263
      %p266 = scmp.ne.s32.totalorder %s251, %s265
      %p267 = scmp.eq.s32.totalorder %s36, 0
      %p268 = por %p266, %p267
      %s270 = sadd.s32 %s269, 1
      %p273 = scmp.eq.s32.totalorder %s30, 1
      %p274 = scmp.ne.s32.totalorder %s269, %s271
      %p275 = scmp.eq.s32.totalorder %s30, 0
      %p276 = por %p274, %p275
      %p277 = scmp.ne.s32.totalorder %s269, %s271
      %p278 = scmp.eq.s32.totalorder %s35, 1
      %p279 = por %p277, %p278
      %p280 = scmp.ne.s32.totalorder %s271, %s272
      %p281 = scmp.eq.s32.totalorder %s35, 0
      %p282 = por %p280, %p281
      %p283 = scmp.ne.s32.totalorder %s271, %s272
      %p284 = scmp.eq.s32.totalorder %s36, 1
      %p285 = por %p283, %p284
      %p287 = scmp.ne.s32.totalorder %s272, %s286
      %p288 = scmp.eq.s32.totalorder %s36, 0
      %p289 = por %p287, %p288
      %s291 = sadd.s32 %s290, 1
      %p294 = scmp.eq.s32.totalorder %s30, 1
      %p295 = scmp.ne.s32.totalorder %s290, %s292
      %p296 = scmp.eq.s32.totalorder %s30, 0
      %p297 = por %p295, %p296
      %p298 = scmp.ne.s32.totalorder %s290, %s292
      %p299 = scmp.eq.s32.totalorder %s35, 1
      %p300 = por %p298, %p299
      %p301 = scmp.ne.s32.totalorder %s292, %s293
      %p302 = scmp.eq.s32.totalorder %s35, 0
      %p303 = por %p301, %p302
      %p304 = scmp.ne.s32.totalorder %s292, %s293
      %p305 = scmp.eq.s32.totalorder %s36, 1
      %p306 = por %p304, %p305
      %p308 = scmp.ne.s32.totalorder %s293, %s307
      %p309 = scmp.eq.s32.totalorder %s36, 0
      %p310 = por %p308, %p309
      %s311 = ssub.s32 %s30, %s37
      %p312 = scmp.eq.s32.totalorder %s311, 0
      %s314 = sadd.s32 %s313, 1
      %s315 = scalar_select %p312, %s313, %s314
      %p318 = pneg %p312
      %p319 = scmp.eq.s32.totalorder %s30, 1
      %p320 = por %p318, %p319
      %p321 = scmp.ne.s32.totalorder %s313, %s316
      %p322 = scmp.eq.s32.totalorder %s30, 0
      %p323 = por %p321, %p322
      %p324 = scmp.ne.s32.totalorder %s313, %s316
      %p325 = scmp.eq.s32.totalorder %s35, 1
      %p326 = por %p324, %p325
      %p327 = scmp.ne.s32.totalorder %s316, %s317
      %p328 = scmp.eq.s32.totalorder %s35, 0
      %p329 = por %p327, %p328
      %p330 = scmp.ne.s32.totalorder %s316, %s317
      %p331 = scmp.eq.s32.totalorder %s36, 1
      %p332 = por %p330, %p331
      %p334 = scmp.ne.s32.totalorder %s317, %s333
      %p335 = scmp.eq.s32.totalorder %s36, 0
      %p336 = por %p334, %p335
      %s337 = ssub.s32 %s30, %s37
      %p338 = scmp.eq.s32.totalorder %s337, 0
      %s340 = sadd.s32 %s339, 1
      %s341 = scalar_select %p338, %s339, %s340
      %p344 = pneg %p338
      %p345 = scmp.eq.s32.totalorder %s30, 1
      %p346 = por %p344, %p345
      %p347 = scmp.ne.s32.totalorder %s339, %s342
      %p348 = scmp.eq.s32.totalorder %s30, 0
      %p349 = por %p347, %p348
      %p350 = scmp.ne.s32.totalorder %s339, %s342
      %p351 = scmp.eq.s32.totalorder %s35, 1
      %p352 = por %p350, %p351
      %p353 = scmp.ne.s32.totalorder %s342, %s343
      %p354 = scmp.eq.s32.totalorder %s35, 0
      %p355 = por %p353, %p354
      %p356 = scmp.ne.s32.totalorder %s342, %s343
      %p357 = scmp.eq.s32.totalorder %s36, 1
      %p358 = por %p356, %p357
      %p360 = scmp.ne.s32.totalorder %s343, %s359
      %p361 = scmp.eq.s32.totalorder %s36, 0
      %p362 = por %p360, %p361
      %s363 = ssub.s32 %s30, %s37
      %p364 = scmp.eq.s32.totalorder %s363, 0
      %s366 = sadd.s32 %s365, 1
      %s367 = scalar_select %p364, %s365, %s366
      %p370 = pneg %p364
      %p371 = scmp.eq.s32.totalorder %s30, 1
      %p372 = por %p370, %p371
      %p373 = scmp.ne.s32.totalorder %s365, %s368
      %p374 = scmp.eq.s32.totalorder %s30, 0
      %p375 = por %p373, %p374
      %p376 = scmp.ne.s32.totalorder %s365, %s368
      %p377 = scmp.eq.s32.totalorder %s35, 1
      %p378 = por %p376, %p377
      %p379 = scmp.ne.s32.totalorder %s368, %s369
      %p380 = scmp.eq.s32.totalorder %s35, 0
      %p381 = por %p379, %p380
      %p382 = scmp.ne.s32.totalorder %s368, %s369
      %p383 = scmp.eq.s32.totalorder %s36, 1
      %p384 = por %p382, %p383
      %p386 = scmp.ne.s32.totalorder %s369, %s385
      %p387 = scmp.eq.s32.totalorder %s36, 0
      %p388 = por %p386, %p387
      %s389 = ssub.s32 %s30, %s37
      %p390 = scmp.eq.s32.totalorder %s389, 0
      %s392 = sadd.s32 %s391, 1
      %s393 = scalar_select %p390, %s391, %s392
      %p396 = pneg %p390
      %p397 = scmp.eq.s32.totalorder %s30, 1
      %p398 = por %p396, %p397
      %p399 = scmp.ne.s32.totalorder %s391, %s394
      %p400 = scmp.eq.s32.totalorder %s30, 0
      %p401 = por %p399, %p400
      %p402 = scmp.ne.s32.totalorder %s391, %s394
      %p403 = scmp.eq.s32.totalorder %s35, 1
      %p404 = por %p402, %p403
      %p405 = scmp.ne.s32.totalorder %s394, %s395
      %p406 = scmp.eq.s32.totalorder %s35, 0
      %p407 = por %p405, %p406
      %p408 = scmp.ne.s32.totalorder %s394, %s395
      %p409 = scmp.eq.s32.totalorder %s36, 1
      %p410 = por %p408, %p409
      %p412 = scmp.ne.s32.totalorder %s395, %s411
      %p413 = scmp.eq.s32.totalorder %s36, 0
      %p414 = por %p412, %p413
      %s416 = sadd.s32 %s415, 1
      %p419 = scmp.eq.s32.totalorder %s30, 1
      %p420 = scmp.ne.s32.totalorder %s415, %s417
      %p421 = scmp.eq.s32.totalorder %s30, 0
      %p422 = por %p420, %p421
      %p423 = scmp.ne.s32.totalorder %s415, %s417
      %p424 = scmp.eq.s32.totalorder %s35, 1
      %p425 = por %p423, %p424
      %p426 = scmp.ne.s32.totalorder %s417, %s418
      %p427 = scmp.eq.s32.totalorder %s35, 0
      %p428 = por %p426, %p427
      %p429 = scmp.ne.s32.totalorder %s417, %s418
      %p430 = scmp.eq.s32.totalorder %s36, 1
      %p431 = por %p429, %p430
      %p433 = scmp.ne.s32.totalorder %s418, %s432
      %p434 = scmp.eq.s32.totalorder %s36, 0
      %p435 = por %p433, %p434
      %s437 = sadd.s32 %s436, 1
      %p440 = scmp.eq.s32.totalorder %s30, 1
      %p441 = scmp.ne.s32.totalorder %s436, %s438
      %p442 = scmp.eq.s32.totalorder %s30, 0
      %p443 = por %p441, %p442
      %p444 = scmp.ne.s32.totalorder %s436, %s438
      %p445 = scmp.eq.s32.totalorder %s35, 1
      %p446 = por %p444, %p445
      %p447 = scmp.ne.s32.totalorder %s438, %s439
      %p448 = scmp.eq.s32.totalorder %s35, 0
      %p449 = por %p447, %p448
      %p450 = scmp.ne.s32.totalorder %s438, %s439
      %p451 = scmp.eq.s32.totalorder %s36, 1
      %p452 = por %p450, %p451
      %p454 = scmp.ne.s32.totalorder %s439, %s453
      %p455 = scmp.eq.s32.totalorder %s36, 0
      %p456 = por %p454, %p455
      %p457 = scmp.le.s32.totalorder 1, %s30
      %p458 = scmp.lt.s32.totalorder %s30, 3
      %p459 = pnand %p457, %p458
      %p460 = pneg %p459
      // Predicated region
      $region9: #{gnn_forward.1} parent=5 // pred_check
        _
      $region10: #{gnn_forward.1} parent=5 // pred_check_branch
        %462 = sbr.rel (%p459) target = $region12
      $region11: #{gnn_forward.1} parent=5 // pred_region
        %s463 = ssub.s32 %s30, 1
        // Predicated region
        $region13: #{gnn_forward.1} parent=11 // pred_check
          %p464 = pneg %p51
        $region14: #{gnn_forward.1} parent=11 // pred_check_branch
          %466 = sbr.rel (%p464) target = $region16
        $region15: #{gnn_forward.1} parent=11 // pred_region
          _
        $region16: #{gnn_forward.1} parent=11 // pred_fallthru
          _
        // Predicated region
        $region17: #{gnn_forward.1} parent=11 // pred_check
          %p467 = pneg %p72
        $region18: #{gnn_forward.1} parent=11 // pred_check_branch
          %469 = sbr.rel (%p467) target = $region20
        $region19: #{gnn_forward.1} parent=11 // pred_region
          _
        $region20: #{gnn_forward.1} parent=11 // pred_fallthru
          _
        // Predicated region
        $region21: #{gnn_forward.1} parent=11 // pred_check
          %p470 = pneg %p93
        $region22: #{gnn_forward.1} parent=11 // pred_check_branch
          %472 = sbr.rel (%p470) target = $region24
        $region23: #{gnn_forward.1} parent=11 // pred_region
          _
        $region24: #{gnn_forward.1} parent=11 // pred_fallthru
          _
        // Predicated region
        $region25: #{gnn_forward.1} parent=11 // pred_check
          %p473 = pneg %p114
        $region26: #{gnn_forward.1} parent=11 // pred_check_branch
          %475 = sbr.rel (%p473) target = $region28
        $region27: #{gnn_forward.1} parent=11 // pred_region
          _
        $region28: #{gnn_forward.1} parent=11 // pred_fallthru
          _
        // Predicated region
        $region29: #{gnn_forward.1} parent=11 // pred_check
          %p476 = pneg %p135
        $region30: #{gnn_forward.1} parent=11 // pred_check_branch
          %478 = sbr.rel (%p476) target = $region32
        $region31: #{gnn_forward.1} parent=11 // pred_region
          _
        $region32: #{gnn_forward.1} parent=11 // pred_fallthru
          _
        // Predicated region
        $region33: #{gnn_forward.1} parent=11 // pred_check
          %p479 = pneg %p156
        $region34: #{gnn_forward.1} parent=11 // pred_check_branch
          %481 = sbr.rel (%p479) target = $region36
        $region35: #{gnn_forward.1} parent=11 // pred_region
          _
        $region36: #{gnn_forward.1} parent=11 // pred_fallthru
          _
        // Predicated region
        $region37: #{gnn_forward.1} parent=11 // pred_check
          %p482 = pneg %p177
        $region38: #{gnn_forward.1} parent=11 // pred_check_branch
          %484 = sbr.rel (%p482) target = $region40
        $region39: #{gnn_forward.1} parent=11 // pred_region
          _
        $region40: #{gnn_forward.1} parent=11 // pred_fallthru
          _
        // Predicated region
        $region41: #{gnn_forward.1} parent=11 // pred_check
          %p485 = pneg %p198
        $region42: #{gnn_forward.1} parent=11 // pred_check_branch
          %487 = sbr.rel (%p485) target = $region44
        $region43: #{gnn_forward.1} parent=11 // pred_region
          _
        $region44: #{gnn_forward.1} parent=11 // pred_fallthru
          _
        // Predicated region
        $region45: #{gnn_forward.1} parent=11 // pred_check
          %p488 = pneg %p219
        $region46: #{gnn_forward.1} parent=11 // pred_check_branch
          %490 = sbr.rel (%p488) target = $region48
        $region47: #{gnn_forward.1} parent=11 // pred_region
          _
        $region48: #{gnn_forward.1} parent=11 // pred_fallthru
          _
        // Predicated region
        $region49: #{gnn_forward.1} parent=11 // pred_check
          %p491 = pneg %p240
        $region50: #{gnn_forward.1} parent=11 // pred_check_branch
          %493 = sbr.rel (%p491) target = $region52
        $region51: #{gnn_forward.1} parent=11 // pred_region
          _
        $region52: #{gnn_forward.1} parent=11 // pred_fallthru
          _
        // Predicated region
        $region53: #{gnn_forward.1} parent=11 // pred_check
          %p494 = pneg %p261
        $region54: #{gnn_forward.1} parent=11 // pred_check_branch
          %496 = sbr.rel (%p494) target = $region56
        $region55: #{gnn_forward.1} parent=11 // pred_region
          _
        $region56: #{gnn_forward.1} parent=11 // pred_fallthru
          _
        // Predicated region
        $region57: #{gnn_forward.1} parent=11 // pred_check
          %p497 = pneg %p282
        $region58: #{gnn_forward.1} parent=11 // pred_check_branch
          %499 = sbr.rel (%p497) target = $region60
        $region59: #{gnn_forward.1} parent=11 // pred_region
          _
        $region60: #{gnn_forward.1} parent=11 // pred_fallthru
          _
        // Predicated region
        $region61: #{gnn_forward.1} parent=11 // pred_check
          %p500 = pneg %p303
        $region62: #{gnn_forward.1} parent=11 // pred_check_branch
          %502 = sbr.rel (%p500) target = $region64
        $region63: #{gnn_forward.1} parent=11 // pred_region
          _
        $region64: #{gnn_forward.1} parent=11 // pred_fallthru
          _
        // Predicated region
        $region65: #{gnn_forward.1} parent=11 // pred_check
          %p503 = pneg %p428
        $region66: #{gnn_forward.1} parent=11 // pred_check_branch
          %505 = sbr.rel (%p503) target = $region68
        $region67: #{gnn_forward.1} parent=11 // pred_region
          _
        $region68: #{gnn_forward.1} parent=11 // pred_fallthru
          _
      $region12: #{gnn_forward.1} parent=5 // pred_fallthru
        _
      %p506 = scmp.lt.s32.totalorder %s30, 2
      // Predicated region
      $region69: #{gnn_forward.1} parent=5 // pred_check
        %p507 = pneg %p506
      $region70: #{gnn_forward.1} parent=5 // pred_check_branch
        %509 = sbr.rel (%p507) target = $region72
      $region71: #{gnn_forward.1} parent=5 // pred_region
        // Predicated region
        $region73: #{gnn_forward.1} parent=71 // pred_check
          %p510 = pneg %p323
        $region74: #{gnn_forward.1} parent=71 // pred_check_branch
          %512 = sbr.rel (%p510) target = $region76
        $region75: #{gnn_forward.1} parent=71 // pred_region
          %s513 = sand.u32 %s313, 1
          %s514 = scalar_lea.sflag [#allocation14], %s513
          %s515 = sand.u32 %s313, 1
          %s516 = smul.addr %s515, 512
          %s517 = scalar_lea.vmem [#allocation13], %s516
          %s519 = ssub.s32 8192, 8192
          %520 = vsyncadd %s514, %s519
          %s521 = smul.addr %s30, 64
          %s522 = smul.addr %s521, 128
          %s523 = scalar_lea.hbm %s13, %s522
          %s524 = sshll.u32 %s517, 4
          %s525 = int_to_ptr.vmem [resolvable:$true] %s524
          %530 = dma.hbm_to_vmem [thread:$0]  %s523, 8192, %s525, %s514, 128, 128, 8
        $region76: #{gnn_forward.1} parent=71 // pred_fallthru
          _
        // Predicated region
        $region77: #{gnn_forward.1} parent=71 // pred_check
          %p531 = pneg %p349
        $region78: #{gnn_forward.1} parent=71 // pred_check_branch
          %533 = sbr.rel (%p531) target = $region80
        $region79: #{gnn_forward.1} parent=71 // pred_region
          %s534 = sand.u32 %s30, 1
          %s535 = scalar_lea.sflag [#allocation16], %s534
          %s536 = sand.u32 %s339, 1
          %s537 = smul.addr %s536, 512
          %s538 = scalar_lea.vmem [#allocation15], %s537
          %s540 = ssub.s32 8192, 8192
          %541 = vsyncadd %s535, %s540
          %s542 = smul.addr %s30, 64
          %s543 = smul.addr %s542, 128
          %s544 = scalar_lea.hbm %s14, %s543
          %s545 = sshll.u32 %s538, 4
          %s546 = int_to_ptr.vmem [resolvable:$true] %s545
          %551 = dma.hbm_to_vmem [thread:$0]  %s544, 8192, %s546, %s535, 128, 128, 8
        $region80: #{gnn_forward.1} parent=71 // pred_fallthru
          _
        // Predicated region
        $region81: #{gnn_forward.1} parent=71 // pred_check
          %p552 = pneg %p375
        $region82: #{gnn_forward.1} parent=71 // pred_check_branch
          %554 = sbr.rel (%p552) target = $region84
        $region83: #{gnn_forward.1} parent=71 // pred_region
          %s555 = sand.u32 %s30, 1
          %s556 = scalar_lea.sflag [#allocation16], %s555
          %s557 = sand.u32 %s365, 1
          %s558 = smul.addr %s557, 384
          %s559 = scalar_lea.vmem [#allocation17], %s558
          %s561 = ssub.s32 6144, 6144
          %562 = vsyncadd %s556, %s561
          %s563 = smul.addr %s30, 48
          %s564 = smul.addr %s563, 128
          %s565 = scalar_lea.hbm %s15, %s564
          %s566 = sshll.u32 %s559, 4
          %s567 = int_to_ptr.vmem [resolvable:$true] %s566
          %572 = dma.hbm_to_vmem [thread:$0]  %s565, 6144, %s567, %s556, 128, 128, 8
        $region84: #{gnn_forward.1} parent=71 // pred_fallthru
          _
        // Predicated region
        $region85: #{gnn_forward.1} parent=71 // pred_check
          %p573 = pneg %p401
        $region86: #{gnn_forward.1} parent=71 // pred_check_branch
          %575 = sbr.rel (%p573) target = $region88
        $region87: #{gnn_forward.1} parent=71 // pred_region
          %p576 = scmp.lt.s32.totalorder %s30, 1
          %s577 = scalar_select %p576, %s30, 1
          %s578 = smul.addr %s577, 2
          %s579 = smul.addr %s578, 8
          %s580 = scalar_lea.vmem %s16, %s579
        $region88: #{gnn_forward.1} parent=71 // pred_fallthru
          _
      $region72: #{gnn_forward.1} parent=5 // pred_fallthru
        _
      %p581 = scmp.le.s32.totalorder 1, %s30
      %p582 = scmp.lt.s32.totalorder %s30, 3
      %p583 = pnand %p581, %p582
      %p584 = pneg %p583
      // Predicated region
      $region89: #{gnn_forward.1} parent=5 // pred_check
        _
      $region90: #{gnn_forward.1} parent=5 // pred_check_branch
        %586 = sbr.rel (%p583) target = $region92
      $region91: #{gnn_forward.1} parent=5 // pred_region
        %s587 = ssub.s32 %s30, 1
        %s588 = sand.u32 %s316, 1
        %s589 = scalar_lea.sflag [#allocation14], %s588
        %s590 = sand.u32 %s316, 1
        %s591 = smul.addr %s590, 512
        %s592 = scalar_lea.vmem [#allocation13], %s591
        // Predicated region
        $region93: #{gnn_forward.1} parent=91 // pred_check
          %p593 = pneg %p329
        $region94: #{gnn_forward.1} parent=91 // pred_check_branch
          %595 = sbr.rel (%p593) target = $region96
        $region95: #{gnn_forward.1} parent=91 // pred_region
          %596 = dma.done %s589, 8192
        $region96: #{gnn_forward.1} parent=91 // pred_fallthru
          _
        %s597 = sand.u32 %s35, 1
        %s598 = scalar_lea.sflag [#allocation16], %s597
        %s599 = sand.u32 %s342, 1
        %s600 = smul.addr %s599, 512
        %s601 = scalar_lea.vmem [#allocation15], %s600
        // Predicated region
        $region97: #{gnn_forward.1} parent=91 // pred_check
          %p602 = pneg %p355
        $region98: #{gnn_forward.1} parent=91 // pred_check_branch
          %604 = sbr.rel (%p602) target = $region100
        $region99: #{gnn_forward.1} parent=91 // pred_region
          %605 = dma.done %s598, 8192
        $region100: #{gnn_forward.1} parent=91 // pred_fallthru
          _
        %s606 = sand.u32 %s35, 1
        %s607 = scalar_lea.sflag [#allocation16], %s606
        %s608 = sand.u32 %s368, 1
        %s609 = smul.addr %s608, 384
        %s610 = scalar_lea.vmem [#allocation17], %s609
        // Predicated region
        $region101: #{gnn_forward.1} parent=91 // pred_check
          %p611 = pneg %p381
        $region102: #{gnn_forward.1} parent=91 // pred_check_branch
          %613 = sbr.rel (%p611) target = $region104
        $region103: #{gnn_forward.1} parent=91 // pred_region
          %614 = dma.done %s607, 6144
        $region104: #{gnn_forward.1} parent=91 // pred_fallthru
          _
        %p615 = pneg %p51
        %p616 = pneg %p48
        %p617 = pneg %p72
        %p618 = pneg %p69
        %p619 = pneg %p93
        %p620 = pneg %p90
        %p621 = pneg %p114
        %p622 = pneg %p111
        %p623 = pneg %p135
        %p624 = pneg %p132
        %p625 = pneg %p156
        %p626 = pneg %p153
        %p627 = pneg %p177
        %p628 = pneg %p174
        %p629 = pneg %p198
        %p630 = pneg %p195
        %p631 = pneg %p219
        %p632 = pneg %p216
        %p633 = pneg %p240
        %p634 = pneg %p237
        %p635 = pneg %p261
        %p636 = pneg %p258
        %p637 = pneg %p282
        %p638 = pneg %p279
        %p639 = pneg %p303
        %p640 = pneg %p300
        %s641 = sand.u32 %s316, 1
        %s642 = scalar_lea.sflag [#allocation14], %s641
        %s643 = sand.u32 %s316, 1
        %s644 = smul.addr %s643, 512
        %s645 = scalar_lea.vmem [#allocation13], %s644
        %p646 = pneg %p329
        %p647 = pneg %p326
        %s648 = sand.u32 %s35, 1
        %s649 = scalar_lea.sflag [#allocation16], %s648
        %s650 = sand.u32 %s342, 1
        %s651 = smul.addr %s650, 512
        %s652 = scalar_lea.vmem [#allocation15], %s651
        %p653 = pneg %p355
        %p654 = pneg %p352
        %s655 = sand.u32 %s35, 1
        %s656 = scalar_lea.sflag [#allocation16], %s655
        %s657 = sand.u32 %s368, 1
        %s658 = smul.addr %s657, 384
        %s659 = scalar_lea.vmem [#allocation17], %s658
        %p660 = pneg %p381
        %p661 = pneg %p378
        %p662 = scmp.lt.s32.totalorder %s35, 1
        %s663 = scalar_select %p662, %s35, 1
        %s664 = smul.addr %s663, 2
        %s665 = smul.addr %s664, 8
        %s666 = scalar_lea.vmem %s16, %s665
        %p667 = pneg %p407
        %p668 = pneg %p404
        %p669 = pneg %p428
        %p670 = pneg %p425
        %p671 = pneg %p449
        %p672 = pneg %p446
        %p673 = scmp.lt.s32.totalorder %s35, 1
        %s674 = scalar_select %p673, %s35, 1
        %s675 = smul.addr %s674, 2
        %s676 = smul.addr %s675, 8
        %s677 = scalar_lea.vmem %s16, %s676
        %p679 = scmp.eq.s32.totalorder %s35, 0
        // Predicated region
        $region105: #{gnn_forward.1} parent=91 // pred_check
          %p680 = pneg %p679
        $region106: #{gnn_forward.1} parent=91 // pred_check_branch
          %682 = sbr.rel (%p680) target = $region108
        $region107: #{gnn_forward.1} parent=91 // pred_region
          %v683 = vld [vmem:[%s0] sm:$0xff]
          %v684 = vld [vmem:[%s0 + $0x8] sm:$0xff]
          %v685 = vld [vmem:[%s10] sm:$0xff]
          %v686 = vld [vmem:[%s10 + $0x8] sm:$0x1]
          %v687 = vld [vmem:[%s12] sm:$0x1]
          %v688 = vlaneseq
          %v689 = vshrl.u32 %v688, 7
          %v690 = vsub.s32 0, %v689
          %v691 = vrot.slane %v687, %v690
          %vm692 = vcmask 72704
          %v694 = vsel %vm692, %v683, 0
          %v697 = vsel %vm692, %v684, 0
          %vm699 = vcmask 1040384
          %v701 = vsel %vm699, %v686, 0
          %703 = vmatprep.subr.mxu0 0.0
          %704 = vmatpush1.msra.mxu0 %v685
          %705 = vmatprep.subr.mxu0 0.0
          %706 = vmatpush1.msra.mxu0 %v701
          %707 = vmatprep.subr.mxu0 0.0
          %708 = vmatpush1.msra.mxu0 0.0
          %709 = vmatprep.subr.mxu0 0.0
          %710 = vmatpush1.msra.mxu0 0.0
          %711 = vmatprep.subr.mxu0 0.0
          %712 = vmatpush1.msra.mxu0 0.0
          %713 = vmatprep.subr.mxu0 0.0
          %714 = vmatpush1.msra.mxu0 0.0
          %715 = vmatprep.subr.mxu0 0.0
          %716 = vmatpush1.msra.mxu0 0.0
          %717 = vmatprep.subr.mxu0 0.0
          %718 = vmatpush1.msra.mxu0 0.0
          %719 = vmatprep.subr.mxu0 0.0
          %720 = vmatpush1.msra.mxu0 0.0
          %721 = vmatprep.subr.mxu0 0.0
          %722 = vmatpush1.msra.mxu0 0.0
          %723 = vmatprep.subr.mxu0 0.0
          %724 = vmatpush1.msra.mxu0 0.0
          %725 = vmatprep.subr.mxu0 0.0
          %726 = vmatpush1.msra.mxu0 0.0
          %727 = vmatprep.subr.mxu0 0.0
          %728 = vmatpush1.msra.mxu0 0.0
          %729 = vmatprep.subr.mxu0 0.0
          %730 = vmatpush1.msra.mxu0 0.0
          %731 = vmatprep.subr.mxu0 0.0
          %732 = vmatpush1.msra.mxu0 0.0
          %733 = vmatprep.subr.mxu0 0.0
          %734 = vmatpush1.msra.mxu0 0.0
          %735 = vmatprep.subr.mxu0 0.0
          %736 = vmatpush1.msra.mxu0 0.0
          %737 = vmatprep.subr.mxu0 0.0
          %738 = vmatpush1.msra.mxu0 0.0
          %739 = vmatprep.subr.mxu0 0.0
          %740 = vmatpush1.msra.mxu0 0.0
          %741 = vmatprep.subr.mxu0 0.0
          %742 = vmatpush1.msra.mxu0 0.0
          %743 = vmatprep.subr.mxu0 0.0
          %744 = vmatpush1.msra.mxu0 0.0
          %745 = vmatprep.subr.mxu0 0.0
          %746 = vmatpush1.msra.mxu0 0.0
          %747 = vmatprep.subr.mxu0 0.0
          %748 = vmatpush1.msra.mxu0 0.0
          %749 = vmatprep.subr.mxu0 0.0
          %750 = vmatpush1.msra.mxu0 0.0
          %751 = vmatprep.subr.mxu0 0.0
          %752 = vmatpush1.msra.mxu0 0.0
          %753 = vmatprep.subr.mxu0 0.0
          %754 = vmatpush1.msra.mxu0 0.0
          %755 = vmatprep.subr.mxu0 0.0
          %756 = vmatpush1.msra.mxu0 0.0
          %757 = vmatprep.subr.mxu0 0.0
          %758 = vmatpush1.msra.mxu0 0.0
          %759 = vmatprep.subr.mxu0 0.0
          %760 = vmatpush1.msra.mxu0 0.0
          %761 = vmatprep.subr.mxu0 0.0
          %762 = vmatpush1.msra.mxu0 0.0
          %763 = vmatprep.subr.mxu0 0.0
          %764 = vmatpush1.msra.mxu0 0.0
          %765 = vmatprep.subr.mxu0 0.0
          %766 = vmatpush1.msra.mxu0 0.0
          %767 = vmatprep.mubr.f32.mxu0 0.0
          %768 = vmatmul.mubr.f32.gmra.mrb[0].mxu0 %v694
          %v769 = vpop.f32.mrb[0].mxu0
          %v770 = vadd.f32 %v691, %v769
          %v771 = vpop.f32.mrb[0].mxu0
          %772 = vmatprep.mubr.f32.mxu0 0.0
          %773 = vmatmul.mubr.f32.gmra.mrb[0].mxu0 %v697
          %v774 = vpop.f32.mrb[0].mxu0
          %v775 = vadd.f32 %v691, %v774
          %v776 = vpop.f32.mrb[0].mxu0
          %777 = vdwg.mxu0
          %778 = vst [vmem:[#allocation2] sm:$0xff] %v770
          %779 = vst [vmem:[#allocation2 + $0x8] sm:$0xff] %v775
          %v780 = vld [vmem:[%s1] sm:$0xff]
          %v781 = vld [vmem:[%s1 + $0x8] sm:$0xff]
          %v782 = vld [vmem:[%s1 + $0x10] sm:$0xff]
          %v783 = vld [vmem:[%s11] sm:$0x7]
          %v784 = vld [vmem:[%s12 + $0x1] sm:$0x1]
          %v785 = vlaneseq
          %v786 = vshrl.u32 %v785, 7
          %v787 = vsub.s32 0, %v786
          %v788 = vrot.slane %v784, %v787
          %vm789 = vcmask 23552
          %v791 = vsel %vm789, %v780, 0
          %v794 = vsel %vm789, %v781, 0
          %v797 = vsel %vm789, %v782, 0
          %vm799 = vcmask 1042432
          %v801 = vsel %vm799, %v783, 0
          %803 = vmatprep.subr.mxu0 0.0
          %804 = vmatpush1.msra.mxu0 %v801
          %805 = vmatprep.subr.mxu0 0.0
          %806 = vmatpush1.msra.mxu0 0.0
          %807 = vmatprep.subr.mxu0 0.0
          %808 = vmatpush1.msra.mxu0 0.0
          %809 = vmatprep.subr.mxu0 0.0
          %810 = vmatpush1.msra.mxu0 0.0
          %811 = vmatprep.subr.mxu0 0.0
          %812 = vmatpush1.msra.mxu0 0.0
          %813 = vmatprep.subr.mxu0 0.0
          %814 = vmatpush1.msra.mxu0 0.0
          %815 = vmatprep.subr.mxu0 0.0
          %816 = vmatpush1.msra.mxu0 0.0
          %817 = vmatprep.subr.mxu0 0.0
          %818 = vmatpush1.msra.mxu0 0.0
          %819 = vmatprep.subr.mxu0 0.0
          %820 = vmatpush1.msra.mxu0 0.0
          %821 = vmatprep.subr.mxu0 0.0
          %822 = vmatpush1.msra.mxu0 0.0
          %823 = vmatprep.subr.mxu0 0.0
          %824 = vmatpush1.msra.mxu0 0.0
          %825 = vmatprep.subr.mxu0 0.0
          %826 = vmatpush1.msra.mxu0 0.0
          %827 = vmatprep.subr.mxu0 0.0
          %828 = vmatpush1.msra.mxu0 0.0
          %829 = vmatprep.subr.mxu0 0.0
          %830 = vmatpush1.msra.mxu0 0.0
          %831 = vmatprep.subr.mxu0 0.0
          %832 = vmatpush1.msra.mxu0 0.0
          %833 = vmatprep.subr.mxu0 0.0
          %834 = vmatpush1.msra.mxu0 0.0
          %835 = vmatprep.subr.mxu0 0.0
          %836 = vmatpush1.msra.mxu0 0.0
          %837 = vmatprep.subr.mxu0 0.0
          %838 = vmatpush1.msra.mxu0 0.0
          %839 = vmatprep.subr.mxu0 0.0
          %840 = vmatpush1.msra.mxu0 0.0
          %841 = vmatprep.subr.mxu0 0.0
          %842 = vmatpush1.msra.mxu0 0.0
          %843 = vmatprep.subr.mxu0 0.0
          %844 = vmatpush1.msra.mxu0 0.0
          %845 = vmatprep.subr.mxu0 0.0
          %846 = vmatpush1.msra.mxu0 0.0
          %847 = vmatprep.subr.mxu0 0.0
          %848 = vmatpush1.msra.mxu0 0.0
          %849 = vmatprep.subr.mxu0 0.0
          %850 = vmatpush1.msra.mxu0 0.0
          %851 = vmatprep.subr.mxu0 0.0
          %852 = vmatpush1.msra.mxu0 0.0
          %853 = vmatprep.subr.mxu0 0.0
          %854 = vmatpush1.msra.mxu0 0.0
          %855 = vmatprep.subr.mxu0 0.0
          %856 = vmatpush1.msra.mxu0 0.0
          %857 = vmatprep.subr.mxu0 0.0
          %858 = vmatpush1.msra.mxu0 0.0
          %859 = vmatprep.subr.mxu0 0.0
          %860 = vmatpush1.msra.mxu0 0.0
          %861 = vmatprep.subr.mxu0 0.0
          %862 = vmatpush1.msra.mxu0 0.0
          %863 = vmatprep.subr.mxu0 0.0
          %864 = vmatpush1.msra.mxu0 0.0
          %865 = vmatprep.subr.mxu0 0.0
          %866 = vmatpush1.msra.mxu0 0.0
          %867 = vmatprep.mubr.f32.mxu0 0.0
          %868 = vmatmul.mubr.f32.gmra.mrb[0].mxu0 %v791
          %v869 = vpop.f32.mrb[0].mxu0
          %v870 = vadd.f32 %v788, %v869
          %v871 = vpop.f32.mrb[0].mxu0
          %872 = vmatprep.mubr.f32.mxu0 0.0
          %873 = vmatmul.mubr.f32.gmra.mrb[0].mxu0 %v794
          %v874 = vpop.f32.mrb[0].mxu0
          %v875 = vadd.f32 %v788, %v874
          %v876 = vpop.f32.mrb[0].mxu0
          %877 = vmatprep.mubr.f32.mxu0 0.0
          %878 = vmatmul.mubr.f32.gmra.mrb[0].mxu0 %v797
          %v879 = vpop.f32.mrb[0].mxu0
          %v880 = vadd.f32 %v788, %v879
          %v881 = vpop.f32.mrb[0].mxu0
          %882 = vdwg.mxu0
          %883 = vst [vmem:[#allocation3] sm:$0xff] %v870
          %884 = vst [vmem:[#allocation3 + $0x8] sm:$0xff] %v875
          %885 = vst [vmem:[#allocation3 + $0x10] sm:$0xff] %v880
          %886 = vst [vmem:[#allocation4] sm:$0xff] 0.0
          %887 = vst [vmem:[%s18] sm:$0xff] 0.0
          %v888 = vlaneseq
          %v889 = vand.u32 %v888, 127
          %v890 = vld [vmem:[%s2] sm:$0xff]
          %v891 = vld [vmem:[%s2 + $0x8] sm:$0xff]
          %v892 = vld [vmem:[%s2 + $0x10] sm:$0xff]
          %893 = vset.pattern.permute.xlu0 0
          %894 = vperm.xlu0 %893, %v890
          %v895 = vpop.permute.xlu0 %894
          %896 = vset.pattern.permute.xlu0 0
          %897 = vperm.xlu0 %896, %v891
          %v898 = vpop.permute.xlu0 %897
          %899 = vset.pattern.permute.xlu0 0
          %900 = vperm.xlu0 %899, %v892
          %v901 = vpop.permute.xlu0 %900
          %vm902 = vcmp.eq.s32.totalorder %v895, %v889
          %vm903 = vcmp.eq.s32.totalorder %v898, %v889
          %vm904 = vcmp.eq.s32.totalorder %v901, %v889
          %v905 = vsel %vm902, 1, 0
          %v906 = vsel %vm903, 1, 0
          %v907 = vsel %vm904, 1, 0
          %v908 = vcvt.s32.f32 %v905
          %v909 = vcvt.s32.f32 %v906
          %v910 = vcvt.s32.f32 %v907
          %v911 = vpack.c.bf16 %v909, %v908
          %v912 = vpack.c.bf16 %v910, %v910
          %v915 = vunpack.c.l.b16 %v911
          %v916 = vunpack.c.h.b16 %v911
          %v917 = vunpack.c.l.b16 %v912
          %v918 = vpack.c.b16 %v915, %v915
          %v919 = vpack.c.b16 %v916, %v916
          %v920 = vpack.c.b16 %v917, %v917
          %vm924 = vcmask 125952
          %925 = vst.msk [vmem:[#allocation5] sm:$0xf] %vm924, %v918
          %926 = vst.msk [vmem:[#allocation5 + $0x4] sm:$0xf] %vm924, %v919
          %927 = vst.msk [vmem:[#allocation5 + $0x8] sm:$0xf] %vm924, %v920
          %v928 = vld [vmem:[%s4] sm:$0xff]
          %v929 = vld [vmem:[%s4 + $0x8] sm:$0xff]
          %v930 = vld [vmem:[%s4 + $0x10] sm:$0xff]
          %931 = vset.pattern.permute.xlu0 0
          %932 = vperm.xlu0 %931, %v928
          %v933 = vpop.permute.xlu0 %932
          %934 = vset.pattern.permute.xlu0 0
          %935 = vperm.xlu0 %934, %v929
          %v936 = vpop.permute.xlu0 %935
          %937 = vset.pattern.permute.xlu0 0
          %938 = vperm.xlu0 %937, %v930
          %v939 = vpop.permute.xlu0 %938
          %vm940 = vcmp.eq.s32.totalorder %v933, %v889
          %vm941 = vcmp.eq.s32.totalorder %v936, %v889
          %vm942 = vcmp.eq.s32.totalorder %v939, %v889
          %v943 = vsel %vm940, 1, 0
          %v944 = vsel %vm941, 1, 0
          %v945 = vsel %vm942, 1, 0
          %v946 = vcvt.s32.f32 %v943
          %v947 = vcvt.s32.f32 %v944
          %v948 = vcvt.s32.f32 %v945
          %v949 = vpack.c.bf16 %v947, %v946
          %v950 = vpack.c.bf16 %v948, %v948
          %v953 = vunpack.c.l.b16 %v949
          %v954 = vunpack.c.h.b16 %v949
          %v955 = vunpack.c.l.b16 %v950
          %v956 = vpack.c.b16 %v953, %v953
          %v957 = vpack.c.b16 %v954, %v954
          %v958 = vpack.c.b16 %v955, %v955
          %962 = vst.msk [vmem:[#allocation6] sm:$0xf] %vm924, %v956
          %963 = vst.msk [vmem:[#allocation6 + $0x4] sm:$0xf] %vm924, %v957
          %964 = vst.msk [vmem:[#allocation6 + $0x8] sm:$0xf] %vm924, %v958
          %v965 = vlaneseq
          %v966 = vshrl.u32 %v965, 7
          %v967 = vadd.s32 %v966, 8
          %v968 = vld [vmem:[%s3] sm:$0x1]
          %v969 = vlaneseq
          %v970 = vshrl.u32 %v969, 7
          %v971 = vsub.s32 0, %v970
          %v972 = vrot.slane %v968, %v971
          %vm973 = vcmp.eq.s32.totalorder %v972, %v966
          %vm974 = vcmp.eq.s32.totalorder %v972, %v967
          %v975 = vsel %vm973, 1, 0
          %v976 = vsel %vm974, 1, 0
          %v977 = vcvt.s32.f32 %v975
          %v978 = vcvt.s32.f32 %v976
          %v979 = vpack.c.bf16 %v978, %v977
          %vm980 = vcmask 195584
          %981 = vst.msk [vmem:[#allocation7] sm:$0xff] %vm980, %v979
          %v982 = vld [vmem:[%s5] sm:$0x1]
          %v983 = vlaneseq
          %v984 = vshrl.u32 %v983, 7
          %v985 = vsub.s32 0, %v984
          %v986 = vrot.slane %v982, %v985
          %vm987 = vcmp.eq.s32.totalorder %v986, %v966
          %vm988 = vcmp.eq.s32.totalorder %v986, %v967
          %v989 = vsel %vm987, 1, 0
          %v990 = vsel %vm988, 1, 0
          %v991 = vcvt.s32.f32 %v989
          %v992 = vcvt.s32.f32 %v990
          %v993 = vpack.c.bf16 %v992, %v991
          %994 = vst.msk [vmem:[#allocation8] sm:$0xff] %vm980, %v993
          %v995 = vld [vmem:[%s8] sm:$0xff]
          %v996 = vld [vmem:[%s8 + $0x8] sm:$0xff]
          %v997 = vld [vmem:[%s8 + $0x10] sm:$0xff]
          %998 = vset.pattern.permute.xlu0 0
          %999 = vperm.xlu0 %998, %v995
          %v1000 = vpop.permute.xlu0 %999
          %1001 = vset.pattern.permute.xlu0 0
          %1002 = vperm.xlu0 %1001, %v996
          %v1003 = vpop.permute.xlu0 %1002
          %1004 = vset.pattern.permute.xlu0 0
          %1005 = vperm.xlu0 %1004, %v997
          %v1006 = vpop.permute.xlu0 %1005
          %vm1007 = vcmp.eq.s32.totalorder %v1000, %v889
          %vm1008 = vcmp.eq.s32.totalorder %v1003, %v889
          %vm1009 = vcmp.eq.s32.totalorder %v1006, %v889
          %v1010 = vsel %vm1007, 1, 0
          %v1011 = vsel %vm1008, 1, 0
          %v1012 = vsel %vm1009, 1, 0
          %v1013 = vcvt.s32.f32 %v1010
          %v1014 = vcvt.s32.f32 %v1011
          %v1015 = vcvt.s32.f32 %v1012
          %v1016 = vpack.c.bf16 %v1014, %v1013
          %v1017 = vpack.c.bf16 %v1015, %v1015
          %v1020 = vunpack.c.l.b16 %v1016
          %v1021 = vunpack.c.h.b16 %v1016
          %v1022 = vunpack.c.l.b16 %v1017
          %v1023 = vpack.c.b16 %v1020, %v1020
          %v1024 = vpack.c.b16 %v1021, %v1021
          %v1025 = vpack.c.b16 %v1022, %v1022
          %vm1029 = vcmask 60416
          %1030 = vst.msk [vmem:[#allocation9] sm:$0xf] %vm1029, %v1023
          %1031 = vst.msk [vmem:[#allocation9 + $0x4] sm:$0xf] %vm1029, %v1024
          %1032 = vst.msk [vmem:[#allocation9 + $0x8] sm:$0xf] %vm1029, %v1025
          %v1033 = vld [vmem:[%s6] sm:$0xff]
          %v1034 = vld [vmem:[%s6 + $0x8] sm:$0xff]
          %1035 = vset.pattern.permute.xlu0 0
          %1036 = vperm.xlu0 %1035, %v1033
          %v1037 = vpop.permute.xlu0 %1036
          %1038 = vset.pattern.permute.xlu0 0
          %1039 = vperm.xlu0 %1038, %v1034
          %v1040 = vpop.permute.xlu0 %1039
          %vm1041 = vcmp.eq.s32.totalorder %v1037, %v889
          %vm1042 = vcmp.eq.s32.totalorder %v1040, %v889
          %v1043 = vsel %vm1041, 1, 0
          %v1044 = vsel %vm1042, 1, 0
          %v1045 = vcvt.s32.f32 %v1043
          %v1046 = vcvt.s32.f32 %v1044
          %v1047 = vpack.c.bf16 %v1046, %v1045
          %vm1048 = vcmask 64512
          %1049 = vst.msk [vmem:[#allocation10] sm:$0xff] %vm1048, %v1047
          %v1050 = vld [vmem:[%s7] sm:$0x1]
          %v1051 = vlaneseq
          %v1052 = vshrl.u32 %v1051, 7
          %v1053 = vsub.s32 0, %v1052
          %v1054 = vrot.slane %v1050, %v1053
          %vm1055 = vcmp.eq.s32.totalorder %v1054, %v966
          %v1056 = vsel %vm1055, 1, 0
          %v1057 = vcvt.s32.f32 %v1056
          %v1058 = vpack.c.bf16 %v1057, %v1057
          %1059 = vst.msk [vmem:[#allocation11] sm:$0xf] %vm924, %v1058
          %v1060 = vld [vmem:[%s9] sm:$0x1]
          %v1061 = vlaneseq
          %v1062 = vshrl.u32 %v1061, 7
          %v1063 = vsub.s32 0, %v1062
          %v1064 = vrot.slane %v1060, %v1063
          %vm1065 = vcmp.eq.s32.totalorder %v1064, %v966
          %v1066 = vsel %vm1065, 1, 0
          %v1067 = vcvt.s32.f32 %v1066
          %v1068 = vpack.c.bf16 %v1067, %v1067
          %vm1069 = vcmask 191488
          %1070 = vst.msk [vmem:[#allocation12] sm:$0xf] %vm1069, %v1068
        $region108: #{gnn_forward.1} parent=91 // pred_fallthru
          _
        %v1071 = vld [vmem:[#allocation2] sm:$0xff]
        %v1072 = vld [vmem:[#allocation2 + $0x8] sm:$0xff]
        %v1073 = vld [vmem:[#allocation3] sm:$0xff]
        %v1074 = vld [vmem:[#allocation3 + $0x8] sm:$0xff]
        %v1075 = vld [vmem:[#allocation3 + $0x10] sm:$0xff]
        %v1076 = vld [vmem:[#allocation4] sm:$0xff]
        %v1077 = vpack.c.bf16 %v1072, %v1071
        %v1078 = vpack.c.bf16 %v1076, %v1076
        %v1079 = vld [vmem:[#allocation5] sm:$0xf]
        %v1080 = vld [vmem:[#allocation5 + $0x4] sm:$0xf]
        %v1081 = vld [vmem:[#allocation5 + $0x8] sm:$0xf]
        %v1085 = vunpack.c.l.b16 %v1079
        %v1086 = vunpack.c.l.b16 %v1080
        %v1087 = vunpack.c.l.b16 %v1081
        %v1088 = vpack.c.b16 %v1086, %v1085
        %v1089 = vpack.c.b16 %v1087, %v1087
        %vm1090 = vcmask 130048
        %v1092 = vsel %vm1090, %v1088, 0
        %v1095 = vsel %vm1090, %v1089, 0
        %1097 = vmatprep.subr.bf16.mxu0 0
        %1098 = vmatpush1.bf16.msra.mxu0 %v1077
        %1099 = vmatprep.subr.bf16.mxu0 0
        %1100 = vmatpush1.bf16.msra.mxu0 0
        %1101 = vmatprep.subr.bf16.mxu0 0
        %1102 = vmatpush1.bf16.msra.mxu0 0
        %1103 = vmatprep.subr.bf16.mxu0 0
        %1104 = vmatpush1.bf16.msra.mxu0 0
        %1105 = vmatprep.subr.bf16.mxu0 0
        %1106 = vmatpush1.bf16.msra.mxu0 0
        %1107 = vmatprep.subr.bf16.mxu0 0
        %1108 = vmatpush1.bf16.msra.mxu0 0
        %1109 = vmatprep.subr.bf16.mxu0 0
        %1110 = vmatpush1.bf16.msra.mxu0 0
        %1111 = vmatprep.subr.bf16.mxu0 0
        %1112 = vmatpush1.bf16.msra.mxu0 0
        %1113 = vmatprep.subr.bf16.mxu0 0
        %1114 = vmatpush1.bf16.msra.mxu0 0
        %1115 = vmatprep.subr.bf16.mxu0 0
        %1116 = vmatpush1.bf16.msra.mxu0 0
        %1117 = vmatprep.subr.bf16.mxu0 0
        %1118 = vmatpush1.bf16.msra.mxu0 0
        %1119 = vmatprep.subr.bf16.mxu0 0
        %1120 = vmatpush1.bf16.msra.mxu0 0
        %1121 = vmatprep.subr.bf16.mxu0 0
        %1122 = vmatpush1.bf16.msra.mxu0 0
        %1123 = vmatprep.subr.bf16.mxu0 0
        %1124 = vmatpush1.bf16.msra.mxu0 0
        %1125 = vmatprep.subr.bf16.mxu0 0
        %1126 = vmatpush1.bf16.msra.mxu0 0
        %1127 = vmatprep.subr.bf16.mxu0 0
        %1128 = vmatpush1.bf16.msra.mxu0 0
        %1129 = vmatprep.mubr.bf16.mxu0 0
        %1130 = vmatmul.mubr.bf16.gmra.mrb[0].mxu0 %v1092
        %v1131 = vpop.f32.mrb[0].mxu0
        %v1132 = vadd.f32 0.0, %v1131
        %v1133 = vpop.f32.mrb[0].mxu0
        %v1134 = vpop.f32.mrb[0].mxu0
        %v1135 = vadd.f32 0.0, %v1134
        %v1136 = vpop.f32.mrb[0].mxu0
        %1137 = vmatprep.mubr.bf16.mxu0 0
        %1138 = vmatmul.mubr.bf16.gmra.mrb[0].mxu0 %v1095
        %v1139 = vpop.f32.mrb[0].mxu0
        %v1140 = vadd.f32 0.0, %v1139
        %v1141 = vpop.f32.mrb[0].mxu0
        %v1142 = vpop.f32.mrb[0].mxu0
        %v1143 = vpop.f32.mrb[0].mxu0
        %1144 = vdwg.mxu0
        %v1145 = vld [vmem:[#allocation6] sm:$0xf]
        %v1146 = vld [vmem:[#allocation6 + $0x4] sm:$0xf]
        %v1147 = vld [vmem:[#allocation6 + $0x8] sm:$0xf]
        %v1151 = vunpack.c.l.b16 %v1145
        %v1152 = vunpack.c.l.b16 %v1146
        %v1153 = vunpack.c.l.b16 %v1147
        %v1154 = vpack.c.b16 %v1152, %v1151
        %v1155 = vpack.c.b16 %v1153, %v1153
        %v1157 = vsel %vm1090, %v1154, 0
        %v1160 = vsel %vm1090, %v1155, 0
        %1162 = vmatprep.subr.bf16.mxu0 0
        %1163 = vmatpush1.bf16.msra.mxu0 %v1077
        %1164 = vmatprep.subr.bf16.mxu0 0
        %1165 = vmatpush1.bf16.msra.mxu0 0
        %1166 = vmatprep.subr.bf16.mxu0 0
        %1167 = vmatpush1.bf16.msra.mxu0 0
        %1168 = vmatprep.subr.bf16.mxu0 0
        %1169 = vmatpush1.bf16.msra.mxu0 0
        %1170 = vmatprep.subr.bf16.mxu0 0
        %1171 = vmatpush1.bf16.msra.mxu0 0
        %1172 = vmatprep.subr.bf16.mxu0 0
        %1173 = vmatpush1.bf16.msra.mxu0 0
        %1174 = vmatprep.subr.bf16.mxu0 0
        %1175 = vmatpush1.bf16.msra.mxu0 0
        %1176 = vmatprep.subr.bf16.mxu0 0
        %1177 = vmatpush1.bf16.msra.mxu0 0
        %1178 = vmatprep.subr.bf16.mxu0 0
        %1179 = vmatpush1.bf16.msra.mxu0 0
        %1180 = vmatprep.subr.bf16.mxu0 0
        %1181 = vmatpush1.bf16.msra.mxu0 0
        %1182 = vmatprep.subr.bf16.mxu0 0
        %1183 = vmatpush1.bf16.msra.mxu0 0
        %1184 = vmatprep.subr.bf16.mxu0 0
        %1185 = vmatpush1.bf16.msra.mxu0 0
        %1186 = vmatprep.subr.bf16.mxu0 0
        %1187 = vmatpush1.bf16.msra.mxu0 0
        %1188 = vmatprep.subr.bf16.mxu0 0
        %1189 = vmatpush1.bf16.msra.mxu0 0
        %1190 = vmatprep.subr.bf16.mxu0 0
        %1191 = vmatpush1.bf16.msra.mxu0 0
        %1192 = vmatprep.subr.bf16.mxu0 0
        %1193 = vmatpush1.bf16.msra.mxu0 0
        %1194 = vmatprep.mubr.bf16.mxu0 0
        %1195 = vmatmul.mubr.bf16.gmra.mrb[0].mxu0 %v1157
        %v1196 = vpop.f32.mrb[0].mxu0
        %v1197 = vadd.f32 0.0, %v1196
        %v1198 = vpop.f32.mrb[0].mxu0
        %v1199 = vpop.f32.mrb[0].mxu0
        %v1200 = vadd.f32 0.0, %v1199
        %v1201 = vpop.f32.mrb[0].mxu0
        %1202 = vmatprep.mubr.bf16.mxu0 0
        %1203 = vmatmul.mubr.bf16.gmra.mrb[0].mxu0 %v1160
        %v1204 = vpop.f32.mrb[0].mxu0
        %v1205 = vadd.f32 0.0, %v1204
        %v1206 = vpop.f32.mrb[0].mxu0
        %v1207 = vpop.f32.mrb[0].mxu0
        %v1208 = vpop.f32.mrb[0].mxu0
        %1209 = vdwg.mxu0
        %v1210 = vld [vmem:[#allocation9] sm:$0xf]
        %v1211 = vld [vmem:[#allocation9 + $0x4] sm:$0xf]
        %v1212 = vld [vmem:[#allocation9 + $0x8] sm:$0xf]
        %v1216 = vunpack.c.l.b16 %v1210
        %v1217 = vunpack.c.l.b16 %v1211
        %v1218 = vunpack.c.l.b16 %v1212
        %v1219 = vpack.c.b16 %v1217, %v1216
        %v1220 = vpack.c.b16 %v1218, %v1218
        %vm1221 = vcmask 64512
        %v1223 = vsel %vm1221, %v1219, 0
        %v1226 = vsel %vm1221, %v1220, 0
        %vm1228 = vcmask 1043456
        %v1230 = vsel %vm1228, %v1078, 0
        %1232 = vmatprep.subr.bf16.mxu0 0
        %1233 = vmatpush1.bf16.msra.mxu0 %v1230
        %1234 = vmatprep.subr.bf16.mxu0 0
        %1235 = vmatpush1.bf16.msra.mxu0 0
        %1236 = vmatprep.subr.bf16.mxu0 0
        %1237 = vmatpush1.bf16.msra.mxu0 0
        %1238 = vmatprep.subr.bf16.mxu0 0
        %1239 = vmatpush1.bf16.msra.mxu0 0
        %1240 = vmatprep.subr.bf16.mxu0 0
        %1241 = vmatpush1.bf16.msra.mxu0 0
        %1242 = vmatprep.subr.bf16.mxu0 0
        %1243 = vmatpush1.bf16.msra.mxu0 0
        %1244 = vmatprep.subr.bf16.mxu0 0
        %1245 = vmatpush1.bf16.msra.mxu0 0
        %1246 = vmatprep.subr.bf16.mxu0 0
        %1247 = vmatpush1.bf16.msra.mxu0 0
        %1248 = vmatprep.subr.bf16.mxu0 0
        %1249 = vmatpush1.bf16.msra.mxu0 0
        %1250 = vmatprep.subr.bf16.mxu0 0
        %1251 = vmatpush1.bf16.msra.mxu0 0
        %1252 = vmatprep.subr.bf16.mxu0 0
        %1253 = vmatpush1.bf16.msra.mxu0 0
        %1254 = vmatprep.subr.bf16.mxu0 0
        %1255 = vmatpush1.bf16.msra.mxu0 0
        %1256 = vmatprep.subr.bf16.mxu0 0
        %1257 = vmatpush1.bf16.msra.mxu0 0
        %1258 = vmatprep.subr.bf16.mxu0 0
        %1259 = vmatpush1.bf16.msra.mxu0 0
        %1260 = vmatprep.subr.bf16.mxu0 0
        %1261 = vmatpush1.bf16.msra.mxu0 0
        %1262 = vmatprep.subr.bf16.mxu0 0
        %1263 = vmatpush1.bf16.msra.mxu0 0
        %1264 = vmatprep.mubr.bf16.mxu0 0
        %1265 = vmatmul.mubr.bf16.gmra.mrb[0].mxu0 %v1223
        %v1266 = vpop.f32.mrb[0].mxu0
        %v1267 = vadd.f32 0.0, %v1266
        %v1268 = vpop.f32.mrb[0].mxu0
        %v1269 = vpop.f32.mrb[0].mxu0
        %v1270 = vadd.f32 0.0, %v1269
        %v1271 = vpop.f32.mrb[0].mxu0
        %1272 = vmatprep.mubr.bf16.mxu0 0
        %1273 = vmatmul.mubr.bf16.gmra.mrb[0].mxu0 %v1226
        %v1274 = vpop.f32.mrb[0].mxu0
        %v1275 = vadd.f32 0.0, %v1274
        %v1276 = vpop.f32.mrb[0].mxu0
        %v1277 = vpop.f32.mrb[0].mxu0
        %v1278 = vpop.f32.mrb[0].mxu0
        %1279 = vdwg.mxu0
        %v1280 = vld [vmem:[%s592] sm:$0xff]
        %v1281 = vld [vmem:[%s592 + $0x8] sm:$0xff]
        %v1282 = vld [vmem:[%s592 + $0x10] sm:$0xff]
        %v1283 = vld [vmem:[%s592 + $0x18] sm:$0xff]
        %v1284 = vld [vmem:[%s592 + $0x20] sm:$0xff]
        %v1285 = vld [vmem:[%s592 + $0x28] sm:$0xff]
        %v1286 = vld [vmem:[%s592 + $0x30] sm:$0xff]
        %v1287 = vld [vmem:[%s592 + $0x38] sm:$0xff]
        %v1288 = vld [vmem:[%s592 + $0x40] sm:$0xff]
        %v1289 = vld [vmem:[%s592 + $0x48] sm:$0xff]
        %v1290 = vld [vmem:[%s592 + $0x50] sm:$0xff]
        %v1291 = vld [vmem:[%s592 + $0x58] sm:$0xff]
        %v1292 = vld [vmem:[%s592 + $0x60] sm:$0xff]
        %v1293 = vld [vmem:[%s592 + $0x68] sm:$0xff]
        %v1294 = vld [vmem:[%s592 + $0x70] sm:$0xff]
        %v1295 = vld [vmem:[%s592 + $0x78] sm:$0xff]
        %v1296 = vld [vmem:[%s592 + $0x80] sm:$0xff]
        %v1297 = vld [vmem:[%s592 + $0x88] sm:$0xff]
        %v1298 = vld [vmem:[%s592 + $0x90] sm:$0xff]
        %v1299 = vld [vmem:[%s592 + $0x98] sm:$0xff]
        %v1300 = vld [vmem:[%s592 + $0xa0] sm:$0xff]
        %v1301 = vld [vmem:[%s592 + $0xa8] sm:$0xff]
        %v1302 = vld [vmem:[%s592 + $0xb0] sm:$0xff]
        %v1303 = vld [vmem:[%s592 + $0xb8] sm:$0xff]
        %v1304 = vld [vmem:[%s592 + $0xc0] sm:$0xff]
        %v1305 = vld [vmem:[%s592 + $0xc8] sm:$0xff]
        %v1306 = vld [vmem:[%s592 + $0xd0] sm:$0xff]
        %v1307 = vld [vmem:[%s592 + $0xd8] sm:$0xff]
        %v1308 = vld [vmem:[%s592 + $0xe0] sm:$0xff]
        %v1309 = vld [vmem:[%s592 + $0xe8] sm:$0xff]
        %v1310 = vld [vmem:[%s592 + $0xf0] sm:$0xff]
        %v1311 = vld [vmem:[%s592 + $0xf8] sm:$0xff]
        %1312 = vmatprep.subr.mxu0 0.0
        %1313 = vmatpush1.msra.mxu0 %v1296
        %1314 = vmatprep.subr.mxu0 0.0
        %1315 = vmatpush1.msra.mxu0 %v1297
        %1316 = vmatprep.subr.mxu0 0.0
        %1317 = vmatpush1.msra.mxu0 %v1298
        %1318 = vmatprep.subr.mxu0 0.0
        %1319 = vmatpush1.msra.mxu0 %v1299
        %1320 = vmatprep.subr.mxu0 0.0
        %1321 = vmatpush1.msra.mxu0 %v1300
        %1322 = vmatprep.subr.mxu0 0.0
        %1323 = vmatpush1.msra.mxu0 %v1301
        %1324 = vmatprep.subr.mxu0 0.0
        %1325 = vmatpush1.msra.mxu0 %v1302
        %1326 = vmatprep.subr.mxu0 0.0
        %1327 = vmatpush1.msra.mxu0 %v1303
        %1328 = vmatprep.subr.mxu0 0.0
        %1329 = vmatpush1.msra.mxu0 %v1304
        %1330 = vmatprep.subr.mxu0 0.0
        %1331 = vmatpush1.msra.mxu0 %v1305
        %1332 = vmatprep.subr.mxu0 0.0
        %1333 = vmatpush1.msra.mxu0 %v1306
        %1334 = vmatprep.subr.mxu0 0.0
        %1335 = vmatpush1.msra.mxu0 %v1307
        %1336 = vmatprep.subr.mxu0 0.0
        %1337 = vmatpush1.msra.mxu0 %v1308
        %1338 = vmatprep.subr.mxu0 0.0
        %1339 = vmatpush1.msra.mxu0 %v1309
        %1340 = vmatprep.subr.mxu0 0.0
        %1341 = vmatpush1.msra.mxu0 %v1310
        %1342 = vmatprep.subr.mxu0 0.0
        %1343 = vmatpush1.msra.mxu0 %v1311
        %1344 = vmatprep.subr.mxu0 0.0
        %1345 = vmatpush1.msra.mxu0 0.0
        %1346 = vmatprep.subr.mxu0 0.0
        %1347 = vmatpush1.msra.mxu0 0.0
        %1348 = vmatprep.subr.mxu0 0.0
        %1349 = vmatpush1.msra.mxu0 0.0
        %1350 = vmatprep.subr.mxu0 0.0
        %1351 = vmatpush1.msra.mxu0 0.0
        %1352 = vmatprep.subr.mxu0 0.0
        %1353 = vmatpush1.msra.mxu0 0.0
        %1354 = vmatprep.subr.mxu0 0.0
        %1355 = vmatpush1.msra.mxu0 0.0
        %1356 = vmatprep.subr.mxu0 0.0
        %1357 = vmatpush1.msra.mxu0 0.0
        %1358 = vmatprep.subr.mxu0 0.0
        %1359 = vmatpush1.msra.mxu0 0.0
        %1360 = vmatprep.subr.mxu0 0.0
        %1361 = vmatpush1.msra.mxu0 0.0
        %1362 = vmatprep.subr.mxu0 0.0
        %1363 = vmatpush1.msra.mxu0 0.0
        %1364 = vmatprep.subr.mxu0 0.0
        %1365 = vmatpush1.msra.mxu0 0.0
        %1366 = vmatprep.subr.mxu0 0.0
        %1367 = vmatpush1.msra.mxu0 0.0
        %1368 = vmatprep.subr.mxu0 0.0
        %1369 = vmatpush1.msra.mxu0 0.0
        %1370 = vmatprep.subr.mxu0 0.0
        %1371 = vmatpush1.msra.mxu0 0.0
        %1372 = vmatprep.subr.mxu0 0.0
        %1373 = vmatpush1.msra.mxu0 0.0
        %1374 = vmatprep.subr.mxu0 0.0
        %1375 = vmatpush1.msra.mxu0 0.0
        %1376 = vmatprep.mubr.f32.mxu0 0.0
        %1377 = vmatmul.mubr.f32.gmra.mrb[0].mxu0 %v1132
        %v1378 = vpop.f32.mrb[0].mxu0
        %v1379 = vadd.f32 0.0, %v1378
        %v1380 = vpop.f32.mrb[0].mxu0
        %1381 = vmatprep.mubr.f32.mxu0 0.0
        %1382 = vmatmul.mubr.f32.gmra.mrb[0].mxu0 %v1135
        %v1383 = vpop.f32.mrb[0].mxu0
        %v1384 = vadd.f32 0.0, %v1383
        %v1385 = vpop.f32.mrb[0].mxu0
        %1386 = vmatprep.mubr.f32.mxu0 0.0
        %1387 = vmatmul.mubr.f32.gmra.mrb[0].mxu0 %v1140
        %v1388 = vpop.f32.mrb[0].mxu0
        %v1389 = vadd.f32 0.0, %v1388
        %v1390 = vpop.f32.mrb[0].mxu0
        %1391 = vdwg.mxu0
        %1392 = vmatprep.subr.mxu0 0.0
        %1393 = vmatpush1.msra.mxu0 %v1280
        %1394 = vmatprep.subr.mxu0 0.0
        %1395 = vmatpush1.msra.mxu0 %v1281
        %1396 = vmatprep.subr.mxu0 0.0
        %1397 = vmatpush1.msra.mxu0 %v1282
        %1398 = vmatprep.subr.mxu0 0.0
        %1399 = vmatpush1.msra.mxu0 %v1283
        %1400 = vmatprep.subr.mxu0 0.0
        %1401 = vmatpush1.msra.mxu0 %v1284
        %1402 = vmatprep.subr.mxu0 0.0
        %1403 = vmatpush1.msra.mxu0 %v1285
        %1404 = vmatprep.subr.mxu0 0.0
        %1405 = vmatpush1.msra.mxu0 %v1286
        %1406 = vmatprep.subr.mxu0 0.0
        %1407 = vmatpush1.msra.mxu0 %v1287
        %1408 = vmatprep.subr.mxu0 0.0
        %1409 = vmatpush1.msra.mxu0 %v1288
        %1410 = vmatprep.subr.mxu0 0.0
        %1411 = vmatpush1.msra.mxu0 %v1289
        %1412 = vmatprep.subr.mxu0 0.0
        %1413 = vmatpush1.msra.mxu0 %v1290
        %1414 = vmatprep.subr.mxu0 0.0
        %1415 = vmatpush1.msra.mxu0 %v1291
        %1416 = vmatprep.subr.mxu0 0.0
        %1417 = vmatpush1.msra.mxu0 %v1292
        %1418 = vmatprep.subr.mxu0 0.0
        %1419 = vmatpush1.msra.mxu0 %v1293
        %1420 = vmatprep.subr.mxu0 0.0
        %1421 = vmatpush1.msra.mxu0 %v1294
        %1422 = vmatprep.subr.mxu0 0.0
        %1423 = vmatpush1.msra.mxu0 %v1295
        %1424 = vmatprep.subr.mxu0 0.0
        %1425 = vmatpush1.msra.mxu0 0.0
        %1426 = vmatprep.subr.mxu0 0.0
        %1427 = vmatpush1.msra.mxu0 0.0
        %1428 = vmatprep.subr.mxu0 0.0
        %1429 = vmatpush1.msra.mxu0 0.0
        %1430 = vmatprep.subr.mxu0 0.0
        %1431 = vmatpush1.msra.mxu0 0.0
        %1432 = vmatprep.subr.mxu0 0.0
        %1433 = vmatpush1.msra.mxu0 0.0
        %1434 = vmatprep.subr.mxu0 0.0
        %1435 = vmatpush1.msra.mxu0 0.0
        %1436 = vmatprep.subr.mxu0 0.0
        %1437 = vmatpush1.msra.mxu0 0.0
        %1438 = vmatprep.subr.mxu0 0.0
        %1439 = vmatpush1.msra.mxu0 0.0
        %1440 = vmatprep.subr.mxu0 0.0
        %1441 = vmatpush1.msra.mxu0 0.0
        %1442 = vmatprep.subr.mxu0 0.0
        %1443 = vmatpush1.msra.mxu0 0.0
        %1444 = vmatprep.subr.mxu0 0.0
        %1445 = vmatpush1.msra.mxu0 0.0
        %1446 = vmatprep.subr.mxu0 0.0
        %1447 = vmatpush1.msra.mxu0 0.0
        %1448 = vmatprep.subr.mxu0 0.0
        %1449 = vmatpush1.msra.mxu0 0.0
        %1450 = vmatprep.subr.mxu0 0.0
        %1451 = vmatpush1.msra.mxu0 0.0
        %1452 = vmatprep.subr.mxu0 0.0
        %1453 = vmatpush1.msra.mxu0 0.0
        %1454 = vmatprep.subr.mxu0 0.0
        %1455 = vmatpush1.msra.mxu0 0.0
        %1456 = vmatprep.mubr.f32.mxu0 0.0
        %1457 = vmatmul.mubr.f32.gmra.mrb[0].mxu0 %v1073
        %v1458 = vpop.f32.mrb[0].mxu0
        %v1459 = vadd.f32 %v1379, %v1458
        %v1460 = vpop.f32.mrb[0].mxu0
        %1461 = vmatprep.mubr.f32.mxu0 0.0
        %1462 = vmatmul.mubr.f32.gmra.mrb[0].mxu0 %v1074
        %v1463 = vpop.f32.mrb[0].mxu0
        %v1464 = vadd.f32 %v1384, %v1463
        %v1465 = vpop.f32.mrb[0].mxu0
        %1466 = vmatprep.mubr.f32.mxu0 0.0
        %1467 = vmatmul.mubr.f32.gmra.mrb[0].mxu0 %v1075
        %v1468 = vpop.f32.mrb[0].mxu0
        %v1469 = vadd.f32 %v1389, %v1468
        %v1470 = vpop.f32.mrb[0].mxu0
        %1471 = vdwg.mxu0
        %v1472 = vld [vmem:[%s592 + $0x100] sm:$0xff]
        %v1473 = vld [vmem:[%s592 + $0x108] sm:$0xff]
        %v1474 = vld [vmem:[%s592 + $0x110] sm:$0xff]
        %v1475 = vld [vmem:[%s592 + $0x118] sm:$0xff]
        %v1476 = vld [vmem:[%s592 + $0x120] sm:$0xff]
        %v1477 = vld [vmem:[%s592 + $0x128] sm:$0xff]
        %v1478 = vld [vmem:[%s592 + $0x130] sm:$0xff]
        %v1479 = vld [vmem:[%s592 + $0x138] sm:$0xff]
        %v1480 = vld [vmem:[%s592 + $0x140] sm:$0xff]
        %v1481 = vld [vmem:[%s592 + $0x148] sm:$0xff]
        %v1482 = vld [vmem:[%s592 + $0x150] sm:$0xff]
        %v1483 = vld [vmem:[%s592 + $0x158] sm:$0xff]
        %v1484 = vld [vmem:[%s592 + $0x160] sm:$0xff]
        %v1485 = vld [vmem:[%s592 + $0x168] sm:$0xff]
        %v1486 = vld [vmem:[%s592 + $0x170] sm:$0xff]
        %v1487 = vld [vmem:[%s592 + $0x178] sm:$0xff]
        %1488 = vmatprep.subr.mxu0 0.0
        %1489 = vmatpush1.msra.mxu0 %v1472
        %1490 = vmatprep.subr.mxu0 0.0
        %1491 = vmatpush1.msra.mxu0 %v1473
        %1492 = vmatprep.subr.mxu0 0.0
        %1493 = vmatpush1.msra.mxu0 %v1474
        %1494 = vmatprep.subr.mxu0 0.0
        %1495 = vmatpush1.msra.mxu0 %v1475
        %1496 = vmatprep.subr.mxu0 0.0
        %1497 = vmatpush1.msra.mxu0 %v1476
        %1498 = vmatprep.subr.mxu0 0.0
        %1499 = vmatpush1.msra.mxu0 %v1477
        %1500 = vmatprep.subr.mxu0 0.0
        %1501 = vmatpush1.msra.mxu0 %v1478
        %1502 = vmatprep.subr.mxu0 0.0
        %1503 = vmatpush1.msra.mxu0 %v1479
        %1504 = vmatprep.subr.mxu0 0.0
        %1505 = vmatpush1.msra.mxu0 %v1480
        %1506 = vmatprep.subr.mxu0 0.0
        %1507 = vmatpush1.msra.mxu0 %v1481
        %1508 = vmatprep.subr.mxu0 0.0
        %1509 = vmatpush1.msra.mxu0 %v1482
        %1510 = vmatprep.subr.mxu0 0.0
        %1511 = vmatpush1.msra.mxu0 %v1483
        %1512 = vmatprep.subr.mxu0 0.0
        %1513 = vmatpush1.msra.mxu0 %v1484
        %1514 = vmatprep.subr.mxu0 0.0
        %1515 = vmatpush1.msra.mxu0 %v1485
        %1516 = vmatprep.subr.mxu0 0.0
        %1517 = vmatpush1.msra.mxu0 %v1486
        %1518 = vmatprep.subr.mxu0 0.0
        %1519 = vmatpush1.msra.mxu0 %v1487
        %1520 = vmatprep.subr.mxu0 0.0
        %1521 = vmatpush1.msra.mxu0 0.0
        %1522 = vmatprep.subr.mxu0 0.0
        %1523 = vmatpush1.msra.mxu0 0.0
        %1524 = vmatprep.subr.mxu0 0.0
        %1525 = vmatpush1.msra.mxu0 0.0
        %1526 = vmatprep.subr.mxu0 0.0
        %1527 = vmatpush1.msra.mxu0 0.0
        %1528 = vmatprep.subr.mxu0 0.0
        %1529 = vmatpush1.msra.mxu0 0.0
        %1530 = vmatprep.subr.mxu0 0.0
        %1531 = vmatpush1.msra.mxu0 0.0
        %1532 = vmatprep.subr.mxu0 0.0
        %1533 = vmatpush1.msra.mxu0 0.0
        %1534 = vmatprep.subr.mxu0 0.0
        %1535 = vmatpush1.msra.mxu0 0.0
        %1536 = vmatprep.subr.mxu0 0.0
        %1537 = vmatpush1.msra.mxu0 0.0
        %1538 = vmatprep.subr.mxu0 0.0
        %1539 = vmatpush1.msra.mxu0 0.0
        %1540 = vmatprep.subr.mxu0 0.0
        %1541 = vmatpush1.msra.mxu0 0.0
        %1542 = vmatprep.subr.mxu0 0.0
        %1543 = vmatpush1.msra.mxu0 0.0
        %1544 = vmatprep.subr.mxu0 0.0
        %1545 = vmatpush1.msra.mxu0 0.0
        %1546 = vmatprep.subr.mxu0 0.0
        %1547 = vmatpush1.msra.mxu0 0.0
        %1548 = vmatprep.subr.mxu0 0.0
        %1549 = vmatpush1.msra.mxu0 0.0
        %1550 = vmatprep.subr.mxu0 0.0
        %1551 = vmatpush1.msra.mxu0 0.0
        %1552 = vmatprep.mubr.f32.mxu0 0.0
        %1553 = vmatmul.mubr.f32.gmra.mrb[0].mxu0 %v1197
        %v1554 = vpop.f32.mrb[0].mxu0
        %v1555 = vadd.f32 0.0, %v1554
        %v1556 = vpop.f32.mrb[0].mxu0
        %1557 = vmatprep.mubr.f32.mxu0 0.0
        %1558 = vmatmul.mubr.f32.gmra.mrb[0].mxu0 %v1200
        %v1559 = vpop.f32.mrb[0].mxu0
        %v1560 = vadd.f32 0.0, %v1559
        %v1561 = vpop.f32.mrb[0].mxu0
        %1562 = vmatprep.mubr.f32.mxu0 0.0
        %1563 = vmatmul.mubr.f32.gmra.mrb[0].mxu0 %v1205
        %v1564 = vpop.f32.mrb[0].mxu0
        %v1565 = vadd.f32 0.0, %v1564
        %v1566 = vpop.f32.mrb[0].mxu0
        %1567 = vdwg.mxu0
        %v1568 = vadd.f32 %v1459, %v1555
        %v1569 = vadd.f32 %v1464, %v1560
        %v1570 = vadd.f32 %v1469, %v1565
        %v1571 = vld [vmem:[%s592 + $0x180] sm:$0xff]
        %v1572 = vld [vmem:[%s592 + $0x188] sm:$0xff]
        %v1573 = vld [vmem:[%s592 + $0x190] sm:$0xff]
        %v1574 = vld [vmem:[%s592 + $0x198] sm:$0xff]
        %v1575 = vld [vmem:[%s592 + $0x1a0] sm:$0xff]
        %v1576 = vld [vmem:[%s592 + $0x1a8] sm:$0xff]
        %v1577 = vld [vmem:[%s592 + $0x1b0] sm:$0xff]
        %v1578 = vld [vmem:[%s592 + $0x1b8] sm:$0xff]
        %v1579 = vld [vmem:[%s592 + $0x1c0] sm:$0xff]
        %v1580 = vld [vmem:[%s592 + $0x1c8] sm:$0xff]
        %v1581 = vld [vmem:[%s592 + $0x1d0] sm:$0xff]
        %v1582 = vld [vmem:[%s592 + $0x1d8] sm:$0xff]
        %v1583 = vld [vmem:[%s592 + $0x1e0] sm:$0xff]
        %v1584 = vld [vmem:[%s592 + $0x1e8] sm:$0xff]
        %v1585 = vld [vmem:[%s592 + $0x1f0] sm:$0xff]
        %v1586 = vld [vmem:[%s592 + $0x1f8] sm:$0xff]
        %1587 = vmatprep.subr.mxu0 0.0
        %1588 = vmatpush1.msra.mxu0 %v1571
        %1589 = vmatprep.subr.mxu0 0.0
        %1590 = vmatpush1.msra.mxu0 %v1572
        %1591 = vmatprep.subr.mxu0 0.0
        %1592 = vmatpush1.msra.mxu0 %v1573
        %1593 = vmatprep.subr.mxu0 0.0
        %1594 = vmatpush1.msra.mxu0 %v1574
        %1595 = vmatprep.subr.mxu0 0.0
        %1596 = vmatpush1.msra.mxu0 %v1575
        %1597 = vmatprep.subr.mxu0 0.0
        %1598 = vmatpush1.msra.mxu0 %v1576
        %1599 = vmatprep.subr.mxu0 0.0
        %1600 = vmatpush1.msra.mxu0 %v1577
        %1601 = vmatprep.subr.mxu0 0.0
        %1602 = vmatpush1.msra.mxu0 %v1578
        %1603 = vmatprep.subr.mxu0 0.0
        %1604 = vmatpush1.msra.mxu0 %v1579
        %1605 = vmatprep.subr.mxu0 0.0
        %1606 = vmatpush1.msra.mxu0 %v1580
        %1607 = vmatprep.subr.mxu0 0.0
        %1608 = vmatpush1.msra.mxu0 %v1581
        %1609 = vmatprep.subr.mxu0 0.0
        %1610 = vmatpush1.msra.mxu0 %v1582
        %1611 = vmatprep.subr.mxu0 0.0
        %1612 = vmatpush1.msra.mxu0 %v1583
        %1613 = vmatprep.subr.mxu0 0.0
        %1614 = vmatpush1.msra.mxu0 %v1584
        %1615 = vmatprep.subr.mxu0 0.0
        %1616 = vmatpush1.msra.mxu0 %v1585
        %1617 = vmatprep.subr.mxu0 0.0
        %1618 = vmatpush1.msra.mxu0 %v1586
        %1619 = vmatprep.subr.mxu0 0.0
        %1620 = vmatpush1.msra.mxu0 0.0
        %1621 = vmatprep.subr.mxu0 0.0
        %1622 = vmatpush1.msra.mxu0 0.0
        %1623 = vmatprep.subr.mxu0 0.0
        %1624 = vmatpush1.msra.mxu0 0.0
        %1625 = vmatprep.subr.mxu0 0.0
        %1626 = vmatpush1.msra.mxu0 0.0
        %1627 = vmatprep.subr.mxu0 0.0
        %1628 = vmatpush1.msra.mxu0 0.0
        %1629 = vmatprep.subr.mxu0 0.0
        %1630 = vmatpush1.msra.mxu0 0.0
        %1631 = vmatprep.subr.mxu0 0.0
        %1632 = vmatpush1.msra.mxu0 0.0
        %1633 = vmatprep.subr.mxu0 0.0
        %1634 = vmatpush1.msra.mxu0 0.0
        %1635 = vmatprep.subr.mxu0 0.0
        %1636 = vmatpush1.msra.mxu0 0.0
        %1637 = vmatprep.subr.mxu0 0.0
        %1638 = vmatpush1.msra.mxu0 0.0
        %1639 = vmatprep.subr.mxu0 0.0
        %1640 = vmatpush1.msra.mxu0 0.0
        %1641 = vmatprep.subr.mxu0 0.0
        %1642 = vmatpush1.msra.mxu0 0.0
        %1643 = vmatprep.subr.mxu0 0.0
        %1644 = vmatpush1.msra.mxu0 0.0
        %1645 = vmatprep.subr.mxu0 0.0
        %1646 = vmatpush1.msra.mxu0 0.0
        %1647 = vmatprep.subr.mxu0 0.0
        %1648 = vmatpush1.msra.mxu0 0.0
        %1649 = vmatprep.subr.mxu0 0.0
        %1650 = vmatpush1.msra.mxu0 0.0
        %1651 = vmatprep.mubr.f32.mxu0 0.0
        %1652 = vmatmul.mubr.f32.gmra.mrb[0].mxu0 %v1267
        %v1653 = vpop.f32.mrb[0].mxu0
        %v1654 = vadd.f32 0.0, %v1653
        %v1655 = vpop.f32.mrb[0].mxu0
        %1656 = vmatprep.mubr.f32.mxu0 0.0
        %1657 = vmatmul.mubr.f32.gmra.mrb[0].mxu0 %v1270
        %v1658 = vpop.f32.mrb[0].mxu0
        %v1659 = vadd.f32 0.0, %v1658
        %v1660 = vpop.f32.mrb[0].mxu0
        %1661 = vmatprep.mubr.f32.mxu0 0.0
        %1662 = vmatmul.mubr.f32.gmra.mrb[0].mxu0 %v1275
        %v1663 = vpop.f32.mrb[0].mxu0
        %v1664 = vadd.f32 0.0, %v1663
        %v1665 = vpop.f32.mrb[0].mxu0
        %1666 = vdwg.mxu0
        %v1667 = vadd.f32 %v1568, %v1654
        %v1668 = vadd.f32 %v1569, %v1659
        %v1669 = vadd.f32 %v1570, %v1664
        %v1670 = vld [vmem:[%s677] sm:$0x1]
        %v1671 = vlaneseq
        %v1672 = vshrl.u32 %v1671, 7
        %v1673 = vsub.s32 0, %v1672
        %v1674 = vrot.slane %v1670, %v1673
        %v1675 = vadd.f32 %v1667, %v1674
        %v1676 = vadd.f32 %v1668, %v1674
        %v1677 = vadd.f32 %v1669, %v1674
        %v1678 = vld [vmem:[%s677 + $0x1] sm:$0x1]
        %v1679 = vld [vmem:[%s677 + $0x2] sm:$0x1]
        %1680 = vadd.xlane.f32.xlu0 %v1675
        %v1681 = vpop.xlane.xlu0 %1680
        %1682 = vadd.xlane.f32.xlu0 %v1676
        %v1683 = vpop.xlane.xlu0 %1682
        %1684 = vadd.xlane.f32.xlu0 %v1677
        %v1685 = vpop.xlane.xlu0 %1684
        %v1686 = vrcp.pop 128.0
        %v1687 = vmul.f32 %v1681, %v1686
        %v1688 = vmul.f32 %v1683, %v1686
        %v1689 = vmul.f32 %v1685, %v1686
        %v1690 = vsub.f32 %v1675, %v1687
        %v1691 = vsub.f32 %v1676, %v1688
        %v1692 = vsub.f32 %v1677, %v1689
        %v1693 = vmul.f32 %v1690, %v1690
        %v1694 = vmul.f32 %v1691, %v1691
        %v1695 = vmul.f32 %v1692, %v1692
        %1696 = vadd.xlane.f32.xlu0 %v1693
        %v1697 = vpop.xlane.xlu0 %1696
        %1698 = vadd.xlane.f32.xlu0 %v1694
        %v1699 = vpop.xlane.xlu0 %1698
        %1700 = vadd.xlane.f32.xlu0 %v1695
        %v1701 = vpop.xlane.xlu0 %1700
        %v1702 = vmul.f32 %v1697, %v1686
        %v1703 = vmul.f32 %v1699, %v1686
        %v1704 = vmul.f32 %v1701, %v1686
        %v1705 = vadd.f32 %v1702, 1e-06
        %v1706 = vadd.f32 %v1703, 1e-06
        %v1707 = vadd.f32 %v1704, 1e-06
        %v1708 = vrsqrt.pop %v1705
        %v1709 = vrsqrt.pop %v1706
        %v1710 = vrsqrt.pop %v1707
        %v1711 = vmul.f32 %v1690, %v1708
        %v1712 = vmul.f32 %v1691, %v1709
        %v1713 = vmul.f32 %v1692, %v1710
        %v1714 = vlaneseq
        %v1715 = vshrl.u32 %v1714, 7
        %v1716 = vsub.s32 0, %v1715
        %v1717 = vrot.slane %v1678, %v1716
        %v1718 = vmul.f32 %v1711, %v1717
        %v1719 = vmul.f32 %v1712, %v1717
        %v1720 = vmul.f32 %v1713, %v1717
        %v1721 = vlaneseq
        %v1722 = vshrl.u32 %v1721, 7
        %v1723 = vsub.s32 0, %v1722
        %v1724 = vrot.slane %v1679, %v1723
        %v1725 = vadd.f32 %v1718, %v1724
        %v1726 = vadd.f32 %v1719, %v1724
        %v1727 = vadd.f32 %v1720, %v1724
        %v1728 = vmax.f32 %v1725, 0.0
        %v1729 = vmax.f32 %v1726, 0.0
        %v1730 = vmax.f32 %v1727, 0.0
        %1731 = vst [vmem:[#allocation3] sm:$0xff] %v1728
        %1732 = vst [vmem:[#allocation3 + $0x8] sm:$0xff] %v1729
        %1733 = vst [vmem:[#allocation3 + $0x10] sm:$0xff] %v1730
        %v1734 = vpack.c.bf16 %v1729, %v1728
        %v1735 = vpack.c.bf16 %v1730, %v1730
        %v1736 = vld [vmem:[#allocation7] sm:$0xff]
        %vm1737 = vcmask 195584
        %v1739 = vsel %vm1737, %v1736, 0
        %v1742 = vsel %vm1228, %v1735, 0
        %1744 = vmatprep.subr.bf16.mxu0 0
        %1745 = vmatpush1.bf16.msra.mxu0 %v1734
        %1746 = vmatprep.subr.bf16.mxu0 0
        %1747 = vmatpush1.bf16.msra.mxu0 %v1742
        %1748 = vmatprep.subr.bf16.mxu0 0
        %1749 = vmatpush1.bf16.msra.mxu0 0
        %1750 = vmatprep.subr.bf16.mxu0 0
        %1751 = vmatpush1.bf16.msra.mxu0 0
        %1752 = vmatprep.subr.bf16.mxu0 0
        %1753 = vmatpush1.bf16.msra.mxu0 0
        %1754 = vmatprep.subr.bf16.mxu0 0
        %1755 = vmatpush1.bf16.msra.mxu0 0
        %1756 = vmatprep.subr.bf16.mxu0 0
        %1757 = vmatpush1.bf16.msra.mxu0 0
        %1758 = vmatprep.subr.bf16.mxu0 0
        %1759 = vmatpush1.bf16.msra.mxu0 0
        %1760 = vmatprep.subr.bf16.mxu0 0
        %1761 = vmatpush1.bf16.msra.mxu0 0
        %1762 = vmatprep.subr.bf16.mxu0 0
        %1763 = vmatpush1.bf16.msra.mxu0 0
        %1764 = vmatprep.subr.bf16.mxu0 0
        %1765 = vmatpush1.bf16.msra.mxu0 0
        %1766 = vmatprep.subr.bf16.mxu0 0
        %1767 = vmatpush1.bf16.msra.mxu0 0
        %1768 = vmatprep.subr.bf16.mxu0 0
        %1769 = vmatpush1.bf16.msra.mxu0 0
        %1770 = vmatprep.subr.bf16.mxu0 0
        %1771 = vmatpush1.bf16.msra.mxu0 0
        %1772 = vmatprep.subr.bf16.mxu0 0
        %1773 = vmatpush1.bf16.msra.mxu0 0
        %1774 = vmatprep.subr.bf16.mxu0 0
        %1775 = vmatpush1.bf16.msra.mxu0 0
        %1776 = vmatprep.mubr.bf16.mxu0 0
        %1777 = vmatmul.mubr.bf16.gmra.mrb[0].mxu0 %v1739
        %v1778 = vpop.f32.mrb[0].mxu0
        %v1779 = vadd.f32 0.0, %v1778
        %v1780 = vpop.f32.mrb[0].mxu0
        %v1781 = vpop.f32.mrb[0].mxu0
        %v1782 = vadd.f32 0.0, %v1781
        %v1783 = vpop.f32.mrb[0].mxu0
        %1784 = vdwg.mxu0
        %v1785 = vld [vmem:[#allocation8] sm:$0xff]
        %v1787 = vsel %vm1737, %v1785, 0
        %1789 = vmatprep.subr.bf16.mxu0 0
        %1790 = vmatpush1.bf16.msra.mxu0 %v1734
        %1791 = vmatprep.subr.bf16.mxu0 0
        %1792 = vmatpush1.bf16.msra.mxu0 %v1742
        %1793 = vmatprep.subr.bf16.mxu0 0
        %1794 = vmatpush1.bf16.msra.mxu0 0
        %1795 = vmatprep.subr.bf16.mxu0 0
        %1796 = vmatpush1.bf16.msra.mxu0 0
        %1797 = vmatprep.subr.bf16.mxu0 0
        %1798 = vmatpush1.bf16.msra.mxu0 0
        %1799 = vmatprep.subr.bf16.mxu0 0
        %1800 = vmatpush1.bf16.msra.mxu0 0
        %1801 = vmatprep.subr.bf16.mxu0 0
        %1802 = vmatpush1.bf16.msra.mxu0 0
        %1803 = vmatprep.subr.bf16.mxu0 0
        %1804 = vmatpush1.bf16.msra.mxu0 0
        %1805 = vmatprep.subr.bf16.mxu0 0
        %1806 = vmatpush1.bf16.msra.mxu0 0
        %1807 = vmatprep.subr.bf16.mxu0 0
        %1808 = vmatpush1.bf16.msra.mxu0 0
        %1809 = vmatprep.subr.bf16.mxu0 0
        %1810 = vmatpush1.bf16.msra.mxu0 0
        %1811 = vmatprep.subr.bf16.mxu0 0
        %1812 = vmatpush1.bf16.msra.mxu0 0
        %1813 = vmatprep.subr.bf16.mxu0 0
        %1814 = vmatpush1.bf16.msra.mxu0 0
        %1815 = vmatprep.subr.bf16.mxu0 0
        %1816 = vmatpush1.bf16.msra.mxu0 0
        %1817 = vmatprep.subr.bf16.mxu0 0
        %1818 = vmatpush1.bf16.msra.mxu0 0
        %1819 = vmatprep.subr.bf16.mxu0 0
        %1820 = vmatpush1.bf16.msra.mxu0 0
        %1821 = vmatprep.mubr.bf16.mxu0 0
        %1822 = vmatmul.mubr.bf16.gmra.mrb[0].mxu0 %v1787
        %v1823 = vpop.f32.mrb[0].mxu0
        %v1824 = vadd.f32 0.0, %v1823
        %v1825 = vpop.f32.mrb[0].mxu0
        %v1826 = vpop.f32.mrb[0].mxu0
        %v1827 = vadd.f32 0.0, %v1826
        %v1828 = vpop.f32.mrb[0].mxu0
        %1829 = vdwg.mxu0
        %v1830 = vld [vmem:[#allocation10] sm:$0xff]
        %v1832 = vsel %vm1221, %v1830, 0
        %1834 = vmatprep.subr.bf16.mxu0 0
        %1835 = vmatpush1.bf16.msra.mxu0 %v1230
        %1836 = vmatprep.subr.bf16.mxu0 0
        %1837 = vmatpush1.bf16.msra.mxu0 0
        %1838 = vmatprep.subr.bf16.mxu0 0
        %1839 = vmatpush1.bf16.msra.mxu0 0
        %1840 = vmatprep.subr.bf16.mxu0 0
        %1841 = vmatpush1.bf16.msra.mxu0 0
        %1842 = vmatprep.subr.bf16.mxu0 0
        %1843 = vmatpush1.bf16.msra.mxu0 0
        %1844 = vmatprep.subr.bf16.mxu0 0
        %1845 = vmatpush1.bf16.msra.mxu0 0
        %1846 = vmatprep.subr.bf16.mxu0 0
        %1847 = vmatpush1.bf16.msra.mxu0 0
        %1848 = vmatprep.subr.bf16.mxu0 0
        %1849 = vmatpush1.bf16.msra.mxu0 0
        %1850 = vmatprep.subr.bf16.mxu0 0
        %1851 = vmatpush1.bf16.msra.mxu0 0
        %1852 = vmatprep.subr.bf16.mxu0 0
        %1853 = vmatpush1.bf16.msra.mxu0 0
        %1854 = vmatprep.subr.bf16.mxu0 0
        %1855 = vmatpush1.bf16.msra.mxu0 0
        %1856 = vmatprep.subr.bf16.mxu0 0
        %1857 = vmatpush1.bf16.msra.mxu0 0
        %1858 = vmatprep.subr.bf16.mxu0 0
        %1859 = vmatpush1.bf16.msra.mxu0 0
        %1860 = vmatprep.subr.bf16.mxu0 0
        %1861 = vmatpush1.bf16.msra.mxu0 0
        %1862 = vmatprep.subr.bf16.mxu0 0
        %1863 = vmatpush1.bf16.msra.mxu0 0
        %1864 = vmatprep.subr.bf16.mxu0 0
        %1865 = vmatpush1.bf16.msra.mxu0 0
        %1866 = vmatprep.mubr.bf16.mxu0 0
        %1867 = vmatmul.mubr.bf16.gmra.mrb[0].mxu0 %v1832
        %v1868 = vpop.f32.mrb[0].mxu0
        %v1869 = vadd.f32 0.0, %v1868
        %v1870 = vpop.f32.mrb[0].mxu0
        %v1871 = vpop.f32.mrb[0].mxu0
        %v1872 = vadd.f32 0.0, %v1871
        %v1873 = vpop.f32.mrb[0].mxu0
        %1874 = vdwg.mxu0
        %v1875 = vld [vmem:[%s601] sm:$0xff]
        %v1876 = vld [vmem:[%s601 + $0x8] sm:$0xff]
        %v1877 = vld [vmem:[%s601 + $0x10] sm:$0xff]
        %v1878 = vld [vmem:[%s601 + $0x18] sm:$0xff]
        %v1879 = vld [vmem:[%s601 + $0x20] sm:$0xff]
        %v1880 = vld [vmem:[%s601 + $0x28] sm:$0xff]
        %v1881 = vld [vmem:[%s601 + $0x30] sm:$0xff]
        %v1882 = vld [vmem:[%s601 + $0x38] sm:$0xff]
        %v1883 = vld [vmem:[%s601 + $0x40] sm:$0xff]
        %v1884 = vld [vmem:[%s601 + $0x48] sm:$0xff]
        %v1885 = vld [vmem:[%s601 + $0x50] sm:$0xff]
        %v1886 = vld [vmem:[%s601 + $0x58] sm:$0xff]
        %v1887 = vld [vmem:[%s601 + $0x60] sm:$0xff]
        %v1888 = vld [vmem:[%s601 + $0x68] sm:$0xff]
        %v1889 = vld [vmem:[%s601 + $0x70] sm:$0xff]
        %v1890 = vld [vmem:[%s601 + $0x78] sm:$0xff]
        %v1891 = vld [vmem:[%s601 + $0x80] sm:$0xff]
        %v1892 = vld [vmem:[%s601 + $0x88] sm:$0xff]
        %v1893 = vld [vmem:[%s601 + $0x90] sm:$0xff]
        %v1894 = vld [vmem:[%s601 + $0x98] sm:$0xff]
        %v1895 = vld [vmem:[%s601 + $0xa0] sm:$0xff]
        %v1896 = vld [vmem:[%s601 + $0xa8] sm:$0xff]
        %v1897 = vld [vmem:[%s601 + $0xb0] sm:$0xff]
        %v1898 = vld [vmem:[%s601 + $0xb8] sm:$0xff]
        %v1899 = vld [vmem:[%s601 + $0xc0] sm:$0xff]
        %v1900 = vld [vmem:[%s601 + $0xc8] sm:$0xff]
        %v1901 = vld [vmem:[%s601 + $0xd0] sm:$0xff]
        %v1902 = vld [vmem:[%s601 + $0xd8] sm:$0xff]
        %v1903 = vld [vmem:[%s601 + $0xe0] sm:$0xff]
        %v1904 = vld [vmem:[%s601 + $0xe8] sm:$0xff]
        %v1905 = vld [vmem:[%s601 + $0xf0] sm:$0xff]
        %v1906 = vld [vmem:[%s601 + $0xf8] sm:$0xff]
        %1907 = vmatprep.subr.mxu0 0.0
        %1908 = vmatpush1.msra.mxu0 %v1891
        %1909 = vmatprep.subr.mxu0 0.0
        %1910 = vmatpush1.msra.mxu0 %v1892
        %1911 = vmatprep.subr.mxu0 0.0
        %1912 = vmatpush1.msra.mxu0 %v1893
        %1913 = vmatprep.subr.mxu0 0.0
        %1914 = vmatpush1.msra.mxu0 %v1894
        %1915 = vmatprep.subr.mxu0 0.0
        %1916 = vmatpush1.msra.mxu0 %v1895
        %1917 = vmatprep.subr.mxu0 0.0
        %1918 = vmatpush1.msra.mxu0 %v1896
        %1919 = vmatprep.subr.mxu0 0.0
        %1920 = vmatpush1.msra.mxu0 %v1897
        %1921 = vmatprep.subr.mxu0 0.0
        %1922 = vmatpush1.msra.mxu0 %v1898
        %1923 = vmatprep.subr.mxu0 0.0
        %1924 = vmatpush1.msra.mxu0 %v1899
        %1925 = vmatprep.subr.mxu0 0.0
        %1926 = vmatpush1.msra.mxu0 %v1900
        %1927 = vmatprep.subr.mxu0 0.0
        %1928 = vmatpush1.msra.mxu0 %v1901
        %1929 = vmatprep.subr.mxu0 0.0
        %1930 = vmatpush1.msra.mxu0 %v1902
        %1931 = vmatprep.subr.mxu0 0.0
        %1932 = vmatpush1.msra.mxu0 %v1903
        %1933 = vmatprep.subr.mxu0 0.0
        %1934 = vmatpush1.msra.mxu0 %v1904
        %1935 = vmatprep.subr.mxu0 0.0
        %1936 = vmatpush1.msra.mxu0 %v1905
        %1937 = vmatprep.subr.mxu0 0.0
        %1938 = vmatpush1.msra.mxu0 %v1906
        %1939 = vmatprep.subr.mxu0 0.0
        %1940 = vmatpush1.msra.mxu0 0.0
        %1941 = vmatprep.subr.mxu0 0.0
        %1942 = vmatpush1.msra.mxu0 0.0
        %1943 = vmatprep.subr.mxu0 0.0
        %1944 = vmatpush1.msra.mxu0 0.0
        %1945 = vmatprep.subr.mxu0 0.0
        %1946 = vmatpush1.msra.mxu0 0.0
        %1947 = vmatprep.subr.mxu0 0.0
        %1948 = vmatpush1.msra.mxu0 0.0
        %1949 = vmatprep.subr.mxu0 0.0
        %1950 = vmatpush1.msra.mxu0 0.0
        %1951 = vmatprep.subr.mxu0 0.0
        %1952 = vmatpush1.msra.mxu0 0.0
        %1953 = vmatprep.subr.mxu0 0.0
        %1954 = vmatpush1.msra.mxu0 0.0
        %1955 = vmatprep.subr.mxu0 0.0
        %1956 = vmatpush1.msra.mxu0 0.0
        %1957 = vmatprep.subr.mxu0 0.0
        %1958 = vmatpush1.msra.mxu0 0.0
        %1959 = vmatprep.subr.mxu0 0.0
        %1960 = vmatpush1.msra.mxu0 0.0
        %1961 = vmatprep.subr.mxu0 0.0
        %1962 = vmatpush1.msra.mxu0 0.0
        %1963 = vmatprep.subr.mxu0 0.0
        %1964 = vmatpush1.msra.mxu0 0.0
        %1965 = vmatprep.subr.mxu0 0.0
        %1966 = vmatpush1.msra.mxu0 0.0
        %1967 = vmatprep.subr.mxu0 0.0
        %1968 = vmatpush1.msra.mxu0 0.0
        %1969 = vmatprep.subr.mxu0 0.0
        %1970 = vmatpush1.msra.mxu0 0.0
        %1971 = vmatprep.mubr.f32.mxu0 0.0
        %1972 = vmatmul.mubr.f32.gmra.mrb[0].mxu0 %v1779
        %v1973 = vpop.f32.mrb[0].mxu0
        %v1974 = vadd.f32 0.0, %v1973
        %v1975 = vpop.f32.mrb[0].mxu0
        %1976 = vmatprep.mubr.f32.mxu0 0.0
        %1977 = vmatmul.mubr.f32.gmra.mrb[0].mxu0 %v1782
        %v1978 = vpop.f32.mrb[0].mxu0
        %v1979 = vadd.f32 0.0, %v1978
        %v1980 = vpop.f32.mrb[0].mxu0
        %1981 = vdwg.mxu0
        %1982 = vmatprep.subr.mxu0 0.0
        %1983 = vmatpush1.msra.mxu0 %v1875
        %1984 = vmatprep.subr.mxu0 0.0
        %1985 = vmatpush1.msra.mxu0 %v1876
        %1986 = vmatprep.subr.mxu0 0.0
        %1987 = vmatpush1.msra.mxu0 %v1877
        %1988 = vmatprep.subr.mxu0 0.0
        %1989 = vmatpush1.msra.mxu0 %v1878
        %1990 = vmatprep.subr.mxu0 0.0
        %1991 = vmatpush1.msra.mxu0 %v1879
        %1992 = vmatprep.subr.mxu0 0.0
        %1993 = vmatpush1.msra.mxu0 %v1880
        %1994 = vmatprep.subr.mxu0 0.0
        %1995 = vmatpush1.msra.mxu0 %v1881
        %1996 = vmatprep.subr.mxu0 0.0
        %1997 = vmatpush1.msra.mxu0 %v1882
        %1998 = vmatprep.subr.mxu0 0.0
        %1999 = vmatpush1.msra.mxu0 %v1883
        %2000 = vmatprep.subr.mxu0 0.0
        %2001 = vmatpush1.msra.mxu0 %v1884
        %2002 = vmatprep.subr.mxu0 0.0
        %2003 = vmatpush1.msra.mxu0 %v1885
        %2004 = vmatprep.subr.mxu0 0.0
        %2005 = vmatpush1.msra.mxu0 %v1886
        %2006 = vmatprep.subr.mxu0 0.0
        %2007 = vmatpush1.msra.mxu0 %v1887
        %2008 = vmatprep.subr.mxu0 0.0
        %2009 = vmatpush1.msra.mxu0 %v1888
        %2010 = vmatprep.subr.mxu0 0.0
        %2011 = vmatpush1.msra.mxu0 %v1889
        %2012 = vmatprep.subr.mxu0 0.0
        %2013 = vmatpush1.msra.mxu0 %v1890
        %2014 = vmatprep.subr.mxu0 0.0
        %2015 = vmatpush1.msra.mxu0 0.0
        %2016 = vmatprep.subr.mxu0 0.0
        %2017 = vmatpush1.msra.mxu0 0.0
        %2018 = vmatprep.subr.mxu0 0.0
        %2019 = vmatpush1.msra.mxu0 0.0
        %2020 = vmatprep.subr.mxu0 0.0
        %2021 = vmatpush1.msra.mxu0 0.0
        %2022 = vmatprep.subr.mxu0 0.0
        %2023 = vmatpush1.msra.mxu0 0.0
        %2024 = vmatprep.subr.mxu0 0.0
        %2025 = vmatpush1.msra.mxu0 0.0
        %2026 = vmatprep.subr.mxu0 0.0
        %2027 = vmatpush1.msra.mxu0 0.0
        %2028 = vmatprep.subr.mxu0 0.0
        %2029 = vmatpush1.msra.mxu0 0.0
        %2030 = vmatprep.subr.mxu0 0.0
        %2031 = vmatpush1.msra.mxu0 0.0
        %2032 = vmatprep.subr.mxu0 0.0
        %2033 = vmatpush1.msra.mxu0 0.0
        %2034 = vmatprep.subr.mxu0 0.0
        %2035 = vmatpush1.msra.mxu0 0.0
        %2036 = vmatprep.subr.mxu0 0.0
        %2037 = vmatpush1.msra.mxu0 0.0
        %2038 = vmatprep.subr.mxu0 0.0
        %2039 = vmatpush1.msra.mxu0 0.0
        %2040 = vmatprep.subr.mxu0 0.0
        %2041 = vmatpush1.msra.mxu0 0.0
        %2042 = vmatprep.subr.mxu0 0.0
        %2043 = vmatpush1.msra.mxu0 0.0
        %2044 = vmatprep.subr.mxu0 0.0
        %2045 = vmatpush1.msra.mxu0 0.0
        %2046 = vmatprep.mubr.f32.mxu0 0.0
        %2047 = vmatmul.mubr.f32.gmra.mrb[0].mxu0 %v1071
        %v2048 = vpop.f32.mrb[0].mxu0
        %v2049 = vadd.f32 %v1974, %v2048
        %v2050 = vpop.f32.mrb[0].mxu0
        %2051 = vmatprep.mubr.f32.mxu0 0.0
        %2052 = vmatmul.mubr.f32.gmra.mrb[0].mxu0 %v1072
        %v2053 = vpop.f32.mrb[0].mxu0
        %v2054 = vadd.f32 %v1979, %v2053
        %v2055 = vpop.f32.mrb[0].mxu0
        %2056 = vdwg.mxu0
        %v2057 = vld [vmem:[%s601 + $0x100] sm:$0xff]
        %v2058 = vld [vmem:[%s601 + $0x108] sm:$0xff]
        %v2059 = vld [vmem:[%s601 + $0x110] sm:$0xff]
        %v2060 = vld [vmem:[%s601 + $0x118] sm:$0xff]
        %v2061 = vld [vmem:[%s601 + $0x120] sm:$0xff]
        %v2062 = vld [vmem:[%s601 + $0x128] sm:$0xff]
        %v2063 = vld [vmem:[%s601 + $0x130] sm:$0xff]
        %v2064 = vld [vmem:[%s601 + $0x138] sm:$0xff]
        %v2065 = vld [vmem:[%s601 + $0x140] sm:$0xff]
        %v2066 = vld [vmem:[%s601 + $0x148] sm:$0xff]
        %v2067 = vld [vmem:[%s601 + $0x150] sm:$0xff]
        %v2068 = vld [vmem:[%s601 + $0x158] sm:$0xff]
        %v2069 = vld [vmem:[%s601 + $0x160] sm:$0xff]
        %v2070 = vld [vmem:[%s601 + $0x168] sm:$0xff]
        %v2071 = vld [vmem:[%s601 + $0x170] sm:$0xff]
        %v2072 = vld [vmem:[%s601 + $0x178] sm:$0xff]
        %2073 = vmatprep.subr.mxu0 0.0
        %2074 = vmatpush1.msra.mxu0 %v2057
        %2075 = vmatprep.subr.mxu0 0.0
        %2076 = vmatpush1.msra.mxu0 %v2058
        %2077 = vmatprep.subr.mxu0 0.0
        %2078 = vmatpush1.msra.mxu0 %v2059
        %2079 = vmatprep.subr.mxu0 0.0
        %2080 = vmatpush1.msra.mxu0 %v2060
        %2081 = vmatprep.subr.mxu0 0.0
        %2082 = vmatpush1.msra.mxu0 %v2061
        %2083 = vmatprep.subr.mxu0 0.0
        %2084 = vmatpush1.msra.mxu0 %v2062
        %2085 = vmatprep.subr.mxu0 0.0
        %2086 = vmatpush1.msra.mxu0 %v2063
        %2087 = vmatprep.subr.mxu0 0.0
        %2088 = vmatpush1.msra.mxu0 %v2064
        %2089 = vmatprep.subr.mxu0 0.0
        %2090 = vmatpush1.msra.mxu0 %v2065
        %2091 = vmatprep.subr.mxu0 0.0
        %2092 = vmatpush1.msra.mxu0 %v2066
        %2093 = vmatprep.subr.mxu0 0.0
        %2094 = vmatpush1.msra.mxu0 %v2067
        %2095 = vmatprep.subr.mxu0 0.0
        %2096 = vmatpush1.msra.mxu0 %v2068
        %2097 = vmatprep.subr.mxu0 0.0
        %2098 = vmatpush1.msra.mxu0 %v2069
        %2099 = vmatprep.subr.mxu0 0.0
        %2100 = vmatpush1.msra.mxu0 %v2070
        %2101 = vmatprep.subr.mxu0 0.0
        %2102 = vmatpush1.msra.mxu0 %v2071
        %2103 = vmatprep.subr.mxu0 0.0
        %2104 = vmatpush1.msra.mxu0 %v2072
        %2105 = vmatprep.subr.mxu0 0.0
        %2106 = vmatpush1.msra.mxu0 0.0
        %2107 = vmatprep.subr.mxu0 0.0
        %2108 = vmatpush1.msra.mxu0 0.0
        %2109 = vmatprep.subr.mxu0 0.0
        %2110 = vmatpush1.msra.mxu0 0.0
        %2111 = vmatprep.subr.mxu0 0.0
        %2112 = vmatpush1.msra.mxu0 0.0
        %2113 = vmatprep.subr.mxu0 0.0
        %2114 = vmatpush1.msra.mxu0 0.0
        %2115 = vmatprep.subr.mxu0 0.0
        %2116 = vmatpush1.msra.mxu0 0.0
        %2117 = vmatprep.subr.mxu0 0.0
        %2118 = vmatpush1.msra.mxu0 0.0
        %2119 = vmatprep.subr.mxu0 0.0
        %2120 = vmatpush1.msra.mxu0 0.0
        %2121 = vmatprep.subr.mxu0 0.0
        %2122 = vmatpush1.msra.mxu0 0.0
        %2123 = vmatprep.subr.mxu0 0.0
        %2124 = vmatpush1.msra.mxu0 0.0
        %2125 = vmatprep.subr.mxu0 0.0
        %2126 = vmatpush1.msra.mxu0 0.0
        %2127 = vmatprep.subr.mxu0 0.0
        %2128 = vmatpush1.msra.mxu0 0.0
        %2129 = vmatprep.subr.mxu0 0.0
        %2130 = vmatpush1.msra.mxu0 0.0
        %2131 = vmatprep.subr.mxu0 0.0
        %2132 = vmatpush1.msra.mxu0 0.0
        %2133 = vmatprep.subr.mxu0 0.0
        %2134 = vmatpush1.msra.mxu0 0.0
        %2135 = vmatprep.subr.mxu0 0.0
        %2136 = vmatpush1.msra.mxu0 0.0
        %2137 = vmatprep.mubr.f32.mxu0 0.0
        %2138 = vmatmul.mubr.f32.gmra.mrb[0].mxu0 %v1824
        %v2139 = vpop.f32.mrb[0].mxu0
        %v2140 = vadd.f32 0.0, %v2139
        %v2141 = vpop.f32.mrb[0].mxu0
        %2142 = vmatprep.mubr.f32.mxu0 0.0
        %2143 = vmatmul.mubr.f32.gmra.mrb[0].mxu0 %v1827
        %v2144 = vpop.f32.mrb[0].mxu0
        %v2145 = vadd.f32 0.0, %v2144
        %v2146 = vpop.f32.mrb[0].mxu0
        %2147 = vdwg.mxu0
        %v2148 = vadd.f32 %v2049, %v2140
        %v2149 = vadd.f32 %v2054, %v2145
        %v2150 = vld [vmem:[%s601 + $0x180] sm:$0xff]
        %v2151 = vld [vmem:[%s601 + $0x188] sm:$0xff]
        %v2152 = vld [vmem:[%s601 + $0x190] sm:$0xff]
        %v2153 = vld [vmem:[%s601 + $0x198] sm:$0xff]
        %v2154 = vld [vmem:[%s601 + $0x1a0] sm:$0xff]
        %v2155 = vld [vmem:[%s601 + $0x1a8] sm:$0xff]
        %v2156 = vld [vmem:[%s601 + $0x1b0] sm:$0xff]
        %v2157 = vld [vmem:[%s601 + $0x1b8] sm:$0xff]
        %v2158 = vld [vmem:[%s601 + $0x1c0] sm:$0xff]
        %v2159 = vld [vmem:[%s601 + $0x1c8] sm:$0xff]
        %v2160 = vld [vmem:[%s601 + $0x1d0] sm:$0xff]
        %v2161 = vld [vmem:[%s601 + $0x1d8] sm:$0xff]
        %v2162 = vld [vmem:[%s601 + $0x1e0] sm:$0xff]
        %v2163 = vld [vmem:[%s601 + $0x1e8] sm:$0xff]
        %v2164 = vld [vmem:[%s601 + $0x1f0] sm:$0xff]
        %v2165 = vld [vmem:[%s601 + $0x1f8] sm:$0xff]
        %2166 = vmatprep.subr.mxu0 0.0
        %2167 = vmatpush1.msra.mxu0 %v2150
        %2168 = vmatprep.subr.mxu0 0.0
        %2169 = vmatpush1.msra.mxu0 %v2151
        %2170 = vmatprep.subr.mxu0 0.0
        %2171 = vmatpush1.msra.mxu0 %v2152
        %2172 = vmatprep.subr.mxu0 0.0
        %2173 = vmatpush1.msra.mxu0 %v2153
        %2174 = vmatprep.subr.mxu0 0.0
        %2175 = vmatpush1.msra.mxu0 %v2154
        %2176 = vmatprep.subr.mxu0 0.0
        %2177 = vmatpush1.msra.mxu0 %v2155
        %2178 = vmatprep.subr.mxu0 0.0
        %2179 = vmatpush1.msra.mxu0 %v2156
        %2180 = vmatprep.subr.mxu0 0.0
        %2181 = vmatpush1.msra.mxu0 %v2157
        %2182 = vmatprep.subr.mxu0 0.0
        %2183 = vmatpush1.msra.mxu0 %v2158
        %2184 = vmatprep.subr.mxu0 0.0
        %2185 = vmatpush1.msra.mxu0 %v2159
        %2186 = vmatprep.subr.mxu0 0.0
        %2187 = vmatpush1.msra.mxu0 %v2160
        %2188 = vmatprep.subr.mxu0 0.0
        %2189 = vmatpush1.msra.mxu0 %v2161
        %2190 = vmatprep.subr.mxu0 0.0
        %2191 = vmatpush1.msra.mxu0 %v2162
        %2192 = vmatprep.subr.mxu0 0.0
        %2193 = vmatpush1.msra.mxu0 %v2163
        %2194 = vmatprep.subr.mxu0 0.0
        %2195 = vmatpush1.msra.mxu0 %v2164
        %2196 = vmatprep.subr.mxu0 0.0
        %2197 = vmatpush1.msra.mxu0 %v2165
        %2198 = vmatprep.subr.mxu0 0.0
        %2199 = vmatpush1.msra.mxu0 0.0
        %2200 = vmatprep.subr.mxu0 0.0
        %2201 = vmatpush1.msra.mxu0 0.0
        %2202 = vmatprep.subr.mxu0 0.0
        %2203 = vmatpush1.msra.mxu0 0.0
        %2204 = vmatprep.subr.mxu0 0.0
        %2205 = vmatpush1.msra.mxu0 0.0
        %2206 = vmatprep.subr.mxu0 0.0
        %2207 = vmatpush1.msra.mxu0 0.0
        %2208 = vmatprep.subr.mxu0 0.0
        %2209 = vmatpush1.msra.mxu0 0.0
        %2210 = vmatprep.subr.mxu0 0.0
        %2211 = vmatpush1.msra.mxu0 0.0
        %2212 = vmatprep.subr.mxu0 0.0
        %2213 = vmatpush1.msra.mxu0 0.0
        %2214 = vmatprep.subr.mxu0 0.0
        %2215 = vmatpush1.msra.mxu0 0.0
        %2216 = vmatprep.subr.mxu0 0.0
        %2217 = vmatpush1.msra.mxu0 0.0
        %2218 = vmatprep.subr.mxu0 0.0
        %2219 = vmatpush1.msra.mxu0 0.0
        %2220 = vmatprep.subr.mxu0 0.0
        %2221 = vmatpush1.msra.mxu0 0.0
        %2222 = vmatprep.subr.mxu0 0.0
        %2223 = vmatpush1.msra.mxu0 0.0
        %2224 = vmatprep.subr.mxu0 0.0
        %2225 = vmatpush1.msra.mxu0 0.0
        %2226 = vmatprep.subr.mxu0 0.0
        %2227 = vmatpush1.msra.mxu0 0.0
        %2228 = vmatprep.subr.mxu0 0.0
        %2229 = vmatpush1.msra.mxu0 0.0
        %2230 = vmatprep.mubr.f32.mxu0 0.0
        %2231 = vmatmul.mubr.f32.gmra.mrb[0].mxu0 %v1869
        %v2232 = vpop.f32.mrb[0].mxu0
        %v2233 = vadd.f32 0.0, %v2232
        %v2234 = vpop.f32.mrb[0].mxu0
        %2235 = vmatprep.mubr.f32.mxu0 0.0
        %2236 = vmatmul.mubr.f32.gmra.mrb[0].mxu0 %v1872
        %v2237 = vpop.f32.mrb[0].mxu0
        %v2238 = vadd.f32 0.0, %v2237
        %v2239 = vpop.f32.mrb[0].mxu0
        %2240 = vdwg.mxu0
        %v2241 = vadd.f32 %v2148, %v2233
        %v2242 = vadd.f32 %v2149, %v2238
        %v2243 = vld [vmem:[%s677 + $0x3] sm:$0x1]
        %v2244 = vlaneseq
        %v2245 = vshrl.u32 %v2244, 7
        %v2246 = vsub.s32 0, %v2245
        %v2247 = vrot.slane %v2243, %v2246
        %v2248 = vadd.f32 %v2241, %v2247
        %v2249 = vadd.f32 %v2242, %v2247
        %v2250 = vld [vmem:[%s677 + $0x4] sm:$0x1]
        %v2251 = vld [vmem:[%s677 + $0x5] sm:$0x1]
        %2252 = vadd.xlane.f32.xlu0 %v2248
        %v2253 = vpop.xlane.xlu0 %2252
        %2254 = vadd.xlane.f32.xlu0 %v2249
        %v2255 = vpop.xlane.xlu0 %2254
        %v2256 = vmul.f32 %v2253, %v1686
        %v2257 = vmul.f32 %v2255, %v1686
        %v2258 = vsub.f32 %v2248, %v2256
        %v2259 = vsub.f32 %v2249, %v2257
        %v2260 = vmul.f32 %v2258, %v2258
        %v2261 = vmul.f32 %v2259, %v2259
        %2262 = vadd.xlane.f32.xlu0 %v2260
        %v2263 = vpop.xlane.xlu0 %2262
        %2264 = vadd.xlane.f32.xlu0 %v2261
        %v2265 = vpop.xlane.xlu0 %2264
        %v2266 = vmul.f32 %v2263, %v1686
        %v2267 = vmul.f32 %v2265, %v1686
        %v2268 = vadd.f32 %v2266, 1e-06
        %v2269 = vadd.f32 %v2267, 1e-06
        %v2270 = vrsqrt.pop %v2268
        %v2271 = vrsqrt.pop %v2269
        %v2272 = vmul.f32 %v2258, %v2270
        %v2273 = vmul.f32 %v2259, %v2271
        %v2274 = vlaneseq
        %v2275 = vshrl.u32 %v2274, 7
        %v2276 = vsub.s32 0, %v2275
        %v2277 = vrot.slane %v2250, %v2276
        %v2278 = vmul.f32 %v2272, %v2277
        %v2279 = vmul.f32 %v2273, %v2277
        %v2280 = vlaneseq
        %v2281 = vshrl.u32 %v2280, 7
        %v2282 = vsub.s32 0, %v2281
        %v2283 = vrot.slane %v2251, %v2282
        %v2284 = vadd.f32 %v2278, %v2283
        %v2285 = vadd.f32 %v2279, %v2283
        %v2286 = vmax.f32 %v2284, 0.0
        %v2287 = vmax.f32 %v2285, 0.0
        %2288 = vst [vmem:[#allocation2] sm:$0xff] %v2286
        %2289 = vst [vmem:[#allocation2 + $0x8] sm:$0xff] %v2287
        %v2290 = vld [vmem:[#allocation11] sm:$0xf]
        %v2291 = vpack.c.bf16 %v2287, %v2286
        %v2293 = vsel %vm1090, %v2290, 0
        %2295 = vmatprep.subr.bf16.mxu0 0
        %2296 = vmatpush1.bf16.msra.mxu0 %v2291
        %2297 = vmatprep.subr.bf16.mxu0 0
        %2298 = vmatpush1.bf16.msra.mxu0 0
        %2299 = vmatprep.subr.bf16.mxu0 0
        %2300 = vmatpush1.bf16.msra.mxu0 0
        %2301 = vmatprep.subr.bf16.mxu0 0
        %2302 = vmatpush1.bf16.msra.mxu0 0
        %2303 = vmatprep.subr.bf16.mxu0 0
        %2304 = vmatpush1.bf16.msra.mxu0 0
        %2305 = vmatprep.subr.bf16.mxu0 0
        %2306 = vmatpush1.bf16.msra.mxu0 0
        %2307 = vmatprep.subr.bf16.mxu0 0
        %2308 = vmatpush1.bf16.msra.mxu0 0
        %2309 = vmatprep.subr.bf16.mxu0 0
        %2310 = vmatpush1.bf16.msra.mxu0 0
        %2311 = vmatprep.subr.bf16.mxu0 0
        %2312 = vmatpush1.bf16.msra.mxu0 0
        %2313 = vmatprep.subr.bf16.mxu0 0
        %2314 = vmatpush1.bf16.msra.mxu0 0
        %2315 = vmatprep.subr.bf16.mxu0 0
        %2316 = vmatpush1.bf16.msra.mxu0 0
        %2317 = vmatprep.subr.bf16.mxu0 0
        %2318 = vmatpush1.bf16.msra.mxu0 0
        %2319 = vmatprep.subr.bf16.mxu0 0
        %2320 = vmatpush1.bf16.msra.mxu0 0
        %2321 = vmatprep.subr.bf16.mxu0 0
        %2322 = vmatpush1.bf16.msra.mxu0 0
        %2323 = vmatprep.subr.bf16.mxu0 0
        %2324 = vmatpush1.bf16.msra.mxu0 0
        %2325 = vmatprep.subr.bf16.mxu0 0
        %2326 = vmatpush1.bf16.msra.mxu0 0
        %2327 = vmatprep.mubr.bf16.mxu0 0
        %2328 = vmatmul.mubr.bf16.gmra.mrb[0].mxu0 %v2293
        %v2329 = vpop.f32.mrb[0].mxu0
        %v2330 = vadd.f32 0.0, %v2329
        %v2331 = vpop.f32.mrb[0].mxu0
        %v2332 = vpop.f32.mrb[0].mxu0
        %v2333 = vpop.f32.mrb[0].mxu0
        %2334 = vdwg.mxu0
        %v2335 = vld [vmem:[#allocation12] sm:$0xf]
        %v2337 = vsel %vm1737, %v2335, 0
        %2339 = vmatprep.subr.bf16.mxu0 0
        %2340 = vmatpush1.bf16.msra.mxu0 %v1734
        %2341 = vmatprep.subr.bf16.mxu0 0
        %2342 = vmatpush1.bf16.msra.mxu0 %v1742
        %2343 = vmatprep.subr.bf16.mxu0 0
        %2344 = vmatpush1.bf16.msra.mxu0 0
        %2345 = vmatprep.subr.bf16.mxu0 0
        %2346 = vmatpush1.bf16.msra.mxu0 0
        %2347 = vmatprep.subr.bf16.mxu0 0
        %2348 = vmatpush1.bf16.msra.mxu0 0
        %2349 = vmatprep.subr.bf16.mxu0 0
        %2350 = vmatpush1.bf16.msra.mxu0 0
        %2351 = vmatprep.subr.bf16.mxu0 0
        %2352 = vmatpush1.bf16.msra.mxu0 0
        %2353 = vmatprep.subr.bf16.mxu0 0
        %2354 = vmatpush1.bf16.msra.mxu0 0
        %2355 = vmatprep.subr.bf16.mxu0 0
        %2356 = vmatpush1.bf16.msra.mxu0 0
        %2357 = vmatprep.subr.bf16.mxu0 0
        %2358 = vmatpush1.bf16.msra.mxu0 0
        %2359 = vmatprep.subr.bf16.mxu0 0
        %2360 = vmatpush1.bf16.msra.mxu0 0
        %2361 = vmatprep.subr.bf16.mxu0 0
        %2362 = vmatpush1.bf16.msra.mxu0 0
        %2363 = vmatprep.subr.bf16.mxu0 0
        %2364 = vmatpush1.bf16.msra.mxu0 0
        %2365 = vmatprep.subr.bf16.mxu0 0
        %2366 = vmatpush1.bf16.msra.mxu0 0
        %2367 = vmatprep.subr.bf16.mxu0 0
        %2368 = vmatpush1.bf16.msra.mxu0 0
        %2369 = vmatprep.subr.bf16.mxu0 0
        %2370 = vmatpush1.bf16.msra.mxu0 0
        %2371 = vmatprep.mubr.bf16.mxu0 0
        %2372 = vmatmul.mubr.bf16.gmra.mrb[0].mxu0 %v2337
        %v2373 = vpop.f32.mrb[0].mxu0
        %v2374 = vadd.f32 0.0, %v2373
        %v2375 = vpop.f32.mrb[0].mxu0
        %v2376 = vpop.f32.mrb[0].mxu0
        %v2377 = vpop.f32.mrb[0].mxu0
        %2378 = vdwg.mxu0
        %v2379 = vld [vmem:[%s610] sm:$0xff]
        %v2380 = vld [vmem:[%s610 + $0x8] sm:$0xff]
        %v2381 = vld [vmem:[%s610 + $0x10] sm:$0xff]
        %v2382 = vld [vmem:[%s610 + $0x18] sm:$0xff]
        %v2383 = vld [vmem:[%s610 + $0x20] sm:$0xff]
        %v2384 = vld [vmem:[%s610 + $0x28] sm:$0xff]
        %v2385 = vld [vmem:[%s610 + $0x30] sm:$0xff]
        %v2386 = vld [vmem:[%s610 + $0x38] sm:$0xff]
        %v2387 = vld [vmem:[%s610 + $0x40] sm:$0xff]
        %v2388 = vld [vmem:[%s610 + $0x48] sm:$0xff]
        %v2389 = vld [vmem:[%s610 + $0x50] sm:$0xff]
        %v2390 = vld [vmem:[%s610 + $0x58] sm:$0xff]
        %v2391 = vld [vmem:[%s610 + $0x60] sm:$0xff]
        %v2392 = vld [vmem:[%s610 + $0x68] sm:$0xff]
        %v2393 = vld [vmem:[%s610 + $0x70] sm:$0xff]
        %v2394 = vld [vmem:[%s610 + $0x78] sm:$0xff]
        %v2395 = vld [vmem:[%s610 + $0x80] sm:$0xff]
        %v2396 = vld [vmem:[%s610 + $0x88] sm:$0xff]
        %v2397 = vld [vmem:[%s610 + $0x90] sm:$0xff]
        %v2398 = vld [vmem:[%s610 + $0x98] sm:$0xff]
        %v2399 = vld [vmem:[%s610 + $0xa0] sm:$0xff]
        %v2400 = vld [vmem:[%s610 + $0xa8] sm:$0xff]
        %v2401 = vld [vmem:[%s610 + $0xb0] sm:$0xff]
        %v2402 = vld [vmem:[%s610 + $0xb8] sm:$0xff]
        %v2403 = vld [vmem:[%s610 + $0xc0] sm:$0xff]
        %v2404 = vld [vmem:[%s610 + $0xc8] sm:$0xff]
        %v2405 = vld [vmem:[%s610 + $0xd0] sm:$0xff]
        %v2406 = vld [vmem:[%s610 + $0xd8] sm:$0xff]
        %v2407 = vld [vmem:[%s610 + $0xe0] sm:$0xff]
        %v2408 = vld [vmem:[%s610 + $0xe8] sm:$0xff]
        %v2409 = vld [vmem:[%s610 + $0xf0] sm:$0xff]
        %v2410 = vld [vmem:[%s610 + $0xf8] sm:$0xff]
        %2411 = vmatprep.subr.mxu0 0.0
        %2412 = vmatpush1.msra.mxu0 %v2395
        %2413 = vmatprep.subr.mxu0 0.0
        %2414 = vmatpush1.msra.mxu0 %v2396
        %2415 = vmatprep.subr.mxu0 0.0
        %2416 = vmatpush1.msra.mxu0 %v2397
        %2417 = vmatprep.subr.mxu0 0.0
        %2418 = vmatpush1.msra.mxu0 %v2398
        %2419 = vmatprep.subr.mxu0 0.0
        %2420 = vmatpush1.msra.mxu0 %v2399
        %2421 = vmatprep.subr.mxu0 0.0
        %2422 = vmatpush1.msra.mxu0 %v2400
        %2423 = vmatprep.subr.mxu0 0.0
        %2424 = vmatpush1.msra.mxu0 %v2401
        %2425 = vmatprep.subr.mxu0 0.0
        %2426 = vmatpush1.msra.mxu0 %v2402
        %2427 = vmatprep.subr.mxu0 0.0
        %2428 = vmatpush1.msra.mxu0 %v2403
        %2429 = vmatprep.subr.mxu0 0.0
        %2430 = vmatpush1.msra.mxu0 %v2404
        %2431 = vmatprep.subr.mxu0 0.0
        %2432 = vmatpush1.msra.mxu0 %v2405
        %2433 = vmatprep.subr.mxu0 0.0
        %2434 = vmatpush1.msra.mxu0 %v2406
        %2435 = vmatprep.subr.mxu0 0.0
        %2436 = vmatpush1.msra.mxu0 %v2407
        %2437 = vmatprep.subr.mxu0 0.0
        %2438 = vmatpush1.msra.mxu0 %v2408
        %2439 = vmatprep.subr.mxu0 0.0
        %2440 = vmatpush1.msra.mxu0 %v2409
        %2441 = vmatprep.subr.mxu0 0.0
        %2442 = vmatpush1.msra.mxu0 %v2410
        %2443 = vmatprep.subr.mxu0 0.0
        %2444 = vmatpush1.msra.mxu0 0.0
        %2445 = vmatprep.subr.mxu0 0.0
        %2446 = vmatpush1.msra.mxu0 0.0
        %2447 = vmatprep.subr.mxu0 0.0
        %2448 = vmatpush1.msra.mxu0 0.0
        %2449 = vmatprep.subr.mxu0 0.0
        %2450 = vmatpush1.msra.mxu0 0.0
        %2451 = vmatprep.subr.mxu0 0.0
        %2452 = vmatpush1.msra.mxu0 0.0
        %2453 = vmatprep.subr.mxu0 0.0
        %2454 = vmatpush1.msra.mxu0 0.0
        %2455 = vmatprep.subr.mxu0 0.0
        %2456 = vmatpush1.msra.mxu0 0.0
        %2457 = vmatprep.subr.mxu0 0.0
        %2458 = vmatpush1.msra.mxu0 0.0
        %2459 = vmatprep.subr.mxu0 0.0
        %2460 = vmatpush1.msra.mxu0 0.0
        %2461 = vmatprep.subr.mxu0 0.0
        %2462 = vmatpush1.msra.mxu0 0.0
        %2463 = vmatprep.subr.mxu0 0.0
        %2464 = vmatpush1.msra.mxu0 0.0
        %2465 = vmatprep.subr.mxu0 0.0
        %2466 = vmatpush1.msra.mxu0 0.0
        %2467 = vmatprep.subr.mxu0 0.0
        %2468 = vmatpush1.msra.mxu0 0.0
        %2469 = vmatprep.subr.mxu0 0.0
        %2470 = vmatpush1.msra.mxu0 0.0
        %2471 = vmatprep.subr.mxu0 0.0
        %2472 = vmatpush1.msra.mxu0 0.0
        %2473 = vmatprep.subr.mxu0 0.0
        %2474 = vmatpush1.msra.mxu0 0.0
        %2475 = vmatprep.mubr.f32.mxu0 0.0
        %2476 = vmatmul.mubr.f32.gmra.mrb[0].mxu0 %v2374
        %v2477 = vpop.f32.mrb[0].mxu0
        %v2478 = vadd.f32 0.0, %v2477
        %v2479 = vpop.f32.mrb[0].mxu0
        %2480 = vdwg.mxu0
        %2481 = vmatprep.subr.mxu0 0.0
        %2482 = vmatpush1.msra.mxu0 %v2379
        %2483 = vmatprep.subr.mxu0 0.0
        %2484 = vmatpush1.msra.mxu0 %v2380
        %2485 = vmatprep.subr.mxu0 0.0
        %2486 = vmatpush1.msra.mxu0 %v2381
        %2487 = vmatprep.subr.mxu0 0.0
        %2488 = vmatpush1.msra.mxu0 %v2382
        %2489 = vmatprep.subr.mxu0 0.0
        %2490 = vmatpush1.msra.mxu0 %v2383
        %2491 = vmatprep.subr.mxu0 0.0
        %2492 = vmatpush1.msra.mxu0 %v2384
        %2493 = vmatprep.subr.mxu0 0.0
        %2494 = vmatpush1.msra.mxu0 %v2385
        %2495 = vmatprep.subr.mxu0 0.0
        %2496 = vmatpush1.msra.mxu0 %v2386
        %2497 = vmatprep.subr.mxu0 0.0
        %2498 = vmatpush1.msra.mxu0 %v2387
        %2499 = vmatprep.subr.mxu0 0.0
        %2500 = vmatpush1.msra.mxu0 %v2388
        %2501 = vmatprep.subr.mxu0 0.0
        %2502 = vmatpush1.msra.mxu0 %v2389
        %2503 = vmatprep.subr.mxu0 0.0
        %2504 = vmatpush1.msra.mxu0 %v2390
        %2505 = vmatprep.subr.mxu0 0.0
        %2506 = vmatpush1.msra.mxu0 %v2391
        %2507 = vmatprep.subr.mxu0 0.0
        %2508 = vmatpush1.msra.mxu0 %v2392
        %2509 = vmatprep.subr.mxu0 0.0
        %2510 = vmatpush1.msra.mxu0 %v2393
        %2511 = vmatprep.subr.mxu0 0.0
        %2512 = vmatpush1.msra.mxu0 %v2394
        %2513 = vmatprep.subr.mxu0 0.0
        %2514 = vmatpush1.msra.mxu0 0.0
        %2515 = vmatprep.subr.mxu0 0.0
        %2516 = vmatpush1.msra.mxu0 0.0
        %2517 = vmatprep.subr.mxu0 0.0
        %2518 = vmatpush1.msra.mxu0 0.0
        %2519 = vmatprep.subr.mxu0 0.0
        %2520 = vmatpush1.msra.mxu0 0.0
        %2521 = vmatprep.subr.mxu0 0.0
        %2522 = vmatpush1.msra.mxu0 0.0
        %2523 = vmatprep.subr.mxu0 0.0
        %2524 = vmatpush1.msra.mxu0 0.0
        %2525 = vmatprep.subr.mxu0 0.0
        %2526 = vmatpush1.msra.mxu0 0.0
        %2527 = vmatprep.subr.mxu0 0.0
        %2528 = vmatpush1.msra.mxu0 0.0
        %2529 = vmatprep.subr.mxu0 0.0
        %2530 = vmatpush1.msra.mxu0 0.0
        %2531 = vmatprep.subr.mxu0 0.0
        %2532 = vmatpush1.msra.mxu0 0.0
        %2533 = vmatprep.subr.mxu0 0.0
        %2534 = vmatpush1.msra.mxu0 0.0
        %2535 = vmatprep.subr.mxu0 0.0
        %2536 = vmatpush1.msra.mxu0 0.0
        %2537 = vmatprep.subr.mxu0 0.0
        %2538 = vmatpush1.msra.mxu0 0.0
        %2539 = vmatprep.subr.mxu0 0.0
        %2540 = vmatpush1.msra.mxu0 0.0
        %2541 = vmatprep.subr.mxu0 0.0
        %2542 = vmatpush1.msra.mxu0 0.0
        %2543 = vmatprep.subr.mxu0 0.0
        %2544 = vmatpush1.msra.mxu0 0.0
        %2545 = vmatprep.mubr.f32.mxu0 0.0
        %2546 = vmatmul.mubr.f32.gmra.mrb[0].mxu0 %v2330
        %v2547 = vpop.f32.mrb[0].mxu0
        %v2548 = vadd.f32 %v2478, %v2547
        %v2549 = vpop.f32.mrb[0].mxu0
        %2550 = vdwg.mxu0
        %v2551 = vld [vmem:[%s610 + $0x100] sm:$0xff]
        %v2552 = vld [vmem:[%s610 + $0x108] sm:$0xff]
        %v2553 = vld [vmem:[%s610 + $0x110] sm:$0xff]
        %v2554 = vld [vmem:[%s610 + $0x118] sm:$0xff]
        %v2555 = vld [vmem:[%s610 + $0x120] sm:$0xff]
        %v2556 = vld [vmem:[%s610 + $0x128] sm:$0xff]
        %v2557 = vld [vmem:[%s610 + $0x130] sm:$0xff]
        %v2558 = vld [vmem:[%s610 + $0x138] sm:$0xff]
        %v2559 = vld [vmem:[%s610 + $0x140] sm:$0xff]
        %v2560 = vld [vmem:[%s610 + $0x148] sm:$0xff]
        %v2561 = vld [vmem:[%s610 + $0x150] sm:$0xff]
        %v2562 = vld [vmem:[%s610 + $0x158] sm:$0xff]
        %v2563 = vld [vmem:[%s610 + $0x160] sm:$0xff]
        %v2564 = vld [vmem:[%s610 + $0x168] sm:$0xff]
        %v2565 = vld [vmem:[%s610 + $0x170] sm:$0xff]
        %v2566 = vld [vmem:[%s610 + $0x178] sm:$0xff]
        %2567 = vmatprep.subr.mxu0 0.0
        %2568 = vmatpush1.msra.mxu0 %v2551
        %2569 = vmatprep.subr.mxu0 0.0
        %2570 = vmatpush1.msra.mxu0 %v2552
        %2571 = vmatprep.subr.mxu0 0.0
        %2572 = vmatpush1.msra.mxu0 %v2553
        %2573 = vmatprep.subr.mxu0 0.0
        %2574 = vmatpush1.msra.mxu0 %v2554
        %2575 = vmatprep.subr.mxu0 0.0
        %2576 = vmatpush1.msra.mxu0 %v2555
        %2577 = vmatprep.subr.mxu0 0.0
        %2578 = vmatpush1.msra.mxu0 %v2556
        %2579 = vmatprep.subr.mxu0 0.0
        %2580 = vmatpush1.msra.mxu0 %v2557
        %2581 = vmatprep.subr.mxu0 0.0
        %2582 = vmatpush1.msra.mxu0 %v2558
        %2583 = vmatprep.subr.mxu0 0.0
        %2584 = vmatpush1.msra.mxu0 %v2559
        %2585 = vmatprep.subr.mxu0 0.0
        %2586 = vmatpush1.msra.mxu0 %v2560
        %2587 = vmatprep.subr.mxu0 0.0
        %2588 = vmatpush1.msra.mxu0 %v2561
        %2589 = vmatprep.subr.mxu0 0.0
        %2590 = vmatpush1.msra.mxu0 %v2562
        %2591 = vmatprep.subr.mxu0 0.0
        %2592 = vmatpush1.msra.mxu0 %v2563
        %2593 = vmatprep.subr.mxu0 0.0
        %2594 = vmatpush1.msra.mxu0 %v2564
        %2595 = vmatprep.subr.mxu0 0.0
        %2596 = vmatpush1.msra.mxu0 %v2565
        %2597 = vmatprep.subr.mxu0 0.0
        %2598 = vmatpush1.msra.mxu0 %v2566
        %2599 = vmatprep.subr.mxu0 0.0
        %2600 = vmatpush1.msra.mxu0 0.0
        %2601 = vmatprep.subr.mxu0 0.0
        %2602 = vmatpush1.msra.mxu0 0.0
        %2603 = vmatprep.subr.mxu0 0.0
        %2604 = vmatpush1.msra.mxu0 0.0
        %2605 = vmatprep.subr.mxu0 0.0
        %2606 = vmatpush1.msra.mxu0 0.0
        %2607 = vmatprep.subr.mxu0 0.0
        %2608 = vmatpush1.msra.mxu0 0.0
        %2609 = vmatprep.subr.mxu0 0.0
        %2610 = vmatpush1.msra.mxu0 0.0
        %2611 = vmatprep.subr.mxu0 0.0
        %2612 = vmatpush1.msra.mxu0 0.0
        %2613 = vmatprep.subr.mxu0 0.0
        %2614 = vmatpush1.msra.mxu0 0.0
        %2615 = vmatprep.subr.mxu0 0.0
        %2616 = vmatpush1.msra.mxu0 0.0
        %2617 = vmatprep.subr.mxu0 0.0
        %2618 = vmatpush1.msra.mxu0 0.0
        %2619 = vmatprep.subr.mxu0 0.0
        %2620 = vmatpush1.msra.mxu0 0.0
        %2621 = vmatprep.subr.mxu0 0.0
        %2622 = vmatpush1.msra.mxu0 0.0
        %2623 = vmatprep.subr.mxu0 0.0
        %2624 = vmatpush1.msra.mxu0 0.0
        %2625 = vmatprep.subr.mxu0 0.0
        %2626 = vmatpush1.msra.mxu0 0.0
        %2627 = vmatprep.subr.mxu0 0.0
        %2628 = vmatpush1.msra.mxu0 0.0
        %2629 = vmatprep.subr.mxu0 0.0
        %2630 = vmatpush1.msra.mxu0 0.0
        %2631 = vmatprep.mubr.f32.mxu0 0.0
        %2632 = vmatmul.mubr.f32.gmra.mrb[0].mxu0 %v1076
        %v2633 = vpop.f32.mrb[0].mxu0
        %v2634 = vadd.f32 0.0, %v2633
        %v2635 = vpop.f32.mrb[0].mxu0
        %2636 = vdwg.mxu0
        %v2637 = vadd.f32 %v2548, %v2634
        %v2638 = vld [vmem:[%s677 + $0x6] sm:$0x1]
        %v2639 = vlaneseq
        %v2640 = vshrl.u32 %v2639, 7
        %v2641 = vsub.s32 0, %v2640
        %v2642 = vrot.slane %v2638, %v2641
        %v2643 = vadd.f32 %v2637, %v2642
        %v2644 = vld [vmem:[%s677 + $0x7] sm:$0x1]
        %v2645 = vld [vmem:[%s677 + $0x8] sm:$0x1]
        %2646 = vadd.xlane.f32.xlu0 %v2643
        %v2647 = vpop.xlane.xlu0 %2646
        %v2648 = vmul.f32 %v2647, %v1686
        %v2649 = vsub.f32 %v2643, %v2648
        %v2650 = vmul.f32 %v2649, %v2649
        %2651 = vadd.xlane.f32.xlu0 %v2650
        %v2652 = vpop.xlane.xlu0 %2651
        %v2653 = vmul.f32 %v2652, %v1686
        %v2654 = vadd.f32 %v2653, 1e-06
        %v2655 = vrsqrt.pop %v2654
        %v2656 = vmul.f32 %v2649, %v2655
        %v2657 = vlaneseq
        %v2658 = vshrl.u32 %v2657, 7
        %v2659 = vsub.s32 0, %v2658
        %v2660 = vrot.slane %v2644, %v2659
        %v2661 = vmul.f32 %v2656, %v2660
        %v2662 = vlaneseq
        %v2663 = vshrl.u32 %v2662, 7
        %v2664 = vsub.s32 0, %v2663
        %v2665 = vrot.slane %v2645, %v2664
        %v2666 = vadd.f32 %v2661, %v2665
        %v2667 = vmax.f32 %v2666, 0.0
        %2668 = vst [vmem:[#allocation4] sm:$0xff] %v2667
        %p2669 = scmp.eq.s32.totalorder %s35, 1
        // Predicated region
        $region109: #{gnn_forward.1} parent=91 // pred_check
          %p2670 = pneg %p2669
        $region110: #{gnn_forward.1} parent=91 // pred_check_branch
          %2672 = sbr.rel (%p2670) target = $region112
        $region111: #{gnn_forward.1} parent=91 // pred_region
          %v2673 = vld [vmem:[%s17] sm:$0xff]
          %v2674 = vld [vmem:[%s17 + $0x8] sm:$0xff]
          %v2675 = vld [vmem:[%s17 + $0x10] sm:$0xff]
          %v2676 = vld [vmem:[%s17 + $0x18] sm:$0xff]
          %v2677 = vld [vmem:[%s17 + $0x20] sm:$0xff]
          %v2678 = vld [vmem:[%s17 + $0x28] sm:$0xff]
          %v2679 = vld [vmem:[%s17 + $0x30] sm:$0xff]
          %v2680 = vld [vmem:[%s17 + $0x38] sm:$0xff]
          %v2681 = vld [vmem:[%s17 + $0x40] sm:$0xff]
          %v2682 = vld [vmem:[%s17 + $0x48] sm:$0xff]
          %v2683 = vld [vmem:[%s17 + $0x50] sm:$0xff]
          %v2684 = vld [vmem:[%s17 + $0x58] sm:$0xff]
          %v2685 = vld [vmem:[%s17 + $0x60] sm:$0xff]
          %v2686 = vld [vmem:[%s17 + $0x68] sm:$0xff]
          %v2687 = vld [vmem:[%s17 + $0x70] sm:$0xff]
          %v2688 = vld [vmem:[%s17 + $0x78] sm:$0xff]
          %v2689 = vld [vmem:[%s12 + $0x2] sm:$0x1]
          %v2690 = vlaneseq
          %v2691 = vshrl.u32 %v2690, 7
          %v2692 = vsub.s32 0, %v2691
          %v2693 = vrot.slane %v2689, %v2692
          %2694 = vmatprep.subr.mxu0 0.0
          %2695 = vmatpush1.msra.mxu0 %v2673
          %2696 = vmatprep.subr.mxu0 0.0
          %2697 = vmatpush1.msra.mxu0 %v2674
          %2698 = vmatprep.subr.mxu0 0.0
          %2699 = vmatpush1.msra.mxu0 %v2675
          %2700 = vmatprep.subr.mxu0 0.0
          %2701 = vmatpush1.msra.mxu0 %v2676
          %2702 = vmatprep.subr.mxu0 0.0
          %2703 = vmatpush1.msra.mxu0 %v2677
          %2704 = vmatprep.subr.mxu0 0.0
          %2705 = vmatpush1.msra.mxu0 %v2678
          %2706 = vmatprep.subr.mxu0 0.0
          %2707 = vmatpush1.msra.mxu0 %v2679
          %2708 = vmatprep.subr.mxu0 0.0
          %2709 = vmatpush1.msra.mxu0 %v2680
          %2710 = vmatprep.subr.mxu0 0.0
          %2711 = vmatpush1.msra.mxu0 %v2681
          %2712 = vmatprep.subr.mxu0 0.0
          %2713 = vmatpush1.msra.mxu0 %v2682
          %2714 = vmatprep.subr.mxu0 0.0
          %2715 = vmatpush1.msra.mxu0 %v2683
          %2716 = vmatprep.subr.mxu0 0.0
          %2717 = vmatpush1.msra.mxu0 %v2684
          %2718 = vmatprep.subr.mxu0 0.0
          %2719 = vmatpush1.msra.mxu0 %v2685
          %2720 = vmatprep.subr.mxu0 0.0
          %2721 = vmatpush1.msra.mxu0 %v2686
          %2722 = vmatprep.subr.mxu0 0.0
          %2723 = vmatpush1.msra.mxu0 %v2687
          %2724 = vmatprep.subr.mxu0 0.0
          %2725 = vmatpush1.msra.mxu0 %v2688
          %2726 = vmatprep.subr.mxu0 0.0
          %2727 = vmatpush1.msra.mxu0 0.0
          %2728 = vmatprep.subr.mxu0 0.0
          %2729 = vmatpush1.msra.mxu0 0.0
          %2730 = vmatprep.subr.mxu0 0.0
          %2731 = vmatpush1.msra.mxu0 0.0
          %2732 = vmatprep.subr.mxu0 0.0
          %2733 = vmatpush1.msra.mxu0 0.0
          %2734 = vmatprep.subr.mxu0 0.0
          %2735 = vmatpush1.msra.mxu0 0.0
          %2736 = vmatprep.subr.mxu0 0.0
          %2737 = vmatpush1.msra.mxu0 0.0
          %2738 = vmatprep.subr.mxu0 0.0
          %2739 = vmatpush1.msra.mxu0 0.0
          %2740 = vmatprep.subr.mxu0 0.0
          %2741 = vmatpush1.msra.mxu0 0.0
          %2742 = vmatprep.subr.mxu0 0.0
          %2743 = vmatpush1.msra.mxu0 0.0
          %2744 = vmatprep.subr.mxu0 0.0
          %2745 = vmatpush1.msra.mxu0 0.0
          %2746 = vmatprep.subr.mxu0 0.0
          %2747 = vmatpush1.msra.mxu0 0.0
          %2748 = vmatprep.subr.mxu0 0.0
          %2749 = vmatpush1.msra.mxu0 0.0
          %2750 = vmatprep.subr.mxu0 0.0
          %2751 = vmatpush1.msra.mxu0 0.0
          %2752 = vmatprep.subr.mxu0 0.0
          %2753 = vmatpush1.msra.mxu0 0.0
          %2754 = vmatprep.subr.mxu0 0.0
          %2755 = vmatpush1.msra.mxu0 0.0
          %2756 = vmatprep.subr.mxu0 0.0
          %2757 = vmatpush1.msra.mxu0 0.0
          %2758 = vmatprep.mubr.f32.mxu0 0.0
          %2759 = vmatmul.mubr.f32.gmra.mrb[0].mxu0 %v2667
          %v2760 = vpop.f32.mrb[0].mxu0
          %v2761 = vadd.f32 %v2693, %v2760
          %v2762 = vpop.f32.mrb[0].mxu0
          %2763 = vdwg.mxu0
          %2764 = vst [vmem:[%s18] sm:$0xff] %v2761
        $region112: #{gnn_forward.1} parent=91 // pred_fallthru
          _
        // Predicated region
        $region113: #{gnn_forward.1} parent=91 // pred_check
          %p2765 = pneg %p446
        $region114: #{gnn_forward.1} parent=91 // pred_check_branch
          %2767 = sbr.rel (%p2765) target = $region116
        $region115: #{gnn_forward.1} parent=91 // pred_region
          _
        $region116: #{gnn_forward.1} parent=91 // pred_fallthru
          _
        // Predicated region
        $region117: #{gnn_forward.1} parent=91 // pred_check
          %p2768 = pneg %p446
        $region118: #{gnn_forward.1} parent=91 // pred_check_branch
          %2770 = sbr.rel (%p2768) target = $region120
        $region119: #{gnn_forward.1} parent=91 // pred_region
          _
        $region120: #{gnn_forward.1} parent=91 // pred_fallthru
          _
      $region92: #{gnn_forward.1} parent=5 // pred_fallthru
        _
      %p2771 = scmp.le.s32.totalorder 2, %s30
      // Predicated region
      $region121: #{gnn_forward.1} parent=5 // pred_check
        %p2772 = pneg %p2771
      $region122: #{gnn_forward.1} parent=5 // pred_check_branch
        %2774 = sbr.rel (%p2772) target = $region124
      $region123: #{gnn_forward.1} parent=5 // pred_region
        %s2775 = ssub.s32 %s30, 2
      $region124: #{gnn_forward.1} parent=5 // pred_fallthru
        _
    $region6: #{gnn_forward.1} parent=1 // loop_footer
      %s34 = sadd.s32 1, %s30
    $region7: #{gnn_forward.1} parent=1 // loop_footer_branch
      %29 = sbr.rel target = $region3
    $region8: #{gnn_forward.1} parent=1 // loop_exit
      _
    %2776 = vsyncpa [#allocation14], 1
    %s2777 = scalar_lea.sflag [#allocation14], 1
    %2778 = vsyncpa %s2777, 1
    %2779 = vsyncpa [#allocation16], 1
    %s2780 = scalar_lea.sflag [#allocation16], 1
    %2781 = vsyncpa %s2780, 1

</llo_original>
